<compile_context>
chip_gen: v6e
topology: v6e:2x2x1
jax: 0.10.0
libtpu: 0.0.40
codegen_flags: <defaults>
</compile_context>

<pallas_src>
import jax
import jax.numpy as jnp
from jax.experimental import pallas as pl
from jax.experimental.pallas import tpu as pltpu

# ---------------- small synthetic configuration ----------------
B = 2            # n_mol (batch)
N_ATOM = 15      # atoms per molecule
T = N_ATOM + 1   # + graph token
D = 32           # embedding_dim
FFN = 64         # ffn_embedding_dim
H = 4            # num_attention_heads
HD = D // H      # head dim
LAYERS = 2       # num_encoder_layers
NUM_ATOMS = 16
NUM_IN_DEG = 16
NUM_OUT_DEG = 16
NUM_EDGES = 16
NUM_SPATIAL = 16
F_ATOM = 3       # atom feature columns
F_EDGE = 1       # edge feature columns
LN_EPS = 1e-5
SCALING = HD ** -0.5
NEG_BIG = -1e30  # additive key-padding mask (finite -> no NaN hazard)


# ======================================================================
# Pallas kernel: whole encoder stack (all layers, whole batch) in one call.
# ======================================================================
def fused_encoder_kernel(x_ref, bias_ref,
                         wqkv_ref, bqkv_ref, wo_ref, vec_ref,
                         fc1w_ref, fc1b_ref, fc2w_ref,
                         o_ref):
    x = x_ref[...]                       # (B*T, D)
    bias = bias_ref[...]                 # (B, H, T, T), key-pad mask folded in
    bias_h = [bias[:, hh] for hh in range(H)]   # hoisted per-head bias (B,T,T)
    o_ref[0] = x                         # inner_states[0] (embeddings)

    def layer_norm(z, w, b):
        mu = jnp.mean(z, axis=-1, keepdims=True)
        zc = z - mu
        var = jnp.mean(zc * zc, axis=-1, keepdims=True)
        return zc * jax.lax.rsqrt(var + LN_EPS) * w + b

    for l in range(LAYERS):              # static unroll; weights stay resident
        vecs = vec_ref[l]                # (6, D): ln1w ln1b bo ln2w ln2b fc2b
        ln1w, ln1b = vecs[0:1], vecs[1:2]
        bo = vecs[2:3]
        ln2w, ln2b = vecs[3:4], vecs[4:5]
        fc2b = vecs[5:6]

        # ---------------- self-attention (pre-LN) ----------------
        h = layer_norm(x, ln1w, ln1b)                                   # (B*T, D)
        qkv = (jnp.dot(h, wqkv_ref[l], preferred_element_type=jnp.float32)
               + bqkv_ref[l])                                           # (B*T, 3D)
        ctx_heads = []
        for hh in range(H):              # H is small & static
            q = qkv[:, hh * HD:(hh + 1) * HD].reshape(B, T, HD)         # pre-scaled
            k = qkv[:, D + hh * HD:D + (hh + 1) * HD].reshape(B, T, HD)
            v = qkv[:, 2 * D + hh * HD:2 * D + (hh + 1) * HD].reshape(B, T, HD)
            s = jax.lax.dot_general(q, k, (((2,), (2,)), ((0,), (0,))),
                                    preferred_element_type=jnp.float32)  # (B,T,T)
            s = s + bias_h[hh]           # attn bias + additive key-pad mask
            m = jnp.max(s, axis=-1, keepdims=True)
            e = jnp.exp(s - m)
            p = e * pl.reciprocal(jnp.sum(e, axis=-1, keepdims=True), approx=True)
            ctx_heads.append(
                jax.lax.dot_general(p, v, (((2,), (1,)), ((0,), (0,))),
                                    preferred_element_type=jnp.float32))  # (B,T,HD)
        ctx = jnp.concatenate(ctx_heads, axis=-1).reshape(B * T, D)
        attn = jnp.dot(ctx, wo_ref[l], preferred_element_type=jnp.float32) + bo
        x = x + attn                                                    # residual

        # ---------------- feed-forward (pre-LN) ----------------
        h2 = layer_norm(x, ln2w, ln2b)
        h2 = jnp.maximum(
            jnp.dot(h2, fc1w_ref[l], preferred_element_type=jnp.float32)
            + fc1b_ref[l], 0.0)                                         # relu
        h2 = jnp.dot(h2, fc2w_ref[l], preferred_element_type=jnp.float32) + fc2b
        x = x + h2                                                      # residual
        o_ref[l + 1] = x


def _full_spec(shape):
    return pl.BlockSpec(shape, lambda i, _n=len(shape): (0,) * _n)


def fused_encoder(x2d, attn_bias, params):
    """x2d: (B*T, D); attn_bias: (B, H, T, T) with key-pad mask folded in."""
    in_specs = [
        _full_spec((B * T, D)),
        _full_spec((B, H, T, T)),
        _full_spec((LAYERS, D, 3 * D)),   # wqkv (scale folded into Q columns)
        _full_spec((LAYERS, 1, 3 * D)),   # bqkv
        _full_spec((LAYERS, D, D)),       # wo
        _full_spec((LAYERS, 6, D)),       # [ln1w, ln1b, bo, ln2w, ln2b, fc2b]
        _full_spec((LAYERS, D, FFN)),     # fc1w
        _full_spec((LAYERS, 1, FFN)),     # fc1b
        _full_spec((LAYERS, FFN, D)),     # fc2w
    ]
    return pl.pallas_call(
        fused_encoder_kernel,
        out_shape=jax.ShapeDtypeStruct((LAYERS + 1, B * T, D), jnp.float32),
        grid=(1,),
        in_specs=in_specs,
        out_specs=_full_spec((LAYERS + 1, B * T, D)),
        compiler_params=pltpu.CompilerParams(dimension_semantics=("arbitrary",)),
    )(x2d, attn_bias,
      params["wqkv"], params["bqkv"], params["wo"], params["vecs"],
      params["fc1w"], params["fc1b"], params["fc2w"])


# ======================================================================
# Glue (plain JAX): embedding gathers + bias assembly (AtomFeature /
# MoleculeAttnBias) — gather-dominated setup, not the matmul hot path.
# ======================================================================
def atom_feature(bd, params):
    x_tok, in_deg, out_deg = bd["x"], bd["in_degree"], bd["out_degree"]
    node = params["atom_emb"][x_tok].sum(axis=-2)                 # (B, N, D)
    node = node + params["in_deg_emb"][in_deg] + params["out_deg_emb"][out_deg]
    graph_tok = jnp.broadcast_to(params["graph_token"][None], (B, 1, D))
    return jnp.concatenate([graph_tok, node], axis=1)             # (B, T, D)


def molecule_attn_bias(bd, params):
    attn_bias = bd["attn_bias"]                                   # (B, T, T)
    spatial_pos = bd["spatial_pos"]                               # (B, N, N)
    attn_edge_type = bd["attn_edge_type"]                         # (B, N, N, F_EDGE)
    g = jnp.broadcast_to(attn_bias[:, None], (B, H, T, T))
    sp = jnp.transpose(params["spatial_emb"][spatial_pos], (0, 3, 1, 2))
    g = g.at[:, :, 1:, 1:].add(sp)
    t = params["graph_token_vd"].reshape(1, H, 1)
    g = g.at[:, :, 1:, 0].add(t)
    g = g.at[:, :, 0, :].add(t)
    # edge_type != "multi_hop" branch
    ei = jnp.transpose(params["edge_emb"][attn_edge_type].mean(axis=-2), (0, 3, 1, 2))
    g = g.at[:, :, 1:, 1:].add(ei)
    g = g + attn_bias[:, None]                                    # "reset" add
    return g


def transformer_m_encoder_qm9_forward(bd, params, last_state_only=False):
    data_x = bd["x"]
    padding_mask = (data_x[:, :, 0] == 0)
    padding_mask = jnp.concatenate(
        [jnp.zeros((B, 1), dtype=bool), padding_mask], axis=1)    # (B, T)
    x = atom_feature(bd, params)                                  # (B, T, D)
    attn_bias = molecule_attn_bias(bd, params)                    # (B, H, T, T)
    # key-padding mask folded additively into the bias (graph-token key never
    # padded, so no fully-masked rows).
    attn_bias = attn_bias + jnp.where(padding_mask, NEG_BIG, 0.0)[:, None, None, :]
    # molecule_3d_bias=None, embed_scale=None, quant_noise=None,
    # emb_layer_norm=None, dropout=identity (eval)

    stacked = fused_encoder(x.reshape(B * T, D), attn_bias, params)
    stacked = stacked.reshape(LAYERS + 1, B, T, D).transpose(0, 2, 1, 3)  # (L+1,T,B,D)
    if last_state_only:
        inner_states = [stacked[-1]]
    else:
        inner_states = [stacked[i] for i in range(LAYERS + 1)]
    return inner_states, None


# ======================================================================
# Deterministic parameter / data construction
# ======================================================================
def init_params(key):
    std = 0.02
    ks = iter(jax.random.split(key, 256))

    def nrm(shape):
        return (jax.random.normal(next(ks), shape) * std).astype(jnp.float32)

    params = {
        "atom_emb": nrm((NUM_ATOMS + 1, D)).at[0].set(0.0),       # padding_idx=0
        "in_deg_emb": nrm((NUM_IN_DEG, D)).at[0].set(0.0),
        "out_deg_emb": nrm((NUM_OUT_DEG, D)).at[0].set(0.0),
        "graph_token": nrm((1, D)),
        "edge_emb": nrm((NUM_EDGES + 1, H)).at[0].set(0.0),
        "spatial_emb": nrm((NUM_SPATIAL, H)).at[0].set(0.0),
        "graph_token_vd": nrm((1, H)),
    }
    wqkv_l, bqkv_l, wo_l, vec_l, fc1w_l, fc1b_l, fc2w_l = ([] for _ in range(7))
    for _ in range(LAYERS):
        wq, wk, wv, wo = nrm((D, D)), nrm((D, D)), nrm((D, D)), nrm((D, D))  # (in,out)
        bq, bk, bv, bo = nrm((D,)), nrm((D,)), nrm((D,)), nrm((D,))
        ln1w, ln1b = jnp.ones((D,), jnp.float32), jnp.zeros((D,), jnp.float32)
        ln2w, ln2b = jnp.ones((D,), jnp.float32), jnp.zeros((D,), jnp.float32)
        fc1w, fc1b = nrm((D, FFN)), nrm((FFN,))
        fc2w, fc2b = nrm((FFN, D)), nrm((D,))
        # Fuse QKV and fold the 1/sqrt(head_dim) attention scale into Q.
        wqkv_l.append(jnp.concatenate([wq * SCALING, wk, wv], axis=1))   # (D, 3D)
        bqkv_l.append(jnp.concatenate([bq * SCALING, bk, bv])[None, :])  # (1, 3D)
        wo_l.append(wo)
        vec_l.append(jnp.stack([ln1w, ln1b, bo, ln2w, ln2b, fc2b], axis=0))  # (6, D)
        fc1w_l.append(fc1w)
        fc1b_l.append(fc1b[None, :])
        fc2w_l.append(fc2w)
    params.update({
        "wqkv": jnp.stack(wqkv_l),    # (LAYERS, D, 3D)
        "bqkv": jnp.stack(bqkv_l),    # (LAYERS, 1, 3D)
        "wo":   jnp.stack(wo_l),      # (LAYERS, D, D)
        "vecs": jnp.stack(vec_l),     # (LAYERS, 6, D)
        "fc1w": jnp.stack(fc1w_l),    # (LAYERS, D, FFN)
        "fc1b": jnp.stack(fc1b_l),    # (LAYERS, 1, FFN)
        "fc2w": jnp.stack(fc2w_l),    # (LAYERS, FFN, D)
    })
    return params


def make_batched_data(key):
    ks = jax.random.split(key, 8)
    # last 3 atoms of molecule 1 are padding (token 0 in every feature column)
    pad = jnp.zeros((B, N_ATOM), dtype=bool).at[1, -3:].set(True)
    x_tok = jax.random.randint(ks[0], (B, N_ATOM, F_ATOM), 1, NUM_ATOMS + 1)
    x_tok = jnp.where(pad[:, :, None], 0, x_tok)
    in_deg = jnp.where(pad, 0, jax.random.randint(ks[1], (B, N_ATOM), 1, NUM_IN_DEG))
    out_deg = jnp.where(pad, 0, jax.random.randint(ks[2], (B, N_ATOM), 1, NUM_OUT_DEG))
    spatial_pos = jax.random.randint(ks[3], (B, N_ATOM, N_ATOM), 1, NUM_SPATIAL)
    attn_edge_type = jax.random.randint(ks[4], (B, N_ATOM, N_ATOM, F_EDGE), 1, NUM_EDGES + 1)
    attn_bias = jnp.zeros((B, T, T), jnp.float32)
    return {
        "x": x_tok,
        "in_degree": in_deg,
        "out_degree": out_deg,
        "attn_bias": attn_bias,
        "spatial_pos": spatial_pos,
        "attn_edge_type": attn_edge_type,
        # TODO(synk): 'edge_input' (multi_hop branch) and 'pos' (3D bias) unused
        # under this config (edge_type != "multi_hop", add_3d=False).
    }


if __name__ == "__main__":
    key = jax.random.PRNGKey(0)
    kp, kd = jax.random.split(key)
    params = init_params(kp)
    batched_data = make_batched_data(kd)

    inner_states, _ = transformer_m_encoder_qm9_forward(batched_data, params)
    final = jax.block_until_ready(inner_states[-1])   # (T, B, D)

    assert final.shape == (T, B, D)
    assert len(inner_states) == LAYERS + 1
    assert bool(jnp.all(jnp.isfinite(final)))
    print("KERNEL_OK")
</pallas_src>

<mosaic_0001>
module attributes {stable_mosaic.version = 11 : i64} {
  func.func @fused_encoder_kernel(%arg0: i32, %arg1: memref<32x32xf32, #tpu.memory_space<vmem>>, %arg2: memref<2x4x16x16xf32, #tpu.memory_space<vmem>>, %arg3: memref<2x32x96xf32, #tpu.memory_space<vmem>>, %arg4: memref<2x1x96xf32, #tpu.memory_space<vmem>>, %arg5: memref<2x32x32xf32, #tpu.memory_space<vmem>>, %arg6: memref<2x6x32xf32, #tpu.memory_space<vmem>>, %arg7: memref<2x32x64xf32, #tpu.memory_space<vmem>>, %arg8: memref<2x1x64xf32, #tpu.memory_space<vmem>>, %arg9: memref<2x64x32xf32, #tpu.memory_space<vmem>>, %arg10: memref<3x32x32xf32, #tpu.memory_space<vmem>>) attributes {dimension_semantics = [#tpu.dimension_semantics<arbitrary>], iteration_bounds = array<i64: 1>, scalar_prefetch = 0 : i64, scratch_operands = 0 : i64, tpu.core_type = #tpu.core_type<tc>, window_params = [{pipeline_mode = #tpu.pipeline_mode<synchronous>, transform_indices = @transform_0, window_bounds = array<i64: 32, 32>}, {pipeline_mode = #tpu.pipeline_mode<synchronous>, transform_indices = @transform_1, window_bounds = array<i64: 2, 4, 16, 16>}, {pipeline_mode = #tpu.pipeline_mode<synchronous>, transform_indices = @transform_2, window_bounds = array<i64: 2, 32, 96>}, {pipeline_mode = #tpu.pipeline_mode<synchronous>, transform_indices = @transform_3, window_bounds = array<i64: 2, 1, 96>}, {pipeline_mode = #tpu.pipeline_mode<synchronous>, transform_indices = @transform_4, window_bounds = array<i64: 2, 32, 32>}, {pipeline_mode = #tpu.pipeline_mode<synchronous>, transform_indices = @transform_5, window_bounds = array<i64: 2, 6, 32>}, {pipeline_mode = #tpu.pipeline_mode<synchronous>, transform_indices = @transform_6, window_bounds = array<i64: 2, 32, 64>}, {pipeline_mode = #tpu.pipeline_mode<synchronous>, transform_indices = @transform_7, window_bounds = array<i64: 2, 1, 64>}, {pipeline_mode = #tpu.pipeline_mode<synchronous>, transform_indices = @transform_8, window_bounds = array<i64: 2, 64, 32>}, {pipeline_mode = #tpu.pipeline_mode<synchronous>, transform_indices = @transform_9, window_bounds = array<i64: 3, 32, 32>}]} {
    %c0 = arith.constant 0 : index
    %c0_0 = arith.constant 0 : index
    %0 = vector.load %arg1[%c0, %c0_0] : memref<32x32xf32, #tpu.memory_space<vmem>>, vector<32x32xf32>
    %c0_1 = arith.constant 0 : index
    %c0_2 = arith.constant 0 : index
    %c0_3 = arith.constant 0 : index
    %c0_4 = arith.constant 0 : index
    %1 = vector.load %arg2[%c0_1, %c0_2, %c0_3, %c0_4] : memref<2x4x16x16xf32, #tpu.memory_space<vmem>>, vector<2x4x16x16xf32>
    %2 = vector.extract_strided_slice %1 {offsets = [0, 0, 0, 0], sizes = [2, 1, 16, 16], strides = [1, 1, 1, 1]} : vector<2x4x16x16xf32> to vector<2x1x16x16xf32>
    %3 = vector.shape_cast %2 : vector<2x1x16x16xf32> to vector<2x16x16xf32>
    %4 = vector.extract_strided_slice %1 {offsets = [0, 1, 0, 0], sizes = [2, 1, 16, 16], strides = [1, 1, 1, 1]} : vector<2x4x16x16xf32> to vector<2x1x16x16xf32>
    %5 = vector.shape_cast %4 : vector<2x1x16x16xf32> to vector<2x16x16xf32>
    %6 = vector.extract_strided_slice %1 {offsets = [0, 2, 0, 0], sizes = [2, 1, 16, 16], strides = [1, 1, 1, 1]} : vector<2x4x16x16xf32> to vector<2x1x16x16xf32>
    %7 = vector.shape_cast %6 : vector<2x1x16x16xf32> to vector<2x16x16xf32>
    %8 = vector.extract_strided_slice %1 {offsets = [0, 3, 0, 0], sizes = [2, 1, 16, 16], strides = [1, 1, 1, 1]} : vector<2x4x16x16xf32> to vector<2x1x16x16xf32>
    %9 = vector.shape_cast %8 : vector<2x1x16x16xf32> to vector<2x16x16xf32>
    %c0_5 = arith.constant 0 : index
    %c0_6 = arith.constant 0 : index
    %c0_7 = arith.constant 0 : index
    %10 = vector.load %arg10[%c0_5, %c0_6, %c0_7] : memref<3x32x32xf32, #tpu.memory_space<vmem>>, vector<1x32x32xf32>
    %11 = vector.shape_cast %10 : vector<1x32x32xf32> to vector<32x32xf32>
    %12 = vector.shape_cast %0 : vector<32x32xf32> to vector<1x32x32xf32>
    tpu.vector_store %arg10[%c0_5, %c0_6, %c0_7], %12 {strides = array<i32>} : memref<3x32x32xf32, #tpu.memory_space<vmem>>, vector<1x32x32xf32>,
    %c0_8 = arith.constant 0 : index
    %c0_9 = arith.constant 0 : index
    %c0_10 = arith.constant 0 : index
    %13 = vector.load %arg6[%c0_8, %c0_9, %c0_10] : memref<2x6x32xf32, #tpu.memory_space<vmem>>, vector<1x6x32xf32>
    %14 = vector.shape_cast %13 : vector<1x6x32xf32> to vector<6x32xf32>
    %15 = vector.extract_strided_slice %14 {offsets = [0, 0], sizes = [1, 32], strides = [1, 1]} : vector<6x32xf32> to vector<1x32xf32>
    %16 = vector.extract_strided_slice %14 {offsets = [1, 0], sizes = [1, 32], strides = [1, 1]} : vector<6x32xf32> to vector<1x32xf32>
    %17 = vector.extract_strided_slice %14 {offsets = [2, 0], sizes = [1, 32], strides = [1, 1]} : vector<6x32xf32> to vector<1x32xf32>
    %18 = vector.extract_strided_slice %14 {offsets = [3, 0], sizes = [1, 32], strides = [1, 1]} : vector<6x32xf32> to vector<1x32xf32>
    %19 = vector.extract_strided_slice %14 {offsets = [4, 0], sizes = [1, 32], strides = [1, 1]} : vector<6x32xf32> to vector<1x32xf32>
    %20 = vector.extract_strided_slice %14 {offsets = [5, 0], sizes = [1, 32], strides = [1, 1]} : vector<6x32xf32> to vector<1x32xf32>
    %cst = arith.constant dense<0.000000e+00> : vector<32xf32>
    %21 = vector.multi_reduction <add>, %0, %cst [1] : vector<32x32xf32> to vector<32xf32>
    %22 = vector.shape_cast %21 : vector<32xf32> to vector<32x1xf32>
    %cst_11 = arith.constant 3.200000e+01 : f32
    %23 = vector.broadcast %cst_11 : f32 to vector<32x1xf32>
    %24 = arith.divf %22, %23 : vector<32x1xf32>
    %25 = vector.broadcast %24 : vector<32x1xf32> to vector<32x32xf32>
    %26 = arith.subf %0, %25 : vector<32x32xf32>
    %27 = arith.mulf %26, %26 : vector<32x32xf32>
    %cst_12 = arith.constant dense<0.000000e+00> : vector<32xf32>
    %28 = vector.multi_reduction <add>, %27, %cst_12 [1] : vector<32x32xf32> to vector<32xf32>
    %29 = vector.shape_cast %28 : vector<32xf32> to vector<32x1xf32>
    %cst_13 = arith.constant 3.200000e+01 : f32
    %30 = vector.broadcast %cst_13 : f32 to vector<32x1xf32>
    %31 = arith.divf %29, %30 : vector<32x1xf32>
    %cst_14 = arith.constant 9.99999974E-6 : f32
    %32 = vector.broadcast %cst_14 : f32 to vector<32x1xf32>
    %33 = arith.addf %31, %32 : vector<32x1xf32>
    %34 = math.rsqrt %33 : vector<32x1xf32>
    %35 = vector.broadcast %34 : vector<32x1xf32> to vector<32x32xf32>
    %36 = arith.mulf %26, %35 : vector<32x32xf32>
    %37 = vector.broadcast %15 : vector<1x32xf32> to vector<32x32xf32>
    %38 = arith.mulf %36, %37 : vector<32x32xf32>
    %39 = vector.broadcast %16 : vector<1x32xf32> to vector<32x32xf32>
    %40 = arith.addf %38, %39 : vector<32x32xf32>
    %c0_15 = arith.constant 0 : index
    %c0_16 = arith.constant 0 : index
    %c0_17 = arith.constant 0 : index
    %41 = vector.load %arg3[%c0_15, %c0_16, %c0_17] : memref<2x32x96xf32, #tpu.memory_space<vmem>>, vector<1x32x96xf32>
    %42 = vector.shape_cast %41 : vector<1x32x96xf32> to vector<32x96xf32>
    %cst_18 = arith.constant dense<0.000000e+00> : vector<32x96xf32>
    %43 = tpu.matmul %40, %42, %cst_18 {dimension_numbers = #tpu.dot_dimension_numbers<[1], [0], [0], [1], [0, 0, 1, 1], [], []>} : vector<32x32xf32>, vector<32x96xf32>, vector<32x96xf32> -> vector<32x96xf32>
    %c0_19 = arith.constant 0 : index
    %c0_20 = arith.constant 0 : index
    %c0_21 = arith.constant 0 : index
    %44 = vector.load %arg4[%c0_19, %c0_20, %c0_21] : memref<2x1x96xf32, #tpu.memory_space<vmem>>, vector<1x1x96xf32>
    %45 = vector.shape_cast %44 : vector<1x1x96xf32> to vector<1x96xf32>
    %46 = vector.broadcast %45 : vector<1x96xf32> to vector<32x96xf32>
    %47 = arith.addf %43, %46 : vector<32x96xf32>
    %48 = vector.extract_strided_slice %47 {offsets = [0, 0], sizes = [32, 8], strides = [1, 1]} : vector<32x96xf32> to vector<32x8xf32>
    %49 = vector.shape_cast %48 : vector<32x8xf32> to vector<2x16x8xf32>
    %50 = vector.extract_strided_slice %47 {offsets = [0, 32], sizes = [32, 8], strides = [1, 1]} : vector<32x96xf32> to vector<32x8xf32>
    %51 = vector.shape_cast %50 : vector<32x8xf32> to vector<2x16x8xf32>
    %52 = vector.extract_strided_slice %47 {offsets = [0, 64], sizes = [32, 8], strides = [1, 1]} : vector<32x96xf32> to vector<32x8xf32>
    %53 = vector.shape_cast %52 : vector<32x8xf32> to vector<2x16x8xf32>
    %cst_22 = arith.constant dense<0.000000e+00> : vector<2x16x16xf32>
    %54 = tpu.matmul %49, %51, %cst_22 {dimension_numbers = #tpu.dot_dimension_numbers<[2], [2], [1], [1], [0, 0, 0, 1, 1, 1], [0], [0]>} : vector<2x16x8xf32>, vector<2x16x8xf32>, vector<2x16x16xf32> -> vector<2x16x16xf32>
    %55 = arith.addf %54, %3 : vector<2x16x16xf32>
    %cst_23 = arith.constant dense<0xFF800000> : vector<2x16xf32>
    %56 = vector.multi_reduction <maximumf>, %55, %cst_23 [2] : vector<2x16x16xf32> to vector<2x16xf32>
    %57 = vector.shape_cast %56 : vector<2x16xf32> to vector<2x16x1xf32>
    %58 = vector.broadcast %57 : vector<2x16x1xf32> to vector<2x16x16xf32>
    %59 = arith.subf %55, %58 : vector<2x16x16xf32>
    %60 = math.exp %59 : vector<2x16x16xf32>
    %cst_24 = arith.constant dense<0.000000e+00> : vector<2x16xf32>
    %61 = vector.multi_reduction <add>, %60, %cst_24 [2] : vector<2x16x16xf32> to vector<2x16xf32>
    %62 = vector.shape_cast %61 : vector<2x16xf32> to vector<2x16x1xf32>
    %63 = tpu.reciprocal %62 {approx = true} : vector<2x16x1xf32> -> vector<2x16x1xf32>
    %64 = vector.broadcast %63 : vector<2x16x1xf32> to vector<2x16x16xf32>
    %65 = arith.mulf %60, %64 : vector<2x16x16xf32>
    %cst_25 = arith.constant dense<0.000000e+00> : vector<2x16x8xf32>
    %66 = tpu.matmul %65, %53, %cst_25 {dimension_numbers = #tpu.dot_dimension_numbers<[2], [1], [1], [2], [0, 0, 0, 1, 1, 2], [0], [0]>} : vector<2x16x16xf32>, vector<2x16x8xf32>, vector<2x16x8xf32> -> vector<2x16x8xf32>
    %67 = vector.extract_strided_slice %47 {offsets = [0, 8], sizes = [32, 8], strides = [1, 1]} : vector<32x96xf32> to vector<32x8xf32>
    %68 = vector.shape_cast %67 : vector<32x8xf32> to vector<2x16x8xf32>
    %69 = vector.extract_strided_slice %47 {offsets = [0, 40], sizes = [32, 8], strides = [1, 1]} : vector<32x96xf32> to vector<32x8xf32>
    %70 = vector.shape_cast %69 : vector<32x8xf32> to vector<2x16x8xf32>
    %71 = vector.extract_strided_slice %47 {offsets = [0, 72], sizes = [32, 8], strides = [1, 1]} : vector<32x96xf32> to vector<32x8xf32>
    %72 = vector.shape_cast %71 : vector<32x8xf32> to vector<2x16x8xf32>
    %cst_26 = arith.constant dense<0.000000e+00> : vector<2x16x16xf32>
    %73 = tpu.matmul %68, %70, %cst_26 {dimension_numbers = #tpu.dot_dimension_numbers<[2], [2], [1], [1], [0, 0, 0, 1, 1, 1], [0], [0]>} : vector<2x16x8xf32>, vector<2x16x8xf32>, vector<2x16x16xf32> -> vector<2x16x16xf32>
    %74 = arith.addf %73, %5 : vector<2x16x16xf32>
    %cst_27 = arith.constant dense<0xFF800000> : vector<2x16xf32>
    %75 = vector.multi_reduction <maximumf>, %74, %cst_27 [2] : vector<2x16x16xf32> to vector<2x16xf32>
    %76 = vector.shape_cast %75 : vector<2x16xf32> to vector<2x16x1xf32>
    %77 = vector.broadcast %76 : vector<2x16x1xf32> to vector<2x16x16xf32>
    %78 = arith.subf %74, %77 : vector<2x16x16xf32>
    %79 = math.exp %78 : vector<2x16x16xf32>
    %cst_28 = arith.constant dense<0.000000e+00> : vector<2x16xf32>
    %80 = vector.multi_reduction <add>, %79, %cst_28 [2] : vector<2x16x16xf32> to vector<2x16xf32>
    %81 = vector.shape_cast %80 : vector<2x16xf32> to vector<2x16x1xf32>
    %82 = tpu.reciprocal %81 {approx = true} : vector<2x16x1xf32> -> vector<2x16x1xf32>
    %83 = vector.broadcast %82 : vector<2x16x1xf32> to vector<2x16x16xf32>
    %84 = arith.mulf %79, %83 : vector<2x16x16xf32>
    %cst_29 = arith.constant dense<0.000000e+00> : vector<2x16x8xf32>
    %85 = tpu.matmul %84, %72, %cst_29 {dimension_numbers = #tpu.dot_dimension_numbers<[2], [1], [1], [2], [0, 0, 0, 1, 1, 2], [0], [0]>} : vector<2x16x16xf32>, vector<2x16x8xf32>, vector<2x16x8xf32> -> vector<2x16x8xf32>
    %86 = vector.extract_strided_slice %47 {offsets = [0, 16], sizes = [32, 8], strides = [1, 1]} : vector<32x96xf32> to vector<32x8xf32>
    %87 = vector.shape_cast %86 : vector<32x8xf32> to vector<2x16x8xf32>
    %88 = vector.extract_strided_slice %47 {offsets = [0, 48], sizes = [32, 8], strides = [1, 1]} : vector<32x96xf32> to vector<32x8xf32>
    %89 = vector.shape_cast %88 : vector<32x8xf32> to vector<2x16x8xf32>
    %90 = vector.extract_strided_slice %47 {offsets = [0, 80], sizes = [32, 8], strides = [1, 1]} : vector<32x96xf32> to vector<32x8xf32>
    %91 = vector.shape_cast %90 : vector<32x8xf32> to vector<2x16x8xf32>
    %cst_30 = arith.constant dense<0.000000e+00> : vector<2x16x16xf32>
    %92 = tpu.matmul %87, %89, %cst_30 {dimension_numbers = #tpu.dot_dimension_numbers<[2], [2], [1], [1], [0, 0, 0, 1, 1, 1], [0], [0]>} : vector<2x16x8xf32>, vector<2x16x8xf32>, vector<2x16x16xf32> -> vector<2x16x16xf32>
    %93 = arith.addf %92, %7 : vector<2x16x16xf32>
    %cst_31 = arith.constant dense<0xFF800000> : vector<2x16xf32>
    %94 = vector.multi_reduction <maximumf>, %93, %cst_31 [2] : vector<2x16x16xf32> to vector<2x16xf32>
    %95 = vector.shape_cast %94 : vector<2x16xf32> to vector<2x16x1xf32>
    %96 = vector.broadcast %95 : vector<2x16x1xf32> to vector<2x16x16xf32>
    %97 = arith.subf %93, %96 : vector<2x16x16xf32>
    %98 = math.exp %97 : vector<2x16x16xf32>
    %cst_32 = arith.constant dense<0.000000e+00> : vector<2x16xf32>
    %99 = vector.multi_reduction <add>, %98, %cst_32 [2] : vector<2x16x16xf32> to vector<2x16xf32>
    %100 = vector.shape_cast %99 : vector<2x16xf32> to vector<2x16x1xf32>
    %101 = tpu.reciprocal %100 {approx = true} : vector<2x16x1xf32> -> vector<2x16x1xf32>
    %102 = vector.broadcast %101 : vector<2x16x1xf32> to vector<2x16x16xf32>
    %103 = arith.mulf %98, %102 : vector<2x16x16xf32>
    %cst_33 = arith.constant dense<0.000000e+00> : vector<2x16x8xf32>
    %104 = tpu.matmul %103, %91, %cst_33 {dimension_numbers = #tpu.dot_dimension_numbers<[2], [1], [1], [2], [0, 0, 0, 1, 1, 2], [0], [0]>} : vector<2x16x16xf32>, vector<2x16x8xf32>, vector<2x16x8xf32> -> vector<2x16x8xf32>
    %105 = vector.extract_strided_slice %47 {offsets = [0, 24], sizes = [32, 8], strides = [1, 1]} : vector<32x96xf32> to vector<32x8xf32>
    %106 = vector.shape_cast %105 : vector<32x8xf32> to vector<2x16x8xf32>
    %107 = vector.extract_strided_slice %47 {offsets = [0, 56], sizes = [32, 8], strides = [1, 1]} : vector<32x96xf32> to vector<32x8xf32>
    %108 = vector.shape_cast %107 : vector<32x8xf32> to vector<2x16x8xf32>
    %109 = vector.extract_strided_slice %47 {offsets = [0, 88], sizes = [32, 8], strides = [1, 1]} : vector<32x96xf32> to vector<32x8xf32>
    %110 = vector.shape_cast %109 : vector<32x8xf32> to vector<2x16x8xf32>
    %cst_34 = arith.constant dense<0.000000e+00> : vector<2x16x16xf32>
    %111 = tpu.matmul %106, %108, %cst_34 {dimension_numbers = #tpu.dot_dimension_numbers<[2], [2], [1], [1], [0, 0, 0, 1, 1, 1], [0], [0]>} : vector<2x16x8xf32>, vector<2x16x8xf32>, vector<2x16x16xf32> -> vector<2x16x16xf32>
    %112 = arith.addf %111, %9 : vector<2x16x16xf32>
    %cst_35 = arith.constant dense<0xFF800000> : vector<2x16xf32>
    %113 = vector.multi_reduction <maximumf>, %112, %cst_35 [2] : vector<2x16x16xf32> to vector<2x16xf32>
    %114 = vector.shape_cast %113 : vector<2x16xf32> to vector<2x16x1xf32>
    %115 = vector.broadcast %114 : vector<2x16x1xf32> to vector<2x16x16xf32>
    %116 = arith.subf %112, %115 : vector<2x16x16xf32>
    %117 = math.exp %116 : vector<2x16x16xf32>
    %cst_36 = arith.constant dense<0.000000e+00> : vector<2x16xf32>
    %118 = vector.multi_reduction <add>, %117, %cst_36 [2] : vector<2x16x16xf32> to vector<2x16xf32>
    %119 = vector.shape_cast %118 : vector<2x16xf32> to vector<2x16x1xf32>
    %120 = tpu.reciprocal %119 {approx = true} : vector<2x16x1xf32> -> vector<2x16x1xf32>
    %121 = vector.broadcast %120 : vector<2x16x1xf32> to vector<2x16x16xf32>
    %122 = arith.mulf %117, %121 : vector<2x16x16xf32>
    %cst_37 = arith.constant dense<0.000000e+00> : vector<2x16x8xf32>
    %123 = tpu.matmul %122, %110, %cst_37 {dimension_numbers = #tpu.dot_dimension_numbers<[2], [1], [1], [2], [0, 0, 0, 1, 1, 2], [0], [0]>} : vector<2x16x16xf32>, vector<2x16x8xf32>, vector<2x16x8xf32> -> vector<2x16x8xf32>
    %124 = tpu.concatenate %66, %85, %104, %123 in 2 : vector<2x16x8xf32>, vector<2x16x8xf32>, vector<2x16x8xf32>, vector<2x16x8xf32> -> vector<2x16x32xf32>
    %125 = vector.shape_cast %124 : vector<2x16x32xf32> to vector<32x32xf32>
    %c0_38 = arith.constant 0 : index
    %c0_39 = arith.constant 0 : index
    %c0_40 = arith.constant 0 : index
    %126 = vector.load %arg5[%c0_38, %c0_39, %c0_40] : memref<2x32x32xf32, #tpu.memory_space<vmem>>, vector<1x32x32xf32>
    %127 = vector.shape_cast %126 : vector<1x32x32xf32> to vector<32x32xf32>
    %cst_41 = arith.constant dense<0.000000e+00> : vector<32x32xf32>
    %128 = tpu.matmul %125, %127, %cst_41 {dimension_numbers = #tpu.dot_dimension_numbers<[1], [0], [0], [1], [0, 0, 1, 1], [], []>} : vector<32x32xf32>, vector<32x32xf32>, vector<32x32xf32> -> vector<32x32xf32>
    %129 = vector.broadcast %17 : vector<1x32xf32> to vector<32x32xf32>
    %130 = arith.addf %128, %129 : vector<32x32xf32>
    %131 = arith.addf %0, %130 : vector<32x32xf32>
    %cst_42 = arith.constant dense<0.000000e+00> : vector<32xf32>
    %132 = vector.multi_reduction <add>, %131, %cst_42 [1] : vector<32x32xf32> to vector<32xf32>
    %133 = vector.shape_cast %132 : vector<32xf32> to vector<32x1xf32>
    %cst_43 = arith.constant 3.200000e+01 : f32
    %134 = vector.broadcast %cst_43 : f32 to vector<32x1xf32>
    %135 = arith.divf %133, %134 : vector<32x1xf32>
    %136 = vector.broadcast %135 : vector<32x1xf32> to vector<32x32xf32>
    %137 = arith.subf %131, %136 : vector<32x32xf32>
    %138 = arith.mulf %137, %137 : vector<32x32xf32>
    %cst_44 = arith.constant dense<0.000000e+00> : vector<32xf32>
    %139 = vector.multi_reduction <add>, %138, %cst_44 [1] : vector<32x32xf32> to vector<32xf32>
    %140 = vector.shape_cast %139 : vector<32xf32> to vector<32x1xf32>
    %cst_45 = arith.constant 3.200000e+01 : f32
    %141 = vector.broadcast %cst_45 : f32 to vector<32x1xf32>
    %142 = arith.divf %140, %141 : vector<32x1xf32>
    %cst_46 = arith.constant 9.99999974E-6 : f32
    %143 = vector.broadcast %cst_46 : f32 to vector<32x1xf32>
    %144 = arith.addf %142, %143 : vector<32x1xf32>
    %145 = math.rsqrt %144 : vector<32x1xf32>
    %146 = vector.broadcast %145 : vector<32x1xf32> to vector<32x32xf32>
    %147 = arith.mulf %137, %146 : vector<32x32xf32>
    %148 = vector.broadcast %18 : vector<1x32xf32> to vector<32x32xf32>
    %149 = arith.mulf %147, %148 : vector<32x32xf32>
    %150 = vector.broadcast %19 : vector<1x32xf32> to vector<32x32xf32>
    %151 = arith.addf %149, %150 : vector<32x32xf32>
    %c0_47 = arith.constant 0 : index
    %c0_48 = arith.constant 0 : index
    %c0_49 = arith.constant 0 : index
    %152 = vector.load %arg7[%c0_47, %c0_48, %c0_49] : memref<2x32x64xf32, #tpu.memory_space<vmem>>, vector<1x32x64xf32>
    %153 = vector.shape_cast %152 : vector<1x32x64xf32> to vector<32x64xf32>
    %cst_50 = arith.constant dense<0.000000e+00> : vector<32x64xf32>
    %154 = tpu.matmul %151, %153, %cst_50 {dimension_numbers = #tpu.dot_dimension_numbers<[1], [0], [0], [1], [0, 0, 1, 1], [], []>} : vector<32x32xf32>, vector<32x64xf32>, vector<32x64xf32> -> vector<32x64xf32>
    %c0_51 = arith.constant 0 : index
    %c0_52 = arith.constant 0 : index
    %c0_53 = arith.constant 0 : index
    %155 = vector.load %arg8[%c0_51, %c0_52, %c0_53] : memref<2x1x64xf32, #tpu.memory_space<vmem>>, vector<1x1x64xf32>
    %156 = vector.shape_cast %155 : vector<1x1x64xf32> to vector<1x64xf32>
    %157 = vector.broadcast %156 : vector<1x64xf32> to vector<32x64xf32>
    %158 = arith.addf %154, %157 : vector<32x64xf32>
    %cst_54 = arith.constant 0.000000e+00 : f32
    %159 = vector.broadcast %cst_54 : f32 to vector<32x64xf32>
    %160 = arith.maximumf %158, %159 : vector<32x64xf32>
    %c0_55 = arith.constant 0 : index
    %c0_56 = arith.constant 0 : index
    %c0_57 = arith.constant 0 : index
    %161 = vector.load %arg9[%c0_55, %c0_56, %c0_57] : memref<2x64x32xf32, #tpu.memory_space<vmem>>, vector<1x64x32xf32>
    %162 = vector.shape_cast %161 : vector<1x64x32xf32> to vector<64x32xf32>
    %cst_58 = arith.constant dense<0.000000e+00> : vector<32x32xf32>
    %163 = tpu.matmul %160, %162, %cst_58 {dimension_numbers = #tpu.dot_dimension_numbers<[1], [0], [0], [1], [0, 0, 1, 1], [], []>} : vector<32x64xf32>, vector<64x32xf32>, vector<32x32xf32> -> vector<32x32xf32>
    %164 = vector.broadcast %20 : vector<1x32xf32> to vector<32x32xf32>
    %165 = arith.addf %163, %164 : vector<32x32xf32>
    %166 = arith.addf %131, %165 : vector<32x32xf32>
    %c1 = arith.constant 1 : index
    %c0_59 = arith.constant 0 : index
    %c0_60 = arith.constant 0 : index
    %167 = vector.load %arg10[%c1, %c0_59, %c0_60] : memref<3x32x32xf32, #tpu.memory_space<vmem>>, vector<1x32x32xf32>
    %168 = vector.shape_cast %167 : vector<1x32x32xf32> to vector<32x32xf32>
    %169 = vector.shape_cast %166 : vector<32x32xf32> to vector<1x32x32xf32>
    tpu.vector_store %arg10[%c1, %c0_59, %c0_60], %169 {strides = array<i32>} : memref<3x32x32xf32, #tpu.memory_space<vmem>>, vector<1x32x32xf32>,
    %c1_61 = arith.constant 1 : index
    %c0_62 = arith.constant 0 : index
    %c0_63 = arith.constant 0 : index
    %170 = vector.load %arg6[%c1_61, %c0_62, %c0_63] : memref<2x6x32xf32, #tpu.memory_space<vmem>>, vector<1x6x32xf32>
    %171 = vector.shape_cast %170 : vector<1x6x32xf32> to vector<6x32xf32>
    %172 = vector.extract_strided_slice %171 {offsets = [0, 0], sizes = [1, 32], strides = [1, 1]} : vector<6x32xf32> to vector<1x32xf32>
    %173 = vector.extract_strided_slice %171 {offsets = [1, 0], sizes = [1, 32], strides = [1, 1]} : vector<6x32xf32> to vector<1x32xf32>
    %174 = vector.extract_strided_slice %171 {offsets = [2, 0], sizes = [1, 32], strides = [1, 1]} : vector<6x32xf32> to vector<1x32xf32>
    %175 = vector.extract_strided_slice %171 {offsets = [3, 0], sizes = [1, 32], strides = [1, 1]} : vector<6x32xf32> to vector<1x32xf32>
    %176 = vector.extract_strided_slice %171 {offsets = [4, 0], sizes = [1, 32], strides = [1, 1]} : vector<6x32xf32> to vector<1x32xf32>
    %177 = vector.extract_strided_slice %171 {offsets = [5, 0], sizes = [1, 32], strides = [1, 1]} : vector<6x32xf32> to vector<1x32xf32>
    %cst_64 = arith.constant dense<0.000000e+00> : vector<32xf32>
    %178 = vector.multi_reduction <add>, %166, %cst_64 [1] : vector<32x32xf32> to vector<32xf32>
    %179 = vector.shape_cast %178 : vector<32xf32> to vector<32x1xf32>
    %cst_65 = arith.constant 3.200000e+01 : f32
    %180 = vector.broadcast %cst_65 : f32 to vector<32x1xf32>
    %181 = arith.divf %179, %180 : vector<32x1xf32>
    %182 = vector.broadcast %181 : vector<32x1xf32> to vector<32x32xf32>
    %183 = arith.subf %166, %182 : vector<32x32xf32>
    %184 = arith.mulf %183, %183 : vector<32x32xf32>
    %cst_66 = arith.constant dense<0.000000e+00> : vector<32xf32>
    %185 = vector.multi_reduction <add>, %184, %cst_66 [1] : vector<32x32xf32> to vector<32xf32>
    %186 = vector.shape_cast %185 : vector<32xf32> to vector<32x1xf32>
    %cst_67 = arith.constant 3.200000e+01 : f32
    %187 = vector.broadcast %cst_67 : f32 to vector<32x1xf32>
    %188 = arith.divf %186, %187 : vector<32x1xf32>
    %cst_68 = arith.constant 9.99999974E-6 : f32
    %189 = vector.broadcast %cst_68 : f32 to vector<32x1xf32>
    %190 = arith.addf %188, %189 : vector<32x1xf32>
    %191 = math.rsqrt %190 : vector<32x1xf32>
    %192 = vector.broadcast %191 : vector<32x1xf32> to vector<32x32xf32>
    %193 = arith.mulf %183, %192 : vector<32x32xf32>
    %194 = vector.broadcast %172 : vector<1x32xf32> to vector<32x32xf32>
    %195 = arith.mulf %193, %194 : vector<32x32xf32>
    %196 = vector.broadcast %173 : vector<1x32xf32> to vector<32x32xf32>
    %197 = arith.addf %195, %196 : vector<32x32xf32>
    %c1_69 = arith.constant 1 : index
    %c0_70 = arith.constant 0 : index
    %c0_71 = arith.constant 0 : index
    %198 = vector.load %arg3[%c1_69, %c0_70, %c0_71] : memref<2x32x96xf32, #tpu.memory_space<vmem>>, vector<1x32x96xf32>
    %199 = vector.shape_cast %198 : vector<1x32x96xf32> to vector<32x96xf32>
    %cst_72 = arith.constant dense<0.000000e+00> : vector<32x96xf32>
    %200 = tpu.matmul %197, %199, %cst_72 {dimension_numbers = #tpu.dot_dimension_numbers<[1], [0], [0], [1], [0, 0, 1, 1], [], []>} : vector<32x32xf32>, vector<32x96xf32>, vector<32x96xf32> -> vector<32x96xf32>
    %c1_73 = arith.constant 1 : index
    %c0_74 = arith.constant 0 : index
    %c0_75 = arith.constant 0 : index
    %201 = vector.load %arg4[%c1_73, %c0_74, %c0_75] : memref<2x1x96xf32, #tpu.memory_space<vmem>>, vector<1x1x96xf32>
    %202 = vector.shape_cast %201 : vector<1x1x96xf32> to vector<1x96xf32>
    %203 = vector.broadcast %202 : vector<1x96xf32> to vector<32x96xf32>
    %204 = arith.addf %200, %203 : vector<32x96xf32>
    %205 = vector.extract_strided_slice %204 {offsets = [0, 0], sizes = [32, 8], strides = [1, 1]} : vector<32x96xf32> to vector<32x8xf32>
    %206 = vector.shape_cast %205 : vector<32x8xf32> to vector<2x16x8xf32>
    %207 = vector.extract_strided_slice %204 {offsets = [0, 32], sizes = [32, 8], strides = [1, 1]} : vector<32x96xf32> to vector<32x8xf32>
    %208 = vector.shape_cast %207 : vector<32x8xf32> to vector<2x16x8xf32>
    %209 = vector.extract_strided_slice %204 {offsets = [0, 64], sizes = [32, 8], strides = [1, 1]} : vector<32x96xf32> to vector<32x8xf32>
    %210 = vector.shape_cast %209 : vector<32x8xf32> to vector<2x16x8xf32>
    %cst_76 = arith.constant dense<0.000000e+00> : vector<2x16x16xf32>
    %211 = tpu.matmul %206, %208, %cst_76 {dimension_numbers = #tpu.dot_dimension_numbers<[2], [2], [1], [1], [0, 0, 0, 1, 1, 1], [0], [0]>} : vector<2x16x8xf32>, vector<2x16x8xf32>, vector<2x16x16xf32> -> vector<2x16x16xf32>
    %212 = arith.addf %211, %3 : vector<2x16x16xf32>
    %cst_77 = arith.constant dense<0xFF800000> : vector<2x16xf32>
    %213 = vector.multi_reduction <maximumf>, %212, %cst_77 [2] : vector<2x16x16xf32> to vector<2x16xf32>
    %214 = vector.shape_cast %213 : vector<2x16xf32> to vector<2x16x1xf32>
    %215 = vector.broadcast %214 : vector<2x16x1xf32> to vector<2x16x16xf32>
    %216 = arith.subf %212, %215 : vector<2x16x16xf32>
    %217 = math.exp %216 : vector<2x16x16xf32>
    %cst_78 = arith.constant dense<0.000000e+00> : vector<2x16xf32>
    %218 = vector.multi_reduction <add>, %217, %cst_78 [2] : vector<2x16x16xf32> to vector<2x16xf32>
    %219 = vector.shape_cast %218 : vector<2x16xf32> to vector<2x16x1xf32>
    %220 = tpu.reciprocal %219 {approx = true} : vector<2x16x1xf32> -> vector<2x16x1xf32>
    %221 = vector.broadcast %220 : vector<2x16x1xf32> to vector<2x16x16xf32>
    %222 = arith.mulf %217, %221 : vector<2x16x16xf32>
    %cst_79 = arith.constant dense<0.000000e+00> : vector<2x16x8xf32>
    %223 = tpu.matmul %222, %210, %cst_79 {dimension_numbers = #tpu.dot_dimension_numbers<[2], [1], [1], [2], [0, 0, 0, 1, 1, 2], [0], [0]>} : vector<2x16x16xf32>, vector<2x16x8xf32>, vector<2x16x8xf32> -> vector<2x16x8xf32>
    %224 = vector.extract_strided_slice %204 {offsets = [0, 8], sizes = [32, 8], strides = [1, 1]} : vector<32x96xf32> to vector<32x8xf32>
    %225 = vector.shape_cast %224 : vector<32x8xf32> to vector<2x16x8xf32>
    %226 = vector.extract_strided_slice %204 {offsets = [0, 40], sizes = [32, 8], strides = [1, 1]} : vector<32x96xf32> to vector<32x8xf32>
    %227 = vector.shape_cast %226 : vector<32x8xf32> to vector<2x16x8xf32>
    %228 = vector.extract_strided_slice %204 {offsets = [0, 72], sizes = [32, 8], strides = [1, 1]} : vector<32x96xf32> to vector<32x8xf32>
    %229 = vector.shape_cast %228 : vector<32x8xf32> to vector<2x16x8xf32>
    %cst_80 = arith.constant dense<0.000000e+00> : vector<2x16x16xf32>
    %230 = tpu.matmul %225, %227, %cst_80 {dimension_numbers = #tpu.dot_dimension_numbers<[2], [2], [1], [1], [0, 0, 0, 1, 1, 1], [0], [0]>} : vector<2x16x8xf32>, vector<2x16x8xf32>, vector<2x16x16xf32> -> vector<2x16x16xf32>
    %231 = arith.addf %230, %5 : vector<2x16x16xf32>
    %cst_81 = arith.constant dense<0xFF800000> : vector<2x16xf32>
    %232 = vector.multi_reduction <maximumf>, %231, %cst_81 [2] : vector<2x16x16xf32> to vector<2x16xf32>
    %233 = vector.shape_cast %232 : vector<2x16xf32> to vector<2x16x1xf32>
    %234 = vector.broadcast %233 : vector<2x16x1xf32> to vector<2x16x16xf32>
    %235 = arith.subf %231, %234 : vector<2x16x16xf32>
    %236 = math.exp %235 : vector<2x16x16xf32>
    %cst_82 = arith.constant dense<0.000000e+00> : vector<2x16xf32>
    %237 = vector.multi_reduction <add>, %236, %cst_82 [2] : vector<2x16x16xf32> to vector<2x16xf32>
    %238 = vector.shape_cast %237 : vector<2x16xf32> to vector<2x16x1xf32>
    %239 = tpu.reciprocal %238 {approx = true} : vector<2x16x1xf32> -> vector<2x16x1xf32>
    %240 = vector.broadcast %239 : vector<2x16x1xf32> to vector<2x16x16xf32>
    %241 = arith.mulf %236, %240 : vector<2x16x16xf32>
    %cst_83 = arith.constant dense<0.000000e+00> : vector<2x16x8xf32>
    %242 = tpu.matmul %241, %229, %cst_83 {dimension_numbers = #tpu.dot_dimension_numbers<[2], [1], [1], [2], [0, 0, 0, 1, 1, 2], [0], [0]>} : vector<2x16x16xf32>, vector<2x16x8xf32>, vector<2x16x8xf32> -> vector<2x16x8xf32>
    %243 = vector.extract_strided_slice %204 {offsets = [0, 16], sizes = [32, 8], strides = [1, 1]} : vector<32x96xf32> to vector<32x8xf32>
    %244 = vector.shape_cast %243 : vector<32x8xf32> to vector<2x16x8xf32>
    %245 = vector.extract_strided_slice %204 {offsets = [0, 48], sizes = [32, 8], strides = [1, 1]} : vector<32x96xf32> to vector<32x8xf32>
    %246 = vector.shape_cast %245 : vector<32x8xf32> to vector<2x16x8xf32>
    %247 = vector.extract_strided_slice %204 {offsets = [0, 80], sizes = [32, 8], strides = [1, 1]} : vector<32x96xf32> to vector<32x8xf32>
    %248 = vector.shape_cast %247 : vector<32x8xf32> to vector<2x16x8xf32>
    %cst_84 = arith.constant dense<0.000000e+00> : vector<2x16x16xf32>
    %249 = tpu.matmul %244, %246, %cst_84 {dimension_numbers = #tpu.dot_dimension_numbers<[2], [2], [1], [1], [0, 0, 0, 1, 1, 1], [0], [0]>} : vector<2x16x8xf32>, vector<2x16x8xf32>, vector<2x16x16xf32> -> vector<2x16x16xf32>
    %250 = arith.addf %249, %7 : vector<2x16x16xf32>
    %cst_85 = arith.constant dense<0xFF800000> : vector<2x16xf32>
    %251 = vector.multi_reduction <maximumf>, %250, %cst_85 [2] : vector<2x16x16xf32> to vector<2x16xf32>
    %252 = vector.shape_cast %251 : vector<2x16xf32> to vector<2x16x1xf32>
    %253 = vector.broadcast %252 : vector<2x16x1xf32> to vector<2x16x16xf32>
    %254 = arith.subf %250, %253 : vector<2x16x16xf32>
    %255 = math.exp %254 : vector<2x16x16xf32>
    %cst_86 = arith.constant dense<0.000000e+00> : vector<2x16xf32>
    %256 = vector.multi_reduction <add>, %255, %cst_86 [2] : vector<2x16x16xf32> to vector<2x16xf32>
    %257 = vector.shape_cast %256 : vector<2x16xf32> to vector<2x16x1xf32>
    %258 = tpu.reciprocal %257 {approx = true} : vector<2x16x1xf32> -> vector<2x16x1xf32>
    %259 = vector.broadcast %258 : vector<2x16x1xf32> to vector<2x16x16xf32>
    %260 = arith.mulf %255, %259 : vector<2x16x16xf32>
    %cst_87 = arith.constant dense<0.000000e+00> : vector<2x16x8xf32>
    %261 = tpu.matmul %260, %248, %cst_87 {dimension_numbers = #tpu.dot_dimension_numbers<[2], [1], [1], [2], [0, 0, 0, 1, 1, 2], [0], [0]>} : vector<2x16x16xf32>, vector<2x16x8xf32>, vector<2x16x8xf32> -> vector<2x16x8xf32>
    %262 = vector.extract_strided_slice %204 {offsets = [0, 24], sizes = [32, 8], strides = [1, 1]} : vector<32x96xf32> to vector<32x8xf32>
    %263 = vector.shape_cast %262 : vector<32x8xf32> to vector<2x16x8xf32>
    %264 = vector.extract_strided_slice %204 {offsets = [0, 56], sizes = [32, 8], strides = [1, 1]} : vector<32x96xf32> to vector<32x8xf32>
    %265 = vector.shape_cast %264 : vector<32x8xf32> to vector<2x16x8xf32>
    %266 = vector.extract_strided_slice %204 {offsets = [0, 88], sizes = [32, 8], strides = [1, 1]} : vector<32x96xf32> to vector<32x8xf32>
    %267 = vector.shape_cast %266 : vector<32x8xf32> to vector<2x16x8xf32>
    %cst_88 = arith.constant dense<0.000000e+00> : vector<2x16x16xf32>
    %268 = tpu.matmul %263, %265, %cst_88 {dimension_numbers = #tpu.dot_dimension_numbers<[2], [2], [1], [1], [0, 0, 0, 1, 1, 1], [0], [0]>} : vector<2x16x8xf32>, vector<2x16x8xf32>, vector<2x16x16xf32> -> vector<2x16x16xf32>
    %269 = arith.addf %268, %9 : vector<2x16x16xf32>
    %cst_89 = arith.constant dense<0xFF800000> : vector<2x16xf32>
    %270 = vector.multi_reduction <maximumf>, %269, %cst_89 [2] : vector<2x16x16xf32> to vector<2x16xf32>
    %271 = vector.shape_cast %270 : vector<2x16xf32> to vector<2x16x1xf32>
    %272 = vector.broadcast %271 : vector<2x16x1xf32> to vector<2x16x16xf32>
    %273 = arith.subf %269, %272 : vector<2x16x16xf32>
    %274 = math.exp %273 : vector<2x16x16xf32>
    %cst_90 = arith.constant dense<0.000000e+00> : vector<2x16xf32>
    %275 = vector.multi_reduction <add>, %274, %cst_90 [2] : vector<2x16x16xf32> to vector<2x16xf32>
    %276 = vector.shape_cast %275 : vector<2x16xf32> to vector<2x16x1xf32>
    %277 = tpu.reciprocal %276 {approx = true} : vector<2x16x1xf32> -> vector<2x16x1xf32>
    %278 = vector.broadcast %277 : vector<2x16x1xf32> to vector<2x16x16xf32>
    %279 = arith.mulf %274, %278 : vector<2x16x16xf32>
    %cst_91 = arith.constant dense<0.000000e+00> : vector<2x16x8xf32>
    %280 = tpu.matmul %279, %267, %cst_91 {dimension_numbers = #tpu.dot_dimension_numbers<[2], [1], [1], [2], [0, 0, 0, 1, 1, 2], [0], [0]>} : vector<2x16x16xf32>, vector<2x16x8xf32>, vector<2x16x8xf32> -> vector<2x16x8xf32>
    %281 = tpu.concatenate %223, %242, %261, %280 in 2 : vector<2x16x8xf32>, vector<2x16x8xf32>, vector<2x16x8xf32>, vector<2x16x8xf32> -> vector<2x16x32xf32>
    %282 = vector.shape_cast %281 : vector<2x16x32xf32> to vector<32x32xf32>
    %c1_92 = arith.constant 1 : index
    %c0_93 = arith.constant 0 : index
    %c0_94 = arith.constant 0 : index
    %283 = vector.load %arg5[%c1_92, %c0_93, %c0_94] : memref<2x32x32xf32, #tpu.memory_space<vmem>>, vector<1x32x32xf32>
    %284 = vector.shape_cast %283 : vector<1x32x32xf32> to vector<32x32xf32>
    %cst_95 = arith.constant dense<0.000000e+00> : vector<32x32xf32>
    %285 = tpu.matmul %282, %284, %cst_95 {dimension_numbers = #tpu.dot_dimension_numbers<[1], [0], [0], [1], [0, 0, 1, 1], [], []>} : vector<32x32xf32>, vector<32x32xf32>, vector<32x32xf32> -> vector<32x32xf32>
    %286 = vector.broadcast %174 : vector<1x32xf32> to vector<32x32xf32>
    %287 = arith.addf %285, %286 : vector<32x32xf32>
    %288 = arith.addf %166, %287 : vector<32x32xf32>
    %cst_96 = arith.constant dense<0.000000e+00> : vector<32xf32>
    %289 = vector.multi_reduction <add>, %288, %cst_96 [1] : vector<32x32xf32> to vector<32xf32>
    %290 = vector.shape_cast %289 : vector<32xf32> to vector<32x1xf32>
    %cst_97 = arith.constant 3.200000e+01 : f32
    %291 = vector.broadcast %cst_97 : f32 to vector<32x1xf32>
    %292 = arith.divf %290, %291 : vector<32x1xf32>
    %293 = vector.broadcast %292 : vector<32x1xf32> to vector<32x32xf32>
    %294 = arith.subf %288, %293 : vector<32x32xf32>
    %295 = arith.mulf %294, %294 : vector<32x32xf32>
    %cst_98 = arith.constant dense<0.000000e+00> : vector<32xf32>
    %296 = vector.multi_reduction <add>, %295, %cst_98 [1] : vector<32x32xf32> to vector<32xf32>
    %297 = vector.shape_cast %296 : vector<32xf32> to vector<32x1xf32>
    %cst_99 = arith.constant 3.200000e+01 : f32
    %298 = vector.broadcast %cst_99 : f32 to vector<32x1xf32>
    %299 = arith.divf %297, %298 : vector<32x1xf32>
    %cst_100 = arith.constant 9.99999974E-6 : f32
    %300 = vector.broadcast %cst_100 : f32 to vector<32x1xf32>
    %301 = arith.addf %299, %300 : vector<32x1xf32>
    %302 = math.rsqrt %301 : vector<32x1xf32>
    %303 = vector.broadcast %302 : vector<32x1xf32> to vector<32x32xf32>
    %304 = arith.mulf %294, %303 : vector<32x32xf32>
    %305 = vector.broadcast %175 : vector<1x32xf32> to vector<32x32xf32>
    %306 = arith.mulf %304, %305 : vector<32x32xf32>
    %307 = vector.broadcast %176 : vector<1x32xf32> to vector<32x32xf32>
    %308 = arith.addf %306, %307 : vector<32x32xf32>
    %c1_101 = arith.constant 1 : index
    %c0_102 = arith.constant 0 : index
    %c0_103 = arith.constant 0 : index
    %309 = vector.load %arg7[%c1_101, %c0_102, %c0_103] : memref<2x32x64xf32, #tpu.memory_space<vmem>>, vector<1x32x64xf32>
    %310 = vector.shape_cast %309 : vector<1x32x64xf32> to vector<32x64xf32>
    %cst_104 = arith.constant dense<0.000000e+00> : vector<32x64xf32>
    %311 = tpu.matmul %308, %310, %cst_104 {dimension_numbers = #tpu.dot_dimension_numbers<[1], [0], [0], [1], [0, 0, 1, 1], [], []>} : vector<32x32xf32>, vector<32x64xf32>, vector<32x64xf32> -> vector<32x64xf32>
    %c1_105 = arith.constant 1 : index
    %c0_106 = arith.constant 0 : index
    %c0_107 = arith.constant 0 : index
    %312 = vector.load %arg8[%c1_105, %c0_106, %c0_107] : memref<2x1x64xf32, #tpu.memory_space<vmem>>, vector<1x1x64xf32>
    %313 = vector.shape_cast %312 : vector<1x1x64xf32> to vector<1x64xf32>
    %314 = vector.broadcast %313 : vector<1x64xf32> to vector<32x64xf32>
    %315 = arith.addf %311, %314 : vector<32x64xf32>
    %cst_108 = arith.constant 0.000000e+00 : f32
    %316 = vector.broadcast %cst_108 : f32 to vector<32x64xf32>
    %317 = arith.maximumf %315, %316 : vector<32x64xf32>
    %c1_109 = arith.constant 1 : index
    %c0_110 = arith.constant 0 : index
    %c0_111 = arith.constant 0 : index
    %318 = vector.load %arg9[%c1_109, %c0_110, %c0_111] : memref<2x64x32xf32, #tpu.memory_space<vmem>>, vector<1x64x32xf32>
    %319 = vector.shape_cast %318 : vector<1x64x32xf32> to vector<64x32xf32>
    %cst_112 = arith.constant dense<0.000000e+00> : vector<32x32xf32>
    %320 = tpu.matmul %317, %319, %cst_112 {dimension_numbers = #tpu.dot_dimension_numbers<[1], [0], [0], [1], [0, 0, 1, 1], [], []>} : vector<32x64xf32>, vector<64x32xf32>, vector<32x32xf32> -> vector<32x32xf32>
    %321 = vector.broadcast %177 : vector<1x32xf32> to vector<32x32xf32>
    %322 = arith.addf %320, %321 : vector<32x32xf32>
    %323 = arith.addf %288, %322 : vector<32x32xf32>
    %c2 = arith.constant 2 : index
    %c0_113 = arith.constant 0 : index
    %c0_114 = arith.constant 0 : index
    %324 = vector.load %arg10[%c2, %c0_113, %c0_114] : memref<3x32x32xf32, #tpu.memory_space<vmem>>, vector<1x32x32xf32>
    %325 = vector.shape_cast %324 : vector<1x32x32xf32> to vector<32x32xf32>
    %326 = vector.shape_cast %323 : vector<32x32xf32> to vector<1x32x32xf32>
    tpu.vector_store %arg10[%c2, %c0_113, %c0_114], %326 {strides = array<i32>} : memref<3x32x32xf32, #tpu.memory_space<vmem>>, vector<1x32x32xf32>,
    return
  }
  func.func @transform_0(%arg0: i32) -> (i32, i32) {
    %c0_i32 = arith.constant 0 : i32
    %c0_i32_0 = arith.constant 0 : i32
    %c0_i32_1 = arith.constant 0 : i32
    return %c0_i32, %c0_i32_0 : i32, i32
  }
  func.func @transform_1(%arg0: i32) -> (i32, i32, i32, i32) {
    %c0_i32 = arith.constant 0 : i32
    %c0_i32_0 = arith.constant 0 : i32
    %c0_i32_1 = arith.constant 0 : i32
    %c0_i32_2 = arith.constant 0 : i32
    %c0_i32_3 = arith.constant 0 : i32
    return %c0_i32, %c0_i32_0, %c0_i32_1, %c0_i32_2 : i32, i32, i32, i32
  }
  func.func @transform_2(%arg0: i32) -> (i32, i32, i32) {
    %c0_i32 = arith.constant 0 : i32
    %c0_i32_0 = arith.constant 0 : i32
    %c0_i32_1 = arith.constant 0 : i32
    %c0_i32_2 = arith.constant 0 : i32
    return %c0_i32, %c0_i32_0, %c0_i32_1 : i32, i32, i32
  }
  func.func @transform_3(%arg0: i32) -> (i32, i32, i32) {
    %c0_i32 = arith.constant 0 : i32
    %c0_i32_0 = arith.constant 0 : i32
    %c0_i32_1 = arith.constant 0 : i32
    %c0_i32_2 = arith.constant 0 : i32
    return %c0_i32, %c0_i32_0, %c0_i32_1 : i32, i32, i32
  }
  func.func @transform_4(%arg0: i32) -> (i32, i32, i32) {
    %c0_i32 = arith.constant 0 : i32
    %c0_i32_0 = arith.constant 0 : i32
    %c0_i32_1 = arith.constant 0 : i32
    %c0_i32_2 = arith.constant 0 : i32
    return %c0_i32, %c0_i32_0, %c0_i32_1 : i32, i32, i32
  }
  func.func @transform_5(%arg0: i32) -> (i32, i32, i32) {
    %c0_i32 = arith.constant 0 : i32
    %c0_i32_0 = arith.constant 0 : i32
    %c0_i32_1 = arith.constant 0 : i32
    %c0_i32_2 = arith.constant 0 : i32
    return %c0_i32, %c0_i32_0, %c0_i32_1 : i32, i32, i32
  }
  func.func @transform_6(%arg0: i32) -> (i32, i32, i32) {
    %c0_i32 = arith.constant 0 : i32
    %c0_i32_0 = arith.constant 0 : i32
    %c0_i32_1 = arith.constant 0 : i32
    %c0_i32_2 = arith.constant 0 : i32
    return %c0_i32, %c0_i32_0, %c0_i32_1 : i32, i32, i32
  }
  func.func @transform_7(%arg0: i32) -> (i32, i32, i32) {
    %c0_i32 = arith.constant 0 : i32
    %c0_i32_0 = arith.constant 0 : i32
    %c0_i32_1 = arith.constant 0 : i32
    %c0_i32_2 = arith.constant 0 : i32
    return %c0_i32, %c0_i32_0, %c0_i32_1 : i32, i32, i32
  }
  func.func @transform_8(%arg0: i32) -> (i32, i32, i32) {
    %c0_i32 = arith.constant 0 : i32
    %c0_i32_0 = arith.constant 0 : i32
    %c0_i32_1 = arith.constant 0 : i32
    %c0_i32_2 = arith.constant 0 : i32
    return %c0_i32, %c0_i32_0, %c0_i32_1 : i32, i32, i32
  }
  func.func @transform_9(%arg0: i32) -> (i32, i32, i32) {
    %c0_i32 = arith.constant 0 : i32
    %c0_i32_0 = arith.constant 0 : i32
    %c0_i32_1 = arith.constant 0 : i32
    %c0_i32_2 = arith.constant 0 : i32
    return %c0_i32, %c0_i32_0, %c0_i32_1 : i32, i32, i32
  }
}

</mosaic_0001>

<llo_original>
// kernel: tpu_custom_call.1
$region0: #{tpu_custom_call.1}
  #allocation0 [shape = 'u32[]', space=smem, size = 0x4, offset = 0x4, fixed_abs, tag = 'smem constant byte address 0x4 - core index']
  #allocation1 [shape = 'u32[144,128]{1,0:T(1,128)}', space=vmem, size = 0x12000, scoped, tag = 'internal scratch']
  %s0 = inlined_call_operand.hbm [shape: f32[32,32], index: 0, kind: input, shape index: {}]
  %s1 = inlined_call_operand.vmem [shape: f32[2,4,16,16], index: 1, kind: input, shape index: {}]
  %s2 = inlined_call_operand.vmem [shape: f32[2,32,96], index: 2, kind: input, shape index: {}]
  %s3 = inlined_call_operand.vmem [shape: f32[2,1,96], index: 3, kind: input, shape index: {}]
  %s4 = inlined_call_operand.hbm [shape: f32[2,32,32], index: 4, kind: input, shape index: {}]
  %s5 = inlined_call_operand.vmem [shape: f32[2,6,32], index: 5, kind: input, shape index: {}]
  %s6 = inlined_call_operand.hbm [shape: f32[2,32,64], index: 6, kind: input, shape index: {}]
  %s7 = inlined_call_operand.vmem [shape: f32[2,1,64], index: 7, kind: input, shape index: {}]
  %s8 = inlined_call_operand.vmem [shape: f32[2,64,32], index: 8, kind: input, shape index: {}]
  %s9 = inlined_call_operand.hbm [shape: f32[3,32,32], index: 9, kind: output, shape index: {}]
  %s10 = sld [smem:[#allocation0]]
  $region58: #{tpu_custom_call.1} parent=0
    _
  %s12 = ssub.s32 1, %s10
  %s13 = scalar_select 0, %s12, %s10
  $region1: #{tpu_custom_call.1} parent=0
    #allocation2 [shape = 'u8[16384]{0}', space=vmem, size = 0x4000, scoped, tag = 'input window, operand 0, single buffered']
    #allocation3 [shape = 's32[1]{0}', space=sflag, size = 0x4, scoped, tag = 'scoped memory for tpu_custom_call.1']
    #allocation4 [shape = 's32[1]{0}', space=sflag, size = 0x4, scoped, tag = 'scoped memory for tpu_custom_call.1']
    #allocation5 [shape = 'u8[32768]{0}', space=vmem, size = 0x8000, scoped, tag = 'input window, operand 4, single buffered']
    #allocation6 [shape = 's32[1]{0}', space=sflag, size = 0x4, scoped, tag = 'scoped memory for tpu_custom_call.1']
    #allocation7 [shape = 'u8[32768]{0}', space=vmem, size = 0x8000, scoped, tag = 'input window, operand 6, single buffered']
    #allocation8 [shape = 'u8[49152]{0}', space=vmem, size = 0xc000, scoped, tag = 'output window, operand 0, single buffered']
    %14 = vsyncpa [#allocation3], 0
    %15 = vsyncpa [#allocation6], 0
    %16 = vsyncpa [#allocation4], 0
    // Predicated region
    $region2: #{tpu_custom_call.1} parent=1 // pred_check
      _
    $region3: #{tpu_custom_call.1} parent=1 // pred_check_branch
      %18 = sbr.rel (0) target = $region5
    $region4: #{tpu_custom_call.1} parent=1 // pred_region
      %s20 = ssub.s32 512, 512
      %21 = vsyncadd [#allocation3], %s20
      %s22 = sshll.u32 [#allocation2], 4
      %s23 = int_to_ptr.vmem [resolvable:$true] %s22
      %28 = dma.hbm_to_vmem [thread:$0]  %s0, 512, %s23, [#allocation3], 128, 128, 8
    $region5: #{tpu_custom_call.1} parent=1 // pred_fallthru
      _
    // Predicated region
    $region6: #{tpu_custom_call.1} parent=1 // pred_check
      _
    $region7: #{tpu_custom_call.1} parent=1 // pred_check_branch
      %30 = sbr.rel (0) target = $region9
    $region8: #{tpu_custom_call.1} parent=1 // pred_region
      _
    $region9: #{tpu_custom_call.1} parent=1 // pred_fallthru
      _
    // Predicated region
    $region10: #{tpu_custom_call.1} parent=1 // pred_check
      _
    $region11: #{tpu_custom_call.1} parent=1 // pred_check_branch
      %32 = sbr.rel (0) target = $region13
    $region12: #{tpu_custom_call.1} parent=1 // pred_region
      _
    $region13: #{tpu_custom_call.1} parent=1 // pred_fallthru
      _
    // Predicated region
    $region14: #{tpu_custom_call.1} parent=1 // pred_check
      _
    $region15: #{tpu_custom_call.1} parent=1 // pred_check_branch
      %34 = sbr.rel (0) target = $region17
    $region16: #{tpu_custom_call.1} parent=1 // pred_region
      _
    $region17: #{tpu_custom_call.1} parent=1 // pred_fallthru
      _
    // Predicated region
    $region18: #{tpu_custom_call.1} parent=1 // pred_check
      _
    $region19: #{tpu_custom_call.1} parent=1 // pred_check_branch
      %36 = sbr.rel (0) target = $region21
    $region20: #{tpu_custom_call.1} parent=1 // pred_region
      %s38 = ssub.s32 1024, 1024
      %39 = vsyncadd [#allocation6], %s38
      %s40 = sshll.u32 [#allocation5], 4
      %s41 = int_to_ptr.vmem [resolvable:$true] %s40
      %46 = dma.hbm_to_vmem [thread:$0]  %s4, 1024, %s41, [#allocation6], 128, 128, 8
    $region21: #{tpu_custom_call.1} parent=1 // pred_fallthru
      _
    // Predicated region
    $region22: #{tpu_custom_call.1} parent=1 // pred_check
      _
    $region23: #{tpu_custom_call.1} parent=1 // pred_check_branch
      %48 = sbr.rel (0) target = $region25
    $region24: #{tpu_custom_call.1} parent=1 // pred_region
      _
    $region25: #{tpu_custom_call.1} parent=1 // pred_fallthru
      _
    // Predicated region
    $region26: #{tpu_custom_call.1} parent=1 // pred_check
      _
    $region27: #{tpu_custom_call.1} parent=1 // pred_check_branch
      %50 = sbr.rel (0) target = $region29
    $region28: #{tpu_custom_call.1} parent=1 // pred_region
      %s52 = ssub.s32 1024, 1024
      %53 = vsyncadd [#allocation6], %s52
      %s54 = sshll.u32 [#allocation7], 4
      %s55 = int_to_ptr.vmem [resolvable:$true] %s54
      %60 = dma.hbm_to_vmem [thread:$0]  %s6, 1024, %s55, [#allocation6], 128, 128, 8
    $region29: #{tpu_custom_call.1} parent=1 // pred_fallthru
      _
    // Predicated region
    $region30: #{tpu_custom_call.1} parent=1 // pred_check
      _
    $region31: #{tpu_custom_call.1} parent=1 // pred_check_branch
      %62 = sbr.rel (0) target = $region33
    $region32: #{tpu_custom_call.1} parent=1 // pred_region
      _
    $region33: #{tpu_custom_call.1} parent=1 // pred_fallthru
      _
    // Predicated region
    $region34: #{tpu_custom_call.1} parent=1 // pred_check
      _
    $region35: #{tpu_custom_call.1} parent=1 // pred_check_branch
      %64 = sbr.rel (0) target = $region37
    $region36: #{tpu_custom_call.1} parent=1 // pred_region
      _
    $region37: #{tpu_custom_call.1} parent=1 // pred_fallthru
      _
    // Predicated region
    $region38: #{tpu_custom_call.1} parent=1 // pred_check
      _
    $region39: #{tpu_custom_call.1} parent=1 // pred_check_branch
      %66 = sbr.rel (0) target = $region41
    $region40: #{tpu_custom_call.1} parent=1 // pred_region
      %67 = dma.done [#allocation3], 512
    $region41: #{tpu_custom_call.1} parent=1 // pred_fallthru
      _
    // Predicated region
    $region42: #{tpu_custom_call.1} parent=1 // pred_check
      _
    $region43: #{tpu_custom_call.1} parent=1 // pred_check_branch
      %69 = sbr.rel (0) target = $region45
    $region44: #{tpu_custom_call.1} parent=1 // pred_region
      %70 = dma.done [#allocation6], 1024
    $region45: #{tpu_custom_call.1} parent=1 // pred_fallthru
      _
    // Predicated region
    $region46: #{tpu_custom_call.1} parent=1 // pred_check
      _
    $region47: #{tpu_custom_call.1} parent=1 // pred_check_branch
      %72 = sbr.rel (0) target = $region49
    $region48: #{tpu_custom_call.1} parent=1 // pred_region
      %73 = dma.done [#allocation6], 1024
    $region49: #{tpu_custom_call.1} parent=1 // pred_fallthru
      _
    %v74 = vld [vmem:[#allocation2] sm:$0xff]
    %v75 = vld [vmem:[#allocation2 + $0x8] sm:$0xff]
    %v76 = vld [vmem:[#allocation2 + $0x10] sm:$0xff]
    %v77 = vld [vmem:[#allocation2 + $0x18] sm:$0xff]
    %v78 = vld [vmem:[%s1] sm:$0xff]
    %v79 = vld [vmem:[%s1 + $0x8] sm:$0xff]
    %v80 = vld [vmem:[%s1 + $0x10] sm:$0xff]
    %v81 = vld [vmem:[%s1 + $0x18] sm:$0xff]
    %v82 = vld [vmem:[%s1 + $0x20] sm:$0xff]
    %v83 = vld [vmem:[%s1 + $0x28] sm:$0xff]
    %v84 = vld [vmem:[%s1 + $0x30] sm:$0xff]
    %v85 = vld [vmem:[%s1 + $0x38] sm:$0xff]
    %v86 = vld [vmem:[%s1 + $0x40] sm:$0xff]
    %v87 = vld [vmem:[%s1 + $0x48] sm:$0xff]
    %v88 = vld [vmem:[%s1 + $0x50] sm:$0xff]
    %v89 = vld [vmem:[%s1 + $0x58] sm:$0xff]
    %v90 = vld [vmem:[%s1 + $0x60] sm:$0xff]
    %v91 = vld [vmem:[%s1 + $0x68] sm:$0xff]
    %v92 = vld [vmem:[%s1 + $0x70] sm:$0xff]
    %v93 = vld [vmem:[%s1 + $0x78] sm:$0xff]
    %vm94 = vcmask 261120
    %95 = vst.msk [vmem:[#allocation8] sm:$0xff] %vm94, %v74
    %96 = vst.msk [vmem:[#allocation8 + $0x8] sm:$0xff] %vm94, %v75
    %97 = vst.msk [vmem:[#allocation8 + $0x10] sm:$0xff] %vm94, %v76
    %98 = vst.msk [vmem:[#allocation8 + $0x18] sm:$0xff] %vm94, %v77
    %v99 = vld [vmem:[%s5] sm:$0x3f]
    %v100 = vsel %vm94, %v74, 0.0
    %101 = vadd.xlane.f32.xlu0 %v100
    %v102 = vpop.xlane.xlu0 %101
    %v103 = vsel %vm94, %v75, 0.0
    %104 = vadd.xlane.f32.xlu0 %v103
    %v105 = vpop.xlane.xlu0 %104
    %v106 = vsel %vm94, %v76, 0.0
    %107 = vadd.xlane.f32.xlu0 %v106
    %v108 = vpop.xlane.xlu0 %107
    %v109 = vsel %vm94, %v77, 0.0
    %110 = vadd.xlane.f32.xlu0 %v109
    %v111 = vpop.xlane.xlu0 %110
    %v112 = vrcp.pop 32.0
    %v113 = vmul.f32 %v102, %v112
    %v114 = vmul.f32 %v105, %v112
    %v115 = vmul.f32 %v108, %v112
    %v116 = vmul.f32 %v111, %v112
    %v117 = vsub.f32 %v74, %v113
    %v118 = vsub.f32 %v75, %v114
    %v119 = vsub.f32 %v76, %v115
    %v120 = vsub.f32 %v77, %v116
    %v121 = vmul.f32 %v117, %v117
    %v122 = vmul.f32 %v118, %v118
    %v123 = vmul.f32 %v119, %v119
    %v124 = vmul.f32 %v120, %v120
    %v125 = vsel %vm94, %v121, 0.0
    %126 = vadd.xlane.f32.xlu0 %v125
    %v127 = vpop.xlane.xlu0 %126
    %v128 = vsel %vm94, %v122, 0.0
    %129 = vadd.xlane.f32.xlu0 %v128
    %v130 = vpop.xlane.xlu0 %129
    %v131 = vsel %vm94, %v123, 0.0
    %132 = vadd.xlane.f32.xlu0 %v131
    %v133 = vpop.xlane.xlu0 %132
    %v134 = vsel %vm94, %v124, 0.0
    %135 = vadd.xlane.f32.xlu0 %v134
    %v136 = vpop.xlane.xlu0 %135
    %v137 = vmul.f32 %v127, %v112
    %v138 = vmul.f32 %v130, %v112
    %v139 = vmul.f32 %v133, %v112
    %v140 = vmul.f32 %v136, %v112
    %v141 = vadd.f32 %v137, 1e-05
    %v142 = vadd.f32 %v138, 1e-05
    %v143 = vadd.f32 %v139, 1e-05
    %v144 = vadd.f32 %v140, 1e-05
    %v145 = vrsqrt.pop %v141
    %v146 = vrsqrt.pop %v142
    %v147 = vrsqrt.pop %v143
    %v148 = vrsqrt.pop %v144
    %v149 = vmul.f32 %v117, %v145
    %v150 = vmul.f32 %v118, %v146
    %v151 = vmul.f32 %v119, %v147
    %v152 = vmul.f32 %v120, %v148
    %v153 = vlaneseq
    %v154 = vshrl.u32 %v153, 7
    %v155 = vsub.s32 0, %v154
    %v156 = vrot.slane %v99, %v155
    %v157 = vmul.f32 %v149, %v156
    %v158 = vmul.f32 %v150, %v156
    %v159 = vmul.f32 %v151, %v156
    %v160 = vmul.f32 %v152, %v156
    %v161 = vlaneseq
    %v162 = vshrl.u32 %v161, 7
    %v163 = vsub.s32 1, %v162
    %v164 = vrot.slane %v99, %v163
    %v165 = vadd.f32 %v157, %v164
    %v166 = vadd.f32 %v158, %v164
    %v167 = vadd.f32 %v159, %v164
    %v168 = vadd.f32 %v160, %v164
    %v169 = vld [vmem:[%s2] sm:$0xff]
    %v170 = vld [vmem:[%s2 + $0x8] sm:$0xff]
    %v171 = vld [vmem:[%s2 + $0x10] sm:$0xff]
    %v172 = vld [vmem:[%s2 + $0x18] sm:$0xff]
    %v173 = vld [vmem:[%s3] sm:$0x1]
    %v175 = vlaneseq
    %v176 = vshrl.u32 %v175, 7
    %v177 = vsub.s32 0, %v176
    %v178 = vrot.slane %v173, %v177
    %v181 = vsel %vm94, %v165, 0
    %v184 = vsel %vm94, %v166, 0
    %v187 = vsel %vm94, %v167, 0
    %v190 = vsel %vm94, %v168, 0
    %192 = vmatprep.subr.mxu0 0.0
    %193 = vmatpush1.msra.mxu0 0.0
    %194 = vmatprep.subr.mxu0 0.0
    %195 = vmatpush1.msra.mxu0 0.0
    %196 = vmatprep.subr.mxu0 0.0
    %197 = vmatpush1.msra.mxu0 0.0
    %198 = vmatprep.subr.mxu0 0.0
    %199 = vmatpush1.msra.mxu0 0.0
    %200 = vmatprep.subr.mxu0 0.0
    %201 = vmatpush1.msra.mxu0 0.0
    %202 = vmatprep.subr.mxu0 0.0
    %203 = vmatpush1.msra.mxu0 0.0
    %204 = vmatprep.subr.mxu0 0.0
    %205 = vmatpush1.msra.mxu0 0.0
    %206 = vmatprep.subr.mxu0 0.0
    %207 = vmatpush1.msra.mxu0 0.0
    %208 = vmatprep.subr.mxu0 0.0
    %209 = vmatpush1.msra.mxu0 0.0
    %210 = vmatprep.subr.mxu0 0.0
    %211 = vmatpush1.msra.mxu0 0.0
    %212 = vmatprep.subr.mxu0 0.0
    %213 = vmatpush1.msra.mxu0 0.0
    %214 = vmatprep.subr.mxu0 0.0
    %215 = vmatpush1.msra.mxu0 0.0
    %216 = vmatprep.subr.mxu0 0.0
    %217 = vmatpush1.msra.mxu0 %v172
    %218 = vmatprep.subr.mxu0 0.0
    %219 = vmatpush1.msra.mxu0 %v171
    %220 = vmatprep.subr.mxu0 0.0
    %221 = vmatpush1.msra.mxu0 %v170
    %222 = vmatprep.subr.mxu0 0.0
    %223 = vmatpush1.msra.mxu0 %v169
    %224 = vmatprep.subr.mxu0 0.0
    %225 = vmatpush2.msra.mxu0 0.0
    %226 = vmatprep.subr.mxu0 0.0
    %227 = vmatpush2.msra.mxu0 0.0
    %228 = vmatprep.subr.mxu0 0.0
    %229 = vmatpush2.msra.mxu0 0.0
    %230 = vmatprep.subr.mxu0 0.0
    %231 = vmatpush2.msra.mxu0 0.0
    %232 = vmatprep.subr.mxu0 0.0
    %233 = vmatpush2.msra.mxu0 0.0
    %234 = vmatprep.subr.mxu0 0.0
    %235 = vmatpush2.msra.mxu0 0.0
    %236 = vmatprep.subr.mxu0 0.0
    %237 = vmatpush2.msra.mxu0 0.0
    %238 = vmatprep.subr.mxu0 0.0
    %239 = vmatpush2.msra.mxu0 0.0
    %240 = vmatprep.subr.mxu0 0.0
    %241 = vmatpush2.msra.mxu0 0.0
    %242 = vmatprep.subr.mxu0 0.0
    %243 = vmatpush2.msra.mxu0 0.0
    %244 = vmatprep.subr.mxu0 0.0
    %245 = vmatpush2.msra.mxu0 0.0
    %246 = vmatprep.subr.mxu0 0.0
    %247 = vmatpush2.msra.mxu0 0.0
    %248 = vmatprep.subr.mxu0 0.0
    %249 = vmatpush2.msra.mxu0 0.0
    %250 = vmatprep.subr.mxu0 0.0
    %251 = vmatpush2.msra.mxu0 0.0
    %252 = vmatprep.subr.mxu0 0.0
    %253 = vmatpush2.msra.mxu0 0.0
    %254 = vmatprep.subr.mxu0 0.0
    %255 = vmatpush2.msra.mxu0 0.0
    %256 = vmatprep.mubr.f32.mxu0 0.0
    %257 = vmatmul.mubr.f32.gmra.mxu0 %v181
    %v258 = vpop.f32.mrf.mxu0
    %v259 = vadd.f32 %v178, %v258
    %v260 = vpop.f32.mrf.mxu0
    %261 = vmatprep.mubr.f32.mxu0 0.0
    %262 = vmatmul.mubr.f32.gmra.mxu0 %v184
    %v263 = vpop.f32.mrf.mxu0
    %v264 = vadd.f32 %v178, %v263
    %v265 = vpop.f32.mrf.mxu0
    %266 = vmatprep.mubr.f32.mxu0 0.0
    %267 = vmatmul.mubr.f32.gmra.mxu0 %v187
    %v268 = vpop.f32.mrf.mxu0
    %v269 = vadd.f32 %v178, %v268
    %v270 = vpop.f32.mrf.mxu0
    %271 = vmatprep.mubr.f32.mxu0 0.0
    %272 = vmatmul.mubr.f32.gmra.mxu0 %v190
    %v273 = vpop.f32.mrf.mxu0
    %v274 = vadd.f32 %v178, %v273
    %v275 = vpop.f32.mrf.mxu0
    %276 = vdwg.mxu0
    %279 = vrot.lane.b32.xlu0 %v259, 96
    %v280 = vpop.permute.xlu0 %279
    %281 = vrot.lane.b32.xlu0 %v264, 96
    %v282 = vpop.permute.xlu0 %281
    %vm283 = vcmask 64512
    %v284 = vsel %vm283, %v259, 0
    %v286 = vsel %vm283, %v264, 0
    %v288 = vsel %vm283, %v280, 0
    %v290 = vsel %vm283, %v282, 0
    %292 = vmatprep.subr.mxu0 0.0
    %293 = vmatpush1.xpose.msra.mxu0 0.0
    %294 = vmatprep.subr.mxu0 0.0
    %295 = vmatpush1.xpose.msra.mxu0 0.0
    %296 = vmatprep.subr.mxu0 0.0
    %297 = vmatpush1.xpose.msra.mxu0 0.0
    %298 = vmatprep.subr.mxu0 0.0
    %299 = vmatpush1.xpose.msra.mxu0 0.0
    %300 = vmatprep.subr.mxu0 0.0
    %301 = vmatpush1.xpose.msra.mxu0 0.0
    %302 = vmatprep.subr.mxu0 0.0
    %303 = vmatpush1.xpose.msra.mxu0 0.0
    %304 = vmatprep.subr.mxu0 0.0
    %305 = vmatpush1.xpose.msra.mxu0 0.0
    %306 = vmatprep.subr.mxu0 0.0
    %307 = vmatpush1.xpose.msra.mxu0 0.0
    %308 = vmatprep.subr.mxu0 0.0
    %309 = vmatpush1.xpose.msra.mxu0 0.0
    %310 = vmatprep.subr.mxu0 0.0
    %311 = vmatpush1.xpose.msra.mxu0 0.0
    %312 = vmatprep.subr.mxu0 0.0
    %313 = vmatpush1.xpose.msra.mxu0 0.0
    %314 = vmatprep.subr.mxu0 0.0
    %315 = vmatpush1.xpose.msra.mxu0 0.0
    %316 = vmatprep.subr.mxu0 0.0
    %317 = vmatpush1.xpose.msra.mxu0 0.0
    %318 = vmatprep.subr.mxu0 0.0
    %319 = vmatpush1.xpose.msra.mxu0 0.0
    %320 = vmatprep.subr.mxu0 0.0
    %321 = vmatpush1.xpose.msra.mxu0 %v290
    %322 = vmatprep.subr.mxu0 0.0
    %323 = vmatpush1.xpose.msra.mxu0 %v288
    %324 = vmatprep.subr.mxu0 0.0
    %325 = vmatpush2.xpose.msra.mxu0 0.0
    %326 = vmatprep.subr.mxu0 0.0
    %327 = vmatpush2.xpose.msra.mxu0 0.0
    %328 = vmatprep.subr.mxu0 0.0
    %329 = vmatpush2.xpose.msra.mxu0 0.0
    %330 = vmatprep.subr.mxu0 0.0
    %331 = vmatpush2.xpose.msra.mxu0 0.0
    %332 = vmatprep.subr.mxu0 0.0
    %333 = vmatpush2.xpose.msra.mxu0 0.0
    %334 = vmatprep.subr.mxu0 0.0
    %335 = vmatpush2.xpose.msra.mxu0 0.0
    %336 = vmatprep.subr.mxu0 0.0
    %337 = vmatpush2.xpose.msra.mxu0 0.0
    %338 = vmatprep.subr.mxu0 0.0
    %339 = vmatpush2.xpose.msra.mxu0 0.0
    %340 = vmatprep.subr.mxu0 0.0
    %341 = vmatpush2.xpose.msra.mxu0 0.0
    %342 = vmatprep.subr.mxu0 0.0
    %343 = vmatpush2.xpose.msra.mxu0 0.0
    %344 = vmatprep.subr.mxu0 0.0
    %345 = vmatpush2.xpose.msra.mxu0 0.0
    %346 = vmatprep.subr.mxu0 0.0
    %347 = vmatpush2.xpose.msra.mxu0 0.0
    %348 = vmatprep.subr.mxu0 0.0
    %349 = vmatpush2.xpose.msra.mxu0 0.0
    %350 = vmatprep.subr.mxu0 0.0
    %351 = vmatpush2.xpose.msra.mxu0 0.0
    %352 = vmatprep.subr.mxu0 0.0
    %353 = vmatpush2.xpose.msra.mxu0 0.0
    %354 = vmatprep.subr.mxu0 0.0
    %355 = vmatpush2.xpose.msra.mxu0 0.0
    %356 = vmatprep.mubr.f32.mxu0 0.0
    %357 = vmatmul.mubr.f32.gmra.mxu0 %v284
    %v358 = vpop.f32.mrf.mxu0
    %v359 = vadd.f32 %v78, %v358
    %v360 = vpop.f32.mrf.mxu0
    %361 = vmatprep.mubr.f32.mxu0 0.0
    %362 = vmatmul.mubr.f32.gmra.mxu0 %v286
    %v363 = vpop.f32.mrf.mxu0
    %v364 = vadd.f32 %v79, %v363
    %v365 = vpop.f32.mrf.mxu0
    %366 = vdwg.mxu0
    %369 = vrot.lane.b32.xlu0 %v269, 96
    %v370 = vpop.permute.xlu0 %369
    %371 = vrot.lane.b32.xlu0 %v274, 96
    %v372 = vpop.permute.xlu0 %371
    %v373 = vsel %vm283, %v269, 0
    %v375 = vsel %vm283, %v274, 0
    %v377 = vsel %vm283, %v370, 0
    %v379 = vsel %vm283, %v372, 0
    %381 = vmatprep.subr.mxu0 0.0
    %382 = vmatpush1.xpose.msra.mxu0 0.0
    %383 = vmatprep.subr.mxu0 0.0
    %384 = vmatpush1.xpose.msra.mxu0 0.0
    %385 = vmatprep.subr.mxu0 0.0
    %386 = vmatpush1.xpose.msra.mxu0 0.0
    %387 = vmatprep.subr.mxu0 0.0
    %388 = vmatpush1.xpose.msra.mxu0 0.0
    %389 = vmatprep.subr.mxu0 0.0
    %390 = vmatpush1.xpose.msra.mxu0 0.0
    %391 = vmatprep.subr.mxu0 0.0
    %392 = vmatpush1.xpose.msra.mxu0 0.0
    %393 = vmatprep.subr.mxu0 0.0
    %394 = vmatpush1.xpose.msra.mxu0 0.0
    %395 = vmatprep.subr.mxu0 0.0
    %396 = vmatpush1.xpose.msra.mxu0 0.0
    %397 = vmatprep.subr.mxu0 0.0
    %398 = vmatpush1.xpose.msra.mxu0 0.0
    %399 = vmatprep.subr.mxu0 0.0
    %400 = vmatpush1.xpose.msra.mxu0 0.0
    %401 = vmatprep.subr.mxu0 0.0
    %402 = vmatpush1.xpose.msra.mxu0 0.0
    %403 = vmatprep.subr.mxu0 0.0
    %404 = vmatpush1.xpose.msra.mxu0 0.0
    %405 = vmatprep.subr.mxu0 0.0
    %406 = vmatpush1.xpose.msra.mxu0 0.0
    %407 = vmatprep.subr.mxu0 0.0
    %408 = vmatpush1.xpose.msra.mxu0 0.0
    %409 = vmatprep.subr.mxu0 0.0
    %410 = vmatpush1.xpose.msra.mxu0 %v379
    %411 = vmatprep.subr.mxu0 0.0
    %412 = vmatpush1.xpose.msra.mxu0 %v377
    %413 = vmatprep.subr.mxu0 0.0
    %414 = vmatpush2.xpose.msra.mxu0 0.0
    %415 = vmatprep.subr.mxu0 0.0
    %416 = vmatpush2.xpose.msra.mxu0 0.0
    %417 = vmatprep.subr.mxu0 0.0
    %418 = vmatpush2.xpose.msra.mxu0 0.0
    %419 = vmatprep.subr.mxu0 0.0
    %420 = vmatpush2.xpose.msra.mxu0 0.0
    %421 = vmatprep.subr.mxu0 0.0
    %422 = vmatpush2.xpose.msra.mxu0 0.0
    %423 = vmatprep.subr.mxu0 0.0
    %424 = vmatpush2.xpose.msra.mxu0 0.0
    %425 = vmatprep.subr.mxu0 0.0
    %426 = vmatpush2.xpose.msra.mxu0 0.0
    %427 = vmatprep.subr.mxu0 0.0
    %428 = vmatpush2.xpose.msra.mxu0 0.0
    %429 = vmatprep.subr.mxu0 0.0
    %430 = vmatpush2.xpose.msra.mxu0 0.0
    %431 = vmatprep.subr.mxu0 0.0
    %432 = vmatpush2.xpose.msra.mxu0 0.0
    %433 = vmatprep.subr.mxu0 0.0
    %434 = vmatpush2.xpose.msra.mxu0 0.0
    %435 = vmatprep.subr.mxu0 0.0
    %436 = vmatpush2.xpose.msra.mxu0 0.0
    %437 = vmatprep.subr.mxu0 0.0
    %438 = vmatpush2.xpose.msra.mxu0 0.0
    %439 = vmatprep.subr.mxu0 0.0
    %440 = vmatpush2.xpose.msra.mxu0 0.0
    %441 = vmatprep.subr.mxu0 0.0
    %442 = vmatpush2.xpose.msra.mxu0 0.0
    %443 = vmatprep.subr.mxu0 0.0
    %444 = vmatpush2.xpose.msra.mxu0 0.0
    %445 = vmatprep.mubr.f32.mxu0 0.0
    %446 = vmatmul.mubr.f32.gmra.mxu0 %v373
    %v447 = vpop.f32.mrf.mxu0
    %v448 = vadd.f32 %v86, %v447
    %v449 = vpop.f32.mrf.mxu0
    %450 = vmatprep.mubr.f32.mxu0 0.0
    %451 = vmatmul.mubr.f32.gmra.mxu0 %v375
    %v452 = vpop.f32.mrf.mxu0
    %v453 = vadd.f32 %v87, %v452
    %v454 = vpop.f32.mrf.mxu0
    %455 = vdwg.mxu0
    %vm456 = vcmask 130048
    %v457 = vsel %vm456, %v359, -inf
    %458 = vmax.xlane.f32.xlu0 %v457
    %v459 = vpop.xlane.xlu0 %458
    %v460 = vsel %vm456, %v364, -inf
    %461 = vmax.xlane.f32.xlu0 %v460
    %v462 = vpop.xlane.xlu0 %461
    %v463 = vsel %vm456, %v448, -inf
    %464 = vmax.xlane.f32.xlu0 %v463
    %v465 = vpop.xlane.xlu0 %464
    %v466 = vsel %vm456, %v453, -inf
    %467 = vmax.xlane.f32.xlu0 %v466
    %v468 = vpop.xlane.xlu0 %467
    %v469 = vsub.f32 %v359, %v459
    %v470 = vsub.f32 %v364, %v462
    %v471 = vsub.f32 %v448, %v465
    %v472 = vsub.f32 %v453, %v468
    %v473 = vmul.f32 %v469, 1.442695
    %v474 = vpow.pop %v473
    %v475 = vmul.f32 %v470, 1.442695
    %v476 = vpow.pop %v475
    %v477 = vmul.f32 %v471, 1.442695
    %v478 = vpow.pop %v477
    %v479 = vmul.f32 %v472, 1.442695
    %v480 = vpow.pop %v479
    %v481 = vsel %vm456, %v474, 0.0
    %482 = vadd.xlane.f32.xlu0 %v481
    %v483 = vpop.xlane.xlu0 %482
    %v484 = vsel %vm456, %v476, 0.0
    %485 = vadd.xlane.f32.xlu0 %v484
    %v486 = vpop.xlane.xlu0 %485
    %v487 = vsel %vm456, %v478, 0.0
    %488 = vadd.xlane.f32.xlu0 %v487
    %v489 = vpop.xlane.xlu0 %488
    %v490 = vsel %vm456, %v480, 0.0
    %491 = vadd.xlane.f32.xlu0 %v490
    %v492 = vpop.xlane.xlu0 %491
    %v493 = vrcp.pop %v483
    %v494 = vrcp.pop %v486
    %v495 = vrcp.pop %v489
    %v496 = vrcp.pop %v492
    %v497 = vmul.f32 %v474, %v493
    %v498 = vmul.f32 %v476, %v494
    %v499 = vmul.f32 %v478, %v495
    %v500 = vmul.f32 %v480, %v496
    %501 = vrot.lane.b32.xlu0 %v259, 64
    %v502 = vpop.permute.xlu0 %501
    %503 = vrot.lane.b32.xlu0 %v264, 64
    %v504 = vpop.permute.xlu0 %503
    %v508 = vsel %vm456, %v497, 0
    %v511 = vsel %vm456, %v498, 0
    %513 = vmatprep.subr.mxu0 0.0
    %514 = vmatpush1.msra.mxu0 0.0
    %515 = vmatprep.subr.mxu0 0.0
    %516 = vmatpush1.msra.mxu0 0.0
    %517 = vmatprep.subr.mxu0 0.0
    %518 = vmatpush1.msra.mxu0 0.0
    %519 = vmatprep.subr.mxu0 0.0
    %520 = vmatpush1.msra.mxu0 0.0
    %521 = vmatprep.subr.mxu0 0.0
    %522 = vmatpush1.msra.mxu0 0.0
    %523 = vmatprep.subr.mxu0 0.0
    %524 = vmatpush1.msra.mxu0 0.0
    %525 = vmatprep.subr.mxu0 0.0
    %526 = vmatpush1.msra.mxu0 0.0
    %527 = vmatprep.subr.mxu0 0.0
    %528 = vmatpush1.msra.mxu0 0.0
    %529 = vmatprep.subr.mxu0 0.0
    %530 = vmatpush1.msra.mxu0 0.0
    %531 = vmatprep.subr.mxu0 0.0
    %532 = vmatpush1.msra.mxu0 0.0
    %533 = vmatprep.subr.mxu0 0.0
    %534 = vmatpush1.msra.mxu0 0.0
    %535 = vmatprep.subr.mxu0 0.0
    %536 = vmatpush1.msra.mxu0 0.0
    %537 = vmatprep.subr.mxu0 0.0
    %538 = vmatpush1.msra.mxu0 0.0
    %539 = vmatprep.subr.mxu0 0.0
    %540 = vmatpush1.msra.mxu0 0.0
    %541 = vmatprep.subr.mxu0 0.0
    %542 = vmatpush1.msra.mxu0 %v504
    %543 = vmatprep.subr.mxu0 0.0
    %544 = vmatpush1.msra.mxu0 %v502
    %545 = vmatprep.subr.mxu0 0.0
    %546 = vmatpush2.msra.mxu0 0.0
    %547 = vmatprep.subr.mxu0 0.0
    %548 = vmatpush2.msra.mxu0 0.0
    %549 = vmatprep.subr.mxu0 0.0
    %550 = vmatpush2.msra.mxu0 0.0
    %551 = vmatprep.subr.mxu0 0.0
    %552 = vmatpush2.msra.mxu0 0.0
    %553 = vmatprep.subr.mxu0 0.0
    %554 = vmatpush2.msra.mxu0 0.0
    %555 = vmatprep.subr.mxu0 0.0
    %556 = vmatpush2.msra.mxu0 0.0
    %557 = vmatprep.subr.mxu0 0.0
    %558 = vmatpush2.msra.mxu0 0.0
    %559 = vmatprep.subr.mxu0 0.0
    %560 = vmatpush2.msra.mxu0 0.0
    %561 = vmatprep.subr.mxu0 0.0
    %562 = vmatpush2.msra.mxu0 0.0
    %563 = vmatprep.subr.mxu0 0.0
    %564 = vmatpush2.msra.mxu0 0.0
    %565 = vmatprep.subr.mxu0 0.0
    %566 = vmatpush2.msra.mxu0 0.0
    %567 = vmatprep.subr.mxu0 0.0
    %568 = vmatpush2.msra.mxu0 0.0
    %569 = vmatprep.subr.mxu0 0.0
    %570 = vmatpush2.msra.mxu0 0.0
    %571 = vmatprep.subr.mxu0 0.0
    %572 = vmatpush2.msra.mxu0 0.0
    %573 = vmatprep.subr.mxu0 0.0
    %574 = vmatpush2.msra.mxu0 0.0
    %575 = vmatprep.subr.mxu0 0.0
    %576 = vmatpush2.msra.mxu0 0.0
    %577 = vmatprep.mubr.f32.mxu0 0.0
    %578 = vmatmul.mubr.f32.gmra.mxu0 %v508
    %v579 = vpop.f32.mrf.mxu0
    %v580 = vadd.f32 0.0, %v579
    %v581 = vpop.f32.mrf.mxu0
    %582 = vmatprep.mubr.f32.mxu0 0.0
    %583 = vmatmul.mubr.f32.gmra.mxu0 %v511
    %v584 = vpop.f32.mrf.mxu0
    %v585 = vadd.f32 0.0, %v584
    %v586 = vpop.f32.mrf.mxu0
    %587 = vdwg.mxu0
    %588 = vrot.lane.b32.xlu0 %v269, 64
    %v589 = vpop.permute.xlu0 %588
    %590 = vrot.lane.b32.xlu0 %v274, 64
    %v591 = vpop.permute.xlu0 %590
    %v595 = vsel %vm456, %v499, 0
    %v598 = vsel %vm456, %v500, 0
    %600 = vmatprep.subr.mxu0 0.0
    %601 = vmatpush1.msra.mxu0 0.0
    %602 = vmatprep.subr.mxu0 0.0
    %603 = vmatpush1.msra.mxu0 0.0
    %604 = vmatprep.subr.mxu0 0.0
    %605 = vmatpush1.msra.mxu0 0.0
    %606 = vmatprep.subr.mxu0 0.0
    %607 = vmatpush1.msra.mxu0 0.0
    %608 = vmatprep.subr.mxu0 0.0
    %609 = vmatpush1.msra.mxu0 0.0
    %610 = vmatprep.subr.mxu0 0.0
    %611 = vmatpush1.msra.mxu0 0.0
    %612 = vmatprep.subr.mxu0 0.0
    %613 = vmatpush1.msra.mxu0 0.0
    %614 = vmatprep.subr.mxu0 0.0
    %615 = vmatpush1.msra.mxu0 0.0
    %616 = vmatprep.subr.mxu0 0.0
    %617 = vmatpush1.msra.mxu0 0.0
    %618 = vmatprep.subr.mxu0 0.0
    %619 = vmatpush1.msra.mxu0 0.0
    %620 = vmatprep.subr.mxu0 0.0
    %621 = vmatpush1.msra.mxu0 0.0
    %622 = vmatprep.subr.mxu0 0.0
    %623 = vmatpush1.msra.mxu0 0.0
    %624 = vmatprep.subr.mxu0 0.0
    %625 = vmatpush1.msra.mxu0 0.0
    %626 = vmatprep.subr.mxu0 0.0
    %627 = vmatpush1.msra.mxu0 0.0
    %628 = vmatprep.subr.mxu0 0.0
    %629 = vmatpush1.msra.mxu0 %v591
    %630 = vmatprep.subr.mxu0 0.0
    %631 = vmatpush1.msra.mxu0 %v589
    %632 = vmatprep.subr.mxu0 0.0
    %633 = vmatpush2.msra.mxu0 0.0
    %634 = vmatprep.subr.mxu0 0.0
    %635 = vmatpush2.msra.mxu0 0.0
    %636 = vmatprep.subr.mxu0 0.0
    %637 = vmatpush2.msra.mxu0 0.0
    %638 = vmatprep.subr.mxu0 0.0
    %639 = vmatpush2.msra.mxu0 0.0
    %640 = vmatprep.subr.mxu0 0.0
    %641 = vmatpush2.msra.mxu0 0.0
    %642 = vmatprep.subr.mxu0 0.0
    %643 = vmatpush2.msra.mxu0 0.0
    %644 = vmatprep.subr.mxu0 0.0
    %645 = vmatpush2.msra.mxu0 0.0
    %646 = vmatprep.subr.mxu0 0.0
    %647 = vmatpush2.msra.mxu0 0.0
    %648 = vmatprep.subr.mxu0 0.0
    %649 = vmatpush2.msra.mxu0 0.0
    %650 = vmatprep.subr.mxu0 0.0
    %651 = vmatpush2.msra.mxu0 0.0
    %652 = vmatprep.subr.mxu0 0.0
    %653 = vmatpush2.msra.mxu0 0.0
    %654 = vmatprep.subr.mxu0 0.0
    %655 = vmatpush2.msra.mxu0 0.0
    %656 = vmatprep.subr.mxu0 0.0
    %657 = vmatpush2.msra.mxu0 0.0
    %658 = vmatprep.subr.mxu0 0.0
    %659 = vmatpush2.msra.mxu0 0.0
    %660 = vmatprep.subr.mxu0 0.0
    %661 = vmatpush2.msra.mxu0 0.0
    %662 = vmatprep.subr.mxu0 0.0
    %663 = vmatpush2.msra.mxu0 0.0
    %664 = vmatprep.mubr.f32.mxu0 0.0
    %665 = vmatmul.mubr.f32.gmra.mxu0 %v595
    %v666 = vpop.f32.mrf.mxu0
    %v667 = vadd.f32 0.0, %v666
    %v668 = vpop.f32.mrf.mxu0
    %669 = vmatprep.mubr.f32.mxu0 0.0
    %670 = vmatmul.mubr.f32.gmra.mxu0 %v598
    %v671 = vpop.f32.mrf.mxu0
    %v672 = vadd.f32 0.0, %v671
    %v673 = vpop.f32.mrf.mxu0
    %674 = vdwg.mxu0
    %675 = vrot.lane.b32.xlu0 %v259, 120
    %v676 = vpop.permute.xlu0 %675
    %677 = vrot.lane.b32.xlu0 %v264, 120
    %v678 = vpop.permute.xlu0 %677
    %679 = vrot.lane.b32.xlu0 %v259, 88
    %v680 = vpop.permute.xlu0 %679
    %681 = vrot.lane.b32.xlu0 %v264, 88
    %v682 = vpop.permute.xlu0 %681
    %v683 = vsel %vm283, %v676, 0
    %v685 = vsel %vm283, %v678, 0
    %v687 = vsel %vm283, %v680, 0
    %v689 = vsel %vm283, %v682, 0
    %691 = vmatprep.subr.mxu0 0.0
    %692 = vmatpush1.xpose.msra.mxu0 0.0
    %693 = vmatprep.subr.mxu0 0.0
    %694 = vmatpush1.xpose.msra.mxu0 0.0
    %695 = vmatprep.subr.mxu0 0.0
    %696 = vmatpush1.xpose.msra.mxu0 0.0
    %697 = vmatprep.subr.mxu0 0.0
    %698 = vmatpush1.xpose.msra.mxu0 0.0
    %699 = vmatprep.subr.mxu0 0.0
    %700 = vmatpush1.xpose.msra.mxu0 0.0
    %701 = vmatprep.subr.mxu0 0.0
    %702 = vmatpush1.xpose.msra.mxu0 0.0
    %703 = vmatprep.subr.mxu0 0.0
    %704 = vmatpush1.xpose.msra.mxu0 0.0
    %705 = vmatprep.subr.mxu0 0.0
    %706 = vmatpush1.xpose.msra.mxu0 0.0
    %707 = vmatprep.subr.mxu0 0.0
    %708 = vmatpush1.xpose.msra.mxu0 0.0
    %709 = vmatprep.subr.mxu0 0.0
    %710 = vmatpush1.xpose.msra.mxu0 0.0
    %711 = vmatprep.subr.mxu0 0.0
    %712 = vmatpush1.xpose.msra.mxu0 0.0
    %713 = vmatprep.subr.mxu0 0.0
    %714 = vmatpush1.xpose.msra.mxu0 0.0
    %715 = vmatprep.subr.mxu0 0.0
    %716 = vmatpush1.xpose.msra.mxu0 0.0
    %717 = vmatprep.subr.mxu0 0.0
    %718 = vmatpush1.xpose.msra.mxu0 0.0
    %719 = vmatprep.subr.mxu0 0.0
    %720 = vmatpush1.xpose.msra.mxu0 %v689
    %721 = vmatprep.subr.mxu0 0.0
    %722 = vmatpush1.xpose.msra.mxu0 %v687
    %723 = vmatprep.subr.mxu0 0.0
    %724 = vmatpush2.xpose.msra.mxu0 0.0
    %725 = vmatprep.subr.mxu0 0.0
    %726 = vmatpush2.xpose.msra.mxu0 0.0
    %727 = vmatprep.subr.mxu0 0.0
    %728 = vmatpush2.xpose.msra.mxu0 0.0
    %729 = vmatprep.subr.mxu0 0.0
    %730 = vmatpush2.xpose.msra.mxu0 0.0
    %731 = vmatprep.subr.mxu0 0.0
    %732 = vmatpush2.xpose.msra.mxu0 0.0
    %733 = vmatprep.subr.mxu0 0.0
    %734 = vmatpush2.xpose.msra.mxu0 0.0
    %735 = vmatprep.subr.mxu0 0.0
    %736 = vmatpush2.xpose.msra.mxu0 0.0
    %737 = vmatprep.subr.mxu0 0.0
    %738 = vmatpush2.xpose.msra.mxu0 0.0
    %739 = vmatprep.subr.mxu0 0.0
    %740 = vmatpush2.xpose.msra.mxu0 0.0
    %741 = vmatprep.subr.mxu0 0.0
    %742 = vmatpush2.xpose.msra.mxu0 0.0
    %743 = vmatprep.subr.mxu0 0.0
    %744 = vmatpush2.xpose.msra.mxu0 0.0
    %745 = vmatprep.subr.mxu0 0.0
    %746 = vmatpush2.xpose.msra.mxu0 0.0
    %747 = vmatprep.subr.mxu0 0.0
    %748 = vmatpush2.xpose.msra.mxu0 0.0
    %749 = vmatprep.subr.mxu0 0.0
    %750 = vmatpush2.xpose.msra.mxu0 0.0
    %751 = vmatprep.subr.mxu0 0.0
    %752 = vmatpush2.xpose.msra.mxu0 0.0
    %753 = vmatprep.subr.mxu0 0.0
    %754 = vmatpush2.xpose.msra.mxu0 0.0
    %755 = vmatprep.mubr.f32.mxu0 0.0
    %756 = vmatmul.mubr.f32.gmra.mxu0 %v683
    %v757 = vpop.f32.mrf.mxu0
    %v758 = vadd.f32 %v80, %v757
    %v759 = vpop.f32.mrf.mxu0
    %760 = vmatprep.mubr.f32.mxu0 0.0
    %761 = vmatmul.mubr.f32.gmra.mxu0 %v685
    %v762 = vpop.f32.mrf.mxu0
    %v763 = vadd.f32 %v81, %v762
    %v764 = vpop.f32.mrf.mxu0
    %765 = vdwg.mxu0
    %766 = vrot.lane.b32.xlu0 %v269, 120
    %v767 = vpop.permute.xlu0 %766
    %768 = vrot.lane.b32.xlu0 %v274, 120
    %v769 = vpop.permute.xlu0 %768
    %770 = vrot.lane.b32.xlu0 %v269, 88
    %v771 = vpop.permute.xlu0 %770
    %772 = vrot.lane.b32.xlu0 %v274, 88
    %v773 = vpop.permute.xlu0 %772
    %v774 = vsel %vm283, %v767, 0
    %v776 = vsel %vm283, %v769, 0
    %v778 = vsel %vm283, %v771, 0
    %v780 = vsel %vm283, %v773, 0
    %782 = vmatprep.subr.mxu0 0.0
    %783 = vmatpush1.xpose.msra.mxu0 0.0
    %784 = vmatprep.subr.mxu0 0.0
    %785 = vmatpush1.xpose.msra.mxu0 0.0
    %786 = vmatprep.subr.mxu0 0.0
    %787 = vmatpush1.xpose.msra.mxu0 0.0
    %788 = vmatprep.subr.mxu0 0.0
    %789 = vmatpush1.xpose.msra.mxu0 0.0
    %790 = vmatprep.subr.mxu0 0.0
    %791 = vmatpush1.xpose.msra.mxu0 0.0
    %792 = vmatprep.subr.mxu0 0.0
    %793 = vmatpush1.xpose.msra.mxu0 0.0
    %794 = vmatprep.subr.mxu0 0.0
    %795 = vmatpush1.xpose.msra.mxu0 0.0
    %796 = vmatprep.subr.mxu0 0.0
    %797 = vmatpush1.xpose.msra.mxu0 0.0
    %798 = vmatprep.subr.mxu0 0.0
    %799 = vmatpush1.xpose.msra.mxu0 0.0
    %800 = vmatprep.subr.mxu0 0.0
    %801 = vmatpush1.xpose.msra.mxu0 0.0
    %802 = vmatprep.subr.mxu0 0.0
    %803 = vmatpush1.xpose.msra.mxu0 0.0
    %804 = vmatprep.subr.mxu0 0.0
    %805 = vmatpush1.xpose.msra.mxu0 0.0
    %806 = vmatprep.subr.mxu0 0.0
    %807 = vmatpush1.xpose.msra.mxu0 0.0
    %808 = vmatprep.subr.mxu0 0.0
    %809 = vmatpush1.xpose.msra.mxu0 0.0
    %810 = vmatprep.subr.mxu0 0.0
    %811 = vmatpush1.xpose.msra.mxu0 %v780
    %812 = vmatprep.subr.mxu0 0.0
    %813 = vmatpush1.xpose.msra.mxu0 %v778
    %814 = vmatprep.subr.mxu0 0.0
    %815 = vmatpush2.xpose.msra.mxu0 0.0
    %816 = vmatprep.subr.mxu0 0.0
    %817 = vmatpush2.xpose.msra.mxu0 0.0
    %818 = vmatprep.subr.mxu0 0.0
    %819 = vmatpush2.xpose.msra.mxu0 0.0
    %820 = vmatprep.subr.mxu0 0.0
    %821 = vmatpush2.xpose.msra.mxu0 0.0
    %822 = vmatprep.subr.mxu0 0.0
    %823 = vmatpush2.xpose.msra.mxu0 0.0
    %824 = vmatprep.subr.mxu0 0.0
    %825 = vmatpush2.xpose.msra.mxu0 0.0
    %826 = vmatprep.subr.mxu0 0.0
    %827 = vmatpush2.xpose.msra.mxu0 0.0
    %828 = vmatprep.subr.mxu0 0.0
    %829 = vmatpush2.xpose.msra.mxu0 0.0
    %830 = vmatprep.subr.mxu0 0.0
    %831 = vmatpush2.xpose.msra.mxu0 0.0
    %832 = vmatprep.subr.mxu0 0.0
    %833 = vmatpush2.xpose.msra.mxu0 0.0
    %834 = vmatprep.subr.mxu0 0.0
    %835 = vmatpush2.xpose.msra.mxu0 0.0
    %836 = vmatprep.subr.mxu0 0.0
    %837 = vmatpush2.xpose.msra.mxu0 0.0
    %838 = vmatprep.subr.mxu0 0.0
    %839 = vmatpush2.xpose.msra.mxu0 0.0
    %840 = vmatprep.subr.mxu0 0.0
    %841 = vmatpush2.xpose.msra.mxu0 0.0
    %842 = vmatprep.subr.mxu0 0.0
    %843 = vmatpush2.xpose.msra.mxu0 0.0
    %844 = vmatprep.subr.mxu0 0.0
    %845 = vmatpush2.xpose.msra.mxu0 0.0
    %846 = vmatprep.mubr.f32.mxu0 0.0
    %847 = vmatmul.mubr.f32.gmra.mxu0 %v774
    %v848 = vpop.f32.mrf.mxu0
    %v849 = vadd.f32 %v88, %v848
    %v850 = vpop.f32.mrf.mxu0
    %851 = vmatprep.mubr.f32.mxu0 0.0
    %852 = vmatmul.mubr.f32.gmra.mxu0 %v776
    %v853 = vpop.f32.mrf.mxu0
    %v854 = vadd.f32 %v89, %v853
    %v855 = vpop.f32.mrf.mxu0
    %856 = vdwg.mxu0
    %v857 = vsel %vm456, %v758, -inf
    %858 = vmax.xlane.f32.xlu0 %v857
    %v859 = vpop.xlane.xlu0 %858
    %v860 = vsel %vm456, %v763, -inf
    %861 = vmax.xlane.f32.xlu0 %v860
    %v862 = vpop.xlane.xlu0 %861
    %v863 = vsel %vm456, %v849, -inf
    %864 = vmax.xlane.f32.xlu0 %v863
    %v865 = vpop.xlane.xlu0 %864
    %v866 = vsel %vm456, %v854, -inf
    %867 = vmax.xlane.f32.xlu0 %v866
    %v868 = vpop.xlane.xlu0 %867
    %v869 = vsub.f32 %v758, %v859
    %v870 = vsub.f32 %v763, %v862
    %v871 = vsub.f32 %v849, %v865
    %v872 = vsub.f32 %v854, %v868
    %v873 = vmul.f32 %v869, 1.442695
    %v874 = vpow.pop %v873
    %v875 = vmul.f32 %v870, 1.442695
    %v876 = vpow.pop %v875
    %v877 = vmul.f32 %v871, 1.442695
    %v878 = vpow.pop %v877
    %v879 = vmul.f32 %v872, 1.442695
    %v880 = vpow.pop %v879
    %v881 = vsel %vm456, %v874, 0.0
    %882 = vadd.xlane.f32.xlu0 %v881
    %v883 = vpop.xlane.xlu0 %882
    %v884 = vsel %vm456, %v876, 0.0
    %885 = vadd.xlane.f32.xlu0 %v884
    %v886 = vpop.xlane.xlu0 %885
    %v887 = vsel %vm456, %v878, 0.0
    %888 = vadd.xlane.f32.xlu0 %v887
    %v889 = vpop.xlane.xlu0 %888
    %v890 = vsel %vm456, %v880, 0.0
    %891 = vadd.xlane.f32.xlu0 %v890
    %v892 = vpop.xlane.xlu0 %891
    %v893 = vrcp.pop %v883
    %v894 = vrcp.pop %v886
    %v895 = vrcp.pop %v889
    %v896 = vrcp.pop %v892
    %v897 = vmul.f32 %v874, %v893
    %v898 = vmul.f32 %v876, %v894
    %v899 = vmul.f32 %v878, %v895
    %v900 = vmul.f32 %v880, %v896
    %901 = vrot.lane.b32.xlu0 %v259, 56
    %v902 = vpop.permute.xlu0 %901
    %903 = vrot.lane.b32.xlu0 %v264, 56
    %v904 = vpop.permute.xlu0 %903
    %v908 = vsel %vm456, %v897, 0
    %v911 = vsel %vm456, %v898, 0
    %913 = vmatprep.subr.mxu0 0.0
    %914 = vmatpush1.msra.mxu0 0.0
    %915 = vmatprep.subr.mxu0 0.0
    %916 = vmatpush1.msra.mxu0 0.0
    %917 = vmatprep.subr.mxu0 0.0
    %918 = vmatpush1.msra.mxu0 0.0
    %919 = vmatprep.subr.mxu0 0.0
    %920 = vmatpush1.msra.mxu0 0.0
    %921 = vmatprep.subr.mxu0 0.0
    %922 = vmatpush1.msra.mxu0 0.0
    %923 = vmatprep.subr.mxu0 0.0
    %924 = vmatpush1.msra.mxu0 0.0
    %925 = vmatprep.subr.mxu0 0.0
    %926 = vmatpush1.msra.mxu0 0.0
    %927 = vmatprep.subr.mxu0 0.0
    %928 = vmatpush1.msra.mxu0 0.0
    %929 = vmatprep.subr.mxu0 0.0
    %930 = vmatpush1.msra.mxu0 0.0
    %931 = vmatprep.subr.mxu0 0.0
    %932 = vmatpush1.msra.mxu0 0.0
    %933 = vmatprep.subr.mxu0 0.0
    %934 = vmatpush1.msra.mxu0 0.0
    %935 = vmatprep.subr.mxu0 0.0
    %936 = vmatpush1.msra.mxu0 0.0
    %937 = vmatprep.subr.mxu0 0.0
    %938 = vmatpush1.msra.mxu0 0.0
    %939 = vmatprep.subr.mxu0 0.0
    %940 = vmatpush1.msra.mxu0 0.0
    %941 = vmatprep.subr.mxu0 0.0
    %942 = vmatpush1.msra.mxu0 %v904
    %943 = vmatprep.subr.mxu0 0.0
    %944 = vmatpush1.msra.mxu0 %v902
    %945 = vmatprep.subr.mxu0 0.0
    %946 = vmatpush2.msra.mxu0 0.0
    %947 = vmatprep.subr.mxu0 0.0
    %948 = vmatpush2.msra.mxu0 0.0
    %949 = vmatprep.subr.mxu0 0.0
    %950 = vmatpush2.msra.mxu0 0.0
    %951 = vmatprep.subr.mxu0 0.0
    %952 = vmatpush2.msra.mxu0 0.0
    %953 = vmatprep.subr.mxu0 0.0
    %954 = vmatpush2.msra.mxu0 0.0
    %955 = vmatprep.subr.mxu0 0.0
    %956 = vmatpush2.msra.mxu0 0.0
    %957 = vmatprep.subr.mxu0 0.0
    %958 = vmatpush2.msra.mxu0 0.0
    %959 = vmatprep.subr.mxu0 0.0
    %960 = vmatpush2.msra.mxu0 0.0
    %961 = vmatprep.subr.mxu0 0.0
    %962 = vmatpush2.msra.mxu0 0.0
    %963 = vmatprep.subr.mxu0 0.0
    %964 = vmatpush2.msra.mxu0 0.0
    %965 = vmatprep.subr.mxu0 0.0
    %966 = vmatpush2.msra.mxu0 0.0
    %967 = vmatprep.subr.mxu0 0.0
    %968 = vmatpush2.msra.mxu0 0.0
    %969 = vmatprep.subr.mxu0 0.0
    %970 = vmatpush2.msra.mxu0 0.0
    %971 = vmatprep.subr.mxu0 0.0
    %972 = vmatpush2.msra.mxu0 0.0
    %973 = vmatprep.subr.mxu0 0.0
    %974 = vmatpush2.msra.mxu0 0.0
    %975 = vmatprep.subr.mxu0 0.0
    %976 = vmatpush2.msra.mxu0 0.0
    %977 = vmatprep.mubr.f32.mxu0 0.0
    %978 = vmatmul.mubr.f32.gmra.mxu0 %v908
    %v979 = vpop.f32.mrf.mxu0
    %v980 = vadd.f32 0.0, %v979
    %v981 = vpop.f32.mrf.mxu0
    %982 = vmatprep.mubr.f32.mxu0 0.0
    %983 = vmatmul.mubr.f32.gmra.mxu0 %v911
    %v984 = vpop.f32.mrf.mxu0
    %v985 = vadd.f32 0.0, %v984
    %v986 = vpop.f32.mrf.mxu0
    %987 = vdwg.mxu0
    %988 = vrot.lane.b32.xlu0 %v269, 56
    %v989 = vpop.permute.xlu0 %988
    %990 = vrot.lane.b32.xlu0 %v274, 56
    %v991 = vpop.permute.xlu0 %990
    %v995 = vsel %vm456, %v899, 0
    %v998 = vsel %vm456, %v900, 0
    %1000 = vmatprep.subr.mxu0 0.0
    %1001 = vmatpush1.msra.mxu0 0.0
    %1002 = vmatprep.subr.mxu0 0.0
    %1003 = vmatpush1.msra.mxu0 0.0
    %1004 = vmatprep.subr.mxu0 0.0
    %1005 = vmatpush1.msra.mxu0 0.0
    %1006 = vmatprep.subr.mxu0 0.0
    %1007 = vmatpush1.msra.mxu0 0.0
    %1008 = vmatprep.subr.mxu0 0.0
    %1009 = vmatpush1.msra.mxu0 0.0
    %1010 = vmatprep.subr.mxu0 0.0
    %1011 = vmatpush1.msra.mxu0 0.0
    %1012 = vmatprep.subr.mxu0 0.0
    %1013 = vmatpush1.msra.mxu0 0.0
    %1014 = vmatprep.subr.mxu0 0.0
    %1015 = vmatpush1.msra.mxu0 0.0
    %1016 = vmatprep.subr.mxu0 0.0
    %1017 = vmatpush1.msra.mxu0 0.0
    %1018 = vmatprep.subr.mxu0 0.0
    %1019 = vmatpush1.msra.mxu0 0.0
    %1020 = vmatprep.subr.mxu0 0.0
    %1021 = vmatpush1.msra.mxu0 0.0
    %1022 = vmatprep.subr.mxu0 0.0
    %1023 = vmatpush1.msra.mxu0 0.0
    %1024 = vmatprep.subr.mxu0 0.0
    %1025 = vmatpush1.msra.mxu0 0.0
    %1026 = vmatprep.subr.mxu0 0.0
    %1027 = vmatpush1.msra.mxu0 0.0
    %1028 = vmatprep.subr.mxu0 0.0
    %1029 = vmatpush1.msra.mxu0 %v991
    %1030 = vmatprep.subr.mxu0 0.0
    %1031 = vmatpush1.msra.mxu0 %v989
    %1032 = vmatprep.subr.mxu0 0.0
    %1033 = vmatpush2.msra.mxu0 0.0
    %1034 = vmatprep.subr.mxu0 0.0
    %1035 = vmatpush2.msra.mxu0 0.0
    %1036 = vmatprep.subr.mxu0 0.0
    %1037 = vmatpush2.msra.mxu0 0.0
    %1038 = vmatprep.subr.mxu0 0.0
    %1039 = vmatpush2.msra.mxu0 0.0
    %1040 = vmatprep.subr.mxu0 0.0
    %1041 = vmatpush2.msra.mxu0 0.0
    %1042 = vmatprep.subr.mxu0 0.0
    %1043 = vmatpush2.msra.mxu0 0.0
    %1044 = vmatprep.subr.mxu0 0.0
    %1045 = vmatpush2.msra.mxu0 0.0
    %1046 = vmatprep.subr.mxu0 0.0
    %1047 = vmatpush2.msra.mxu0 0.0
    %1048 = vmatprep.subr.mxu0 0.0
    %1049 = vmatpush2.msra.mxu0 0.0
    %1050 = vmatprep.subr.mxu0 0.0
    %1051 = vmatpush2.msra.mxu0 0.0
    %1052 = vmatprep.subr.mxu0 0.0
    %1053 = vmatpush2.msra.mxu0 0.0
    %1054 = vmatprep.subr.mxu0 0.0
    %1055 = vmatpush2.msra.mxu0 0.0
    %1056 = vmatprep.subr.mxu0 0.0
    %1057 = vmatpush2.msra.mxu0 0.0
    %1058 = vmatprep.subr.mxu0 0.0
    %1059 = vmatpush2.msra.mxu0 0.0
    %1060 = vmatprep.subr.mxu0 0.0
    %1061 = vmatpush2.msra.mxu0 0.0
    %1062 = vmatprep.subr.mxu0 0.0
    %1063 = vmatpush2.msra.mxu0 0.0
    %1064 = vmatprep.mubr.f32.mxu0 0.0
    %1065 = vmatmul.mubr.f32.gmra.mxu0 %v995
    %v1066 = vpop.f32.mrf.mxu0
    %v1067 = vadd.f32 0.0, %v1066
    %v1068 = vpop.f32.mrf.mxu0
    %1069 = vmatprep.mubr.f32.mxu0 0.0
    %1070 = vmatmul.mubr.f32.gmra.mxu0 %v998
    %v1071 = vpop.f32.mrf.mxu0
    %v1072 = vadd.f32 0.0, %v1071
    %v1073 = vpop.f32.mrf.mxu0
    %1074 = vdwg.mxu0
    %1075 = vrot.lane.b32.xlu0 %v259, 112
    %v1076 = vpop.permute.xlu0 %1075
    %1077 = vrot.lane.b32.xlu0 %v264, 112
    %v1078 = vpop.permute.xlu0 %1077
    %1079 = vrot.lane.b32.xlu0 %v259, 80
    %v1080 = vpop.permute.xlu0 %1079
    %1081 = vrot.lane.b32.xlu0 %v264, 80
    %v1082 = vpop.permute.xlu0 %1081
    %v1083 = vsel %vm283, %v1076, 0
    %v1085 = vsel %vm283, %v1078, 0
    %v1087 = vsel %vm283, %v1080, 0
    %v1089 = vsel %vm283, %v1082, 0
    %1091 = vmatprep.subr.mxu0 0.0
    %1092 = vmatpush1.xpose.msra.mxu0 0.0
    %1093 = vmatprep.subr.mxu0 0.0
    %1094 = vmatpush1.xpose.msra.mxu0 0.0
    %1095 = vmatprep.subr.mxu0 0.0
    %1096 = vmatpush1.xpose.msra.mxu0 0.0
    %1097 = vmatprep.subr.mxu0 0.0
    %1098 = vmatpush1.xpose.msra.mxu0 0.0
    %1099 = vmatprep.subr.mxu0 0.0
    %1100 = vmatpush1.xpose.msra.mxu0 0.0
    %1101 = vmatprep.subr.mxu0 0.0
    %1102 = vmatpush1.xpose.msra.mxu0 0.0
    %1103 = vmatprep.subr.mxu0 0.0
    %1104 = vmatpush1.xpose.msra.mxu0 0.0
    %1105 = vmatprep.subr.mxu0 0.0
    %1106 = vmatpush1.xpose.msra.mxu0 0.0
    %1107 = vmatprep.subr.mxu0 0.0
    %1108 = vmatpush1.xpose.msra.mxu0 0.0
    %1109 = vmatprep.subr.mxu0 0.0
    %1110 = vmatpush1.xpose.msra.mxu0 0.0
    %1111 = vmatprep.subr.mxu0 0.0
    %1112 = vmatpush1.xpose.msra.mxu0 0.0
    %1113 = vmatprep.subr.mxu0 0.0
    %1114 = vmatpush1.xpose.msra.mxu0 0.0
    %1115 = vmatprep.subr.mxu0 0.0
    %1116 = vmatpush1.xpose.msra.mxu0 0.0
    %1117 = vmatprep.subr.mxu0 0.0
    %1118 = vmatpush1.xpose.msra.mxu0 0.0
    %1119 = vmatprep.subr.mxu0 0.0
    %1120 = vmatpush1.xpose.msra.mxu0 %v1089
    %1121 = vmatprep.subr.mxu0 0.0
    %1122 = vmatpush1.xpose.msra.mxu0 %v1087
    %1123 = vmatprep.subr.mxu0 0.0
    %1124 = vmatpush2.xpose.msra.mxu0 0.0
    %1125 = vmatprep.subr.mxu0 0.0
    %1126 = vmatpush2.xpose.msra.mxu0 0.0
    %1127 = vmatprep.subr.mxu0 0.0
    %1128 = vmatpush2.xpose.msra.mxu0 0.0
    %1129 = vmatprep.subr.mxu0 0.0
    %1130 = vmatpush2.xpose.msra.mxu0 0.0
    %1131 = vmatprep.subr.mxu0 0.0
    %1132 = vmatpush2.xpose.msra.mxu0 0.0
    %1133 = vmatprep.subr.mxu0 0.0
    %1134 = vmatpush2.xpose.msra.mxu0 0.0
    %1135 = vmatprep.subr.mxu0 0.0
    %1136 = vmatpush2.xpose.msra.mxu0 0.0
    %1137 = vmatprep.subr.mxu0 0.0
    %1138 = vmatpush2.xpose.msra.mxu0 0.0
    %1139 = vmatprep.subr.mxu0 0.0
    %1140 = vmatpush2.xpose.msra.mxu0 0.0
    %1141 = vmatprep.subr.mxu0 0.0
    %1142 = vmatpush2.xpose.msra.mxu0 0.0
    %1143 = vmatprep.subr.mxu0 0.0
    %1144 = vmatpush2.xpose.msra.mxu0 0.0
    %1145 = vmatprep.subr.mxu0 0.0
    %1146 = vmatpush2.xpose.msra.mxu0 0.0
    %1147 = vmatprep.subr.mxu0 0.0
    %1148 = vmatpush2.xpose.msra.mxu0 0.0
    %1149 = vmatprep.subr.mxu0 0.0
    %1150 = vmatpush2.xpose.msra.mxu0 0.0
    %1151 = vmatprep.subr.mxu0 0.0
    %1152 = vmatpush2.xpose.msra.mxu0 0.0
    %1153 = vmatprep.subr.mxu0 0.0
    %1154 = vmatpush2.xpose.msra.mxu0 0.0
    %1155 = vmatprep.mubr.f32.mxu0 0.0
    %1156 = vmatmul.mubr.f32.gmra.mxu0 %v1083
    %v1157 = vpop.f32.mrf.mxu0
    %v1158 = vadd.f32 %v82, %v1157
    %v1159 = vpop.f32.mrf.mxu0
    %1160 = vmatprep.mubr.f32.mxu0 0.0
    %1161 = vmatmul.mubr.f32.gmra.mxu0 %v1085
    %v1162 = vpop.f32.mrf.mxu0
    %v1163 = vadd.f32 %v83, %v1162
    %v1164 = vpop.f32.mrf.mxu0
    %1165 = vdwg.mxu0
    %1166 = vrot.lane.b32.xlu0 %v269, 112
    %v1167 = vpop.permute.xlu0 %1166
    %1168 = vrot.lane.b32.xlu0 %v274, 112
    %v1169 = vpop.permute.xlu0 %1168
    %1170 = vrot.lane.b32.xlu0 %v269, 80
    %v1171 = vpop.permute.xlu0 %1170
    %1172 = vrot.lane.b32.xlu0 %v274, 80
    %v1173 = vpop.permute.xlu0 %1172
    %v1174 = vsel %vm283, %v1167, 0
    %v1176 = vsel %vm283, %v1169, 0
    %v1178 = vsel %vm283, %v1171, 0
    %v1180 = vsel %vm283, %v1173, 0
    %1182 = vmatprep.subr.mxu0 0.0
    %1183 = vmatpush1.xpose.msra.mxu0 0.0
    %1184 = vmatprep.subr.mxu0 0.0
    %1185 = vmatpush1.xpose.msra.mxu0 0.0
    %1186 = vmatprep.subr.mxu0 0.0
    %1187 = vmatpush1.xpose.msra.mxu0 0.0
    %1188 = vmatprep.subr.mxu0 0.0
    %1189 = vmatpush1.xpose.msra.mxu0 0.0
    %1190 = vmatprep.subr.mxu0 0.0
    %1191 = vmatpush1.xpose.msra.mxu0 0.0
    %1192 = vmatprep.subr.mxu0 0.0
    %1193 = vmatpush1.xpose.msra.mxu0 0.0
    %1194 = vmatprep.subr.mxu0 0.0
    %1195 = vmatpush1.xpose.msra.mxu0 0.0
    %1196 = vmatprep.subr.mxu0 0.0
    %1197 = vmatpush1.xpose.msra.mxu0 0.0
    %1198 = vmatprep.subr.mxu0 0.0
    %1199 = vmatpush1.xpose.msra.mxu0 0.0
    %1200 = vmatprep.subr.mxu0 0.0
    %1201 = vmatpush1.xpose.msra.mxu0 0.0
    %1202 = vmatprep.subr.mxu0 0.0
    %1203 = vmatpush1.xpose.msra.mxu0 0.0
    %1204 = vmatprep.subr.mxu0 0.0
    %1205 = vmatpush1.xpose.msra.mxu0 0.0
    %1206 = vmatprep.subr.mxu0 0.0
    %1207 = vmatpush1.xpose.msra.mxu0 0.0
    %1208 = vmatprep.subr.mxu0 0.0
    %1209 = vmatpush1.xpose.msra.mxu0 0.0
    %1210 = vmatprep.subr.mxu0 0.0
    %1211 = vmatpush1.xpose.msra.mxu0 %v1180
    %1212 = vmatprep.subr.mxu0 0.0
    %1213 = vmatpush1.xpose.msra.mxu0 %v1178
    %1214 = vmatprep.subr.mxu0 0.0
    %1215 = vmatpush2.xpose.msra.mxu0 0.0
    %1216 = vmatprep.subr.mxu0 0.0
    %1217 = vmatpush2.xpose.msra.mxu0 0.0
    %1218 = vmatprep.subr.mxu0 0.0
    %1219 = vmatpush2.xpose.msra.mxu0 0.0
    %1220 = vmatprep.subr.mxu0 0.0
    %1221 = vmatpush2.xpose.msra.mxu0 0.0
    %1222 = vmatprep.subr.mxu0 0.0
    %1223 = vmatpush2.xpose.msra.mxu0 0.0
    %1224 = vmatprep.subr.mxu0 0.0
    %1225 = vmatpush2.xpose.msra.mxu0 0.0
    %1226 = vmatprep.subr.mxu0 0.0
    %1227 = vmatpush2.xpose.msra.mxu0 0.0
    %1228 = vmatprep.subr.mxu0 0.0
    %1229 = vmatpush2.xpose.msra.mxu0 0.0
    %1230 = vmatprep.subr.mxu0 0.0
    %1231 = vmatpush2.xpose.msra.mxu0 0.0
    %1232 = vmatprep.subr.mxu0 0.0
    %1233 = vmatpush2.xpose.msra.mxu0 0.0
    %1234 = vmatprep.subr.mxu0 0.0
    %1235 = vmatpush2.xpose.msra.mxu0 0.0
    %1236 = vmatprep.subr.mxu0 0.0
    %1237 = vmatpush2.xpose.msra.mxu0 0.0
    %1238 = vmatprep.subr.mxu0 0.0
    %1239 = vmatpush2.xpose.msra.mxu0 0.0
    %1240 = vmatprep.subr.mxu0 0.0
    %1241 = vmatpush2.xpose.msra.mxu0 0.0
    %1242 = vmatprep.subr.mxu0 0.0
    %1243 = vmatpush2.xpose.msra.mxu0 0.0
    %1244 = vmatprep.subr.mxu0 0.0
    %1245 = vmatpush2.xpose.msra.mxu0 0.0
    %1246 = vmatprep.mubr.f32.mxu0 0.0
    %1247 = vmatmul.mubr.f32.gmra.mxu0 %v1174
    %v1248 = vpop.f32.mrf.mxu0
    %v1249 = vadd.f32 %v90, %v1248
    %v1250 = vpop.f32.mrf.mxu0
    %1251 = vmatprep.mubr.f32.mxu0 0.0
    %1252 = vmatmul.mubr.f32.gmra.mxu0 %v1176
    %v1253 = vpop.f32.mrf.mxu0
    %v1254 = vadd.f32 %v91, %v1253
    %v1255 = vpop.f32.mrf.mxu0
    %1256 = vdwg.mxu0
    %v1257 = vsel %vm456, %v1158, -inf
    %1258 = vmax.xlane.f32.xlu0 %v1257
    %v1259 = vpop.xlane.xlu0 %1258
    %v1260 = vsel %vm456, %v1163, -inf
    %1261 = vmax.xlane.f32.xlu0 %v1260
    %v1262 = vpop.xlane.xlu0 %1261
    %v1263 = vsel %vm456, %v1249, -inf
    %1264 = vmax.xlane.f32.xlu0 %v1263
    %v1265 = vpop.xlane.xlu0 %1264
    %v1266 = vsel %vm456, %v1254, -inf
    %1267 = vmax.xlane.f32.xlu0 %v1266
    %v1268 = vpop.xlane.xlu0 %1267
    %v1269 = vsub.f32 %v1158, %v1259
    %v1270 = vsub.f32 %v1163, %v1262
    %v1271 = vsub.f32 %v1249, %v1265
    %v1272 = vsub.f32 %v1254, %v1268
    %v1273 = vmul.f32 %v1269, 1.442695
    %v1274 = vpow.pop %v1273
    %v1275 = vmul.f32 %v1270, 1.442695
    %v1276 = vpow.pop %v1275
    %v1277 = vmul.f32 %v1271, 1.442695
    %v1278 = vpow.pop %v1277
    %v1279 = vmul.f32 %v1272, 1.442695
    %v1280 = vpow.pop %v1279
    %v1281 = vsel %vm456, %v1274, 0.0
    %1282 = vadd.xlane.f32.xlu0 %v1281
    %v1283 = vpop.xlane.xlu0 %1282
    %v1284 = vsel %vm456, %v1276, 0.0
    %1285 = vadd.xlane.f32.xlu0 %v1284
    %v1286 = vpop.xlane.xlu0 %1285
    %v1287 = vsel %vm456, %v1278, 0.0
    %1288 = vadd.xlane.f32.xlu0 %v1287
    %v1289 = vpop.xlane.xlu0 %1288
    %v1290 = vsel %vm456, %v1280, 0.0
    %1291 = vadd.xlane.f32.xlu0 %v1290
    %v1292 = vpop.xlane.xlu0 %1291
    %v1293 = vrcp.pop %v1283
    %v1294 = vrcp.pop %v1286
    %v1295 = vrcp.pop %v1289
    %v1296 = vrcp.pop %v1292
    %v1297 = vmul.f32 %v1274, %v1293
    %v1298 = vmul.f32 %v1276, %v1294
    %v1299 = vmul.f32 %v1278, %v1295
    %v1300 = vmul.f32 %v1280, %v1296
    %1301 = vrot.lane.b32.xlu0 %v259, 48
    %v1302 = vpop.permute.xlu0 %1301
    %1303 = vrot.lane.b32.xlu0 %v264, 48
    %v1304 = vpop.permute.xlu0 %1303
    %v1308 = vsel %vm456, %v1297, 0
    %v1311 = vsel %vm456, %v1298, 0
    %1313 = vmatprep.subr.mxu0 0.0
    %1314 = vmatpush1.msra.mxu0 0.0
    %1315 = vmatprep.subr.mxu0 0.0
    %1316 = vmatpush1.msra.mxu0 0.0
    %1317 = vmatprep.subr.mxu0 0.0
    %1318 = vmatpush1.msra.mxu0 0.0
    %1319 = vmatprep.subr.mxu0 0.0
    %1320 = vmatpush1.msra.mxu0 0.0
    %1321 = vmatprep.subr.mxu0 0.0
    %1322 = vmatpush1.msra.mxu0 0.0
    %1323 = vmatprep.subr.mxu0 0.0
    %1324 = vmatpush1.msra.mxu0 0.0
    %1325 = vmatprep.subr.mxu0 0.0
    %1326 = vmatpush1.msra.mxu0 0.0
    %1327 = vmatprep.subr.mxu0 0.0
    %1328 = vmatpush1.msra.mxu0 0.0
    %1329 = vmatprep.subr.mxu0 0.0
    %1330 = vmatpush1.msra.mxu0 0.0
    %1331 = vmatprep.subr.mxu0 0.0
    %1332 = vmatpush1.msra.mxu0 0.0
    %1333 = vmatprep.subr.mxu0 0.0
    %1334 = vmatpush1.msra.mxu0 0.0
    %1335 = vmatprep.subr.mxu0 0.0
    %1336 = vmatpush1.msra.mxu0 0.0
    %1337 = vmatprep.subr.mxu0 0.0
    %1338 = vmatpush1.msra.mxu0 0.0
    %1339 = vmatprep.subr.mxu0 0.0
    %1340 = vmatpush1.msra.mxu0 0.0
    %1341 = vmatprep.subr.mxu0 0.0
    %1342 = vmatpush1.msra.mxu0 %v1304
    %1343 = vmatprep.subr.mxu0 0.0
    %1344 = vmatpush1.msra.mxu0 %v1302
    %1345 = vmatprep.subr.mxu0 0.0
    %1346 = vmatpush2.msra.mxu0 0.0
    %1347 = vmatprep.subr.mxu0 0.0
    %1348 = vmatpush2.msra.mxu0 0.0
    %1349 = vmatprep.subr.mxu0 0.0
    %1350 = vmatpush2.msra.mxu0 0.0
    %1351 = vmatprep.subr.mxu0 0.0
    %1352 = vmatpush2.msra.mxu0 0.0
    %1353 = vmatprep.subr.mxu0 0.0
    %1354 = vmatpush2.msra.mxu0 0.0
    %1355 = vmatprep.subr.mxu0 0.0
    %1356 = vmatpush2.msra.mxu0 0.0
    %1357 = vmatprep.subr.mxu0 0.0
    %1358 = vmatpush2.msra.mxu0 0.0
    %1359 = vmatprep.subr.mxu0 0.0
    %1360 = vmatpush2.msra.mxu0 0.0
    %1361 = vmatprep.subr.mxu0 0.0
    %1362 = vmatpush2.msra.mxu0 0.0
    %1363 = vmatprep.subr.mxu0 0.0
    %1364 = vmatpush2.msra.mxu0 0.0
    %1365 = vmatprep.subr.mxu0 0.0
    %1366 = vmatpush2.msra.mxu0 0.0
    %1367 = vmatprep.subr.mxu0 0.0
    %1368 = vmatpush2.msra.mxu0 0.0
    %1369 = vmatprep.subr.mxu0 0.0
    %1370 = vmatpush2.msra.mxu0 0.0
    %1371 = vmatprep.subr.mxu0 0.0
    %1372 = vmatpush2.msra.mxu0 0.0
    %1373 = vmatprep.subr.mxu0 0.0
    %1374 = vmatpush2.msra.mxu0 0.0
    %1375 = vmatprep.subr.mxu0 0.0
    %1376 = vmatpush2.msra.mxu0 0.0
    %1377 = vmatprep.mubr.f32.mxu0 0.0
    %1378 = vmatmul.mubr.f32.gmra.mxu0 %v1308
    %v1379 = vpop.f32.mrf.mxu0
    %v1380 = vadd.f32 0.0, %v1379
    %v1381 = vpop.f32.mrf.mxu0
    %1382 = vmatprep.mubr.f32.mxu0 0.0
    %1383 = vmatmul.mubr.f32.gmra.mxu0 %v1311
    %v1384 = vpop.f32.mrf.mxu0
    %v1385 = vadd.f32 0.0, %v1384
    %v1386 = vpop.f32.mrf.mxu0
    %1387 = vdwg.mxu0
    %1388 = vrot.lane.b32.xlu0 %v269, 48
    %v1389 = vpop.permute.xlu0 %1388
    %1390 = vrot.lane.b32.xlu0 %v274, 48
    %v1391 = vpop.permute.xlu0 %1390
    %v1395 = vsel %vm456, %v1299, 0
    %v1398 = vsel %vm456, %v1300, 0
    %1400 = vmatprep.subr.mxu0 0.0
    %1401 = vmatpush1.msra.mxu0 0.0
    %1402 = vmatprep.subr.mxu0 0.0
    %1403 = vmatpush1.msra.mxu0 0.0
    %1404 = vmatprep.subr.mxu0 0.0
    %1405 = vmatpush1.msra.mxu0 0.0
    %1406 = vmatprep.subr.mxu0 0.0
    %1407 = vmatpush1.msra.mxu0 0.0
    %1408 = vmatprep.subr.mxu0 0.0
    %1409 = vmatpush1.msra.mxu0 0.0
    %1410 = vmatprep.subr.mxu0 0.0
    %1411 = vmatpush1.msra.mxu0 0.0
    %1412 = vmatprep.subr.mxu0 0.0
    %1413 = vmatpush1.msra.mxu0 0.0
    %1414 = vmatprep.subr.mxu0 0.0
    %1415 = vmatpush1.msra.mxu0 0.0
    %1416 = vmatprep.subr.mxu0 0.0
    %1417 = vmatpush1.msra.mxu0 0.0
    %1418 = vmatprep.subr.mxu0 0.0
    %1419 = vmatpush1.msra.mxu0 0.0
    %1420 = vmatprep.subr.mxu0 0.0
    %1421 = vmatpush1.msra.mxu0 0.0
    %1422 = vmatprep.subr.mxu0 0.0
    %1423 = vmatpush1.msra.mxu0 0.0
    %1424 = vmatprep.subr.mxu0 0.0
    %1425 = vmatpush1.msra.mxu0 0.0
    %1426 = vmatprep.subr.mxu0 0.0
    %1427 = vmatpush1.msra.mxu0 0.0
    %1428 = vmatprep.subr.mxu0 0.0
    %1429 = vmatpush1.msra.mxu0 %v1391
    %1430 = vmatprep.subr.mxu0 0.0
    %1431 = vmatpush1.msra.mxu0 %v1389
    %1432 = vmatprep.subr.mxu0 0.0
    %1433 = vmatpush2.msra.mxu0 0.0
    %1434 = vmatprep.subr.mxu0 0.0
    %1435 = vmatpush2.msra.mxu0 0.0
    %1436 = vmatprep.subr.mxu0 0.0
    %1437 = vmatpush2.msra.mxu0 0.0
    %1438 = vmatprep.subr.mxu0 0.0
    %1439 = vmatpush2.msra.mxu0 0.0
    %1440 = vmatprep.subr.mxu0 0.0
    %1441 = vmatpush2.msra.mxu0 0.0
    %1442 = vmatprep.subr.mxu0 0.0
    %1443 = vmatpush2.msra.mxu0 0.0
    %1444 = vmatprep.subr.mxu0 0.0
    %1445 = vmatpush2.msra.mxu0 0.0
    %1446 = vmatprep.subr.mxu0 0.0
    %1447 = vmatpush2.msra.mxu0 0.0
    %1448 = vmatprep.subr.mxu0 0.0
    %1449 = vmatpush2.msra.mxu0 0.0
    %1450 = vmatprep.subr.mxu0 0.0
    %1451 = vmatpush2.msra.mxu0 0.0
    %1452 = vmatprep.subr.mxu0 0.0
    %1453 = vmatpush2.msra.mxu0 0.0
    %1454 = vmatprep.subr.mxu0 0.0
    %1455 = vmatpush2.msra.mxu0 0.0
    %1456 = vmatprep.subr.mxu0 0.0
    %1457 = vmatpush2.msra.mxu0 0.0
    %1458 = vmatprep.subr.mxu0 0.0
    %1459 = vmatpush2.msra.mxu0 0.0
    %1460 = vmatprep.subr.mxu0 0.0
    %1461 = vmatpush2.msra.mxu0 0.0
    %1462 = vmatprep.subr.mxu0 0.0
    %1463 = vmatpush2.msra.mxu0 0.0
    %1464 = vmatprep.mubr.f32.mxu0 0.0
    %1465 = vmatmul.mubr.f32.gmra.mxu0 %v1395
    %v1466 = vpop.f32.mrf.mxu0
    %v1467 = vadd.f32 0.0, %v1466
    %v1468 = vpop.f32.mrf.mxu0
    %1469 = vmatprep.mubr.f32.mxu0 0.0
    %1470 = vmatmul.mubr.f32.gmra.mxu0 %v1398
    %v1471 = vpop.f32.mrf.mxu0
    %v1472 = vadd.f32 0.0, %v1471
    %v1473 = vpop.f32.mrf.mxu0
    %1474 = vdwg.mxu0
    %1475 = vrot.lane.b32.xlu0 %v259, 104
    %v1476 = vpop.permute.xlu0 %1475
    %1477 = vrot.lane.b32.xlu0 %v264, 104
    %v1478 = vpop.permute.xlu0 %1477
    %1479 = vrot.lane.b32.xlu0 %v259, 72
    %v1480 = vpop.permute.xlu0 %1479
    %1481 = vrot.lane.b32.xlu0 %v264, 72
    %v1482 = vpop.permute.xlu0 %1481
    %v1483 = vsel %vm283, %v1476, 0
    %v1485 = vsel %vm283, %v1478, 0
    %v1487 = vsel %vm283, %v1480, 0
    %v1489 = vsel %vm283, %v1482, 0
    %1491 = vmatprep.subr.mxu0 0.0
    %1492 = vmatpush1.xpose.msra.mxu0 0.0
    %1493 = vmatprep.subr.mxu0 0.0
    %1494 = vmatpush1.xpose.msra.mxu0 0.0
    %1495 = vmatprep.subr.mxu0 0.0
    %1496 = vmatpush1.xpose.msra.mxu0 0.0
    %1497 = vmatprep.subr.mxu0 0.0
    %1498 = vmatpush1.xpose.msra.mxu0 0.0
    %1499 = vmatprep.subr.mxu0 0.0
    %1500 = vmatpush1.xpose.msra.mxu0 0.0
    %1501 = vmatprep.subr.mxu0 0.0
    %1502 = vmatpush1.xpose.msra.mxu0 0.0
    %1503 = vmatprep.subr.mxu0 0.0
    %1504 = vmatpush1.xpose.msra.mxu0 0.0
    %1505 = vmatprep.subr.mxu0 0.0
    %1506 = vmatpush1.xpose.msra.mxu0 0.0
    %1507 = vmatprep.subr.mxu0 0.0
    %1508 = vmatpush1.xpose.msra.mxu0 0.0
    %1509 = vmatprep.subr.mxu0 0.0
    %1510 = vmatpush1.xpose.msra.mxu0 0.0
    %1511 = vmatprep.subr.mxu0 0.0
    %1512 = vmatpush1.xpose.msra.mxu0 0.0
    %1513 = vmatprep.subr.mxu0 0.0
    %1514 = vmatpush1.xpose.msra.mxu0 0.0
    %1515 = vmatprep.subr.mxu0 0.0
    %1516 = vmatpush1.xpose.msra.mxu0 0.0
    %1517 = vmatprep.subr.mxu0 0.0
    %1518 = vmatpush1.xpose.msra.mxu0 0.0
    %1519 = vmatprep.subr.mxu0 0.0
    %1520 = vmatpush1.xpose.msra.mxu0 %v1489
    %1521 = vmatprep.subr.mxu0 0.0
    %1522 = vmatpush1.xpose.msra.mxu0 %v1487
    %1523 = vmatprep.subr.mxu0 0.0
    %1524 = vmatpush2.xpose.msra.mxu0 0.0
    %1525 = vmatprep.subr.mxu0 0.0
    %1526 = vmatpush2.xpose.msra.mxu0 0.0
    %1527 = vmatprep.subr.mxu0 0.0
    %1528 = vmatpush2.xpose.msra.mxu0 0.0
    %1529 = vmatprep.subr.mxu0 0.0
    %1530 = vmatpush2.xpose.msra.mxu0 0.0
    %1531 = vmatprep.subr.mxu0 0.0
    %1532 = vmatpush2.xpose.msra.mxu0 0.0
    %1533 = vmatprep.subr.mxu0 0.0
    %1534 = vmatpush2.xpose.msra.mxu0 0.0
    %1535 = vmatprep.subr.mxu0 0.0
    %1536 = vmatpush2.xpose.msra.mxu0 0.0
    %1537 = vmatprep.subr.mxu0 0.0
    %1538 = vmatpush2.xpose.msra.mxu0 0.0
    %1539 = vmatprep.subr.mxu0 0.0
    %1540 = vmatpush2.xpose.msra.mxu0 0.0
    %1541 = vmatprep.subr.mxu0 0.0
    %1542 = vmatpush2.xpose.msra.mxu0 0.0
    %1543 = vmatprep.subr.mxu0 0.0
    %1544 = vmatpush2.xpose.msra.mxu0 0.0
    %1545 = vmatprep.subr.mxu0 0.0
    %1546 = vmatpush2.xpose.msra.mxu0 0.0
    %1547 = vmatprep.subr.mxu0 0.0
    %1548 = vmatpush2.xpose.msra.mxu0 0.0
    %1549 = vmatprep.subr.mxu0 0.0
    %1550 = vmatpush2.xpose.msra.mxu0 0.0
    %1551 = vmatprep.subr.mxu0 0.0
    %1552 = vmatpush2.xpose.msra.mxu0 0.0
    %1553 = vmatprep.subr.mxu0 0.0
    %1554 = vmatpush2.xpose.msra.mxu0 0.0
    %1555 = vmatprep.mubr.f32.mxu0 0.0
    %1556 = vmatmul.mubr.f32.gmra.mxu0 %v1483
    %v1557 = vpop.f32.mrf.mxu0
    %v1558 = vadd.f32 %v84, %v1557
    %v1559 = vpop.f32.mrf.mxu0
    %1560 = vmatprep.mubr.f32.mxu0 0.0
    %1561 = vmatmul.mubr.f32.gmra.mxu0 %v1485
    %v1562 = vpop.f32.mrf.mxu0
    %v1563 = vadd.f32 %v85, %v1562
    %v1564 = vpop.f32.mrf.mxu0
    %1565 = vdwg.mxu0
    %1566 = vrot.lane.b32.xlu0 %v269, 104
    %v1567 = vpop.permute.xlu0 %1566
    %1568 = vrot.lane.b32.xlu0 %v274, 104
    %v1569 = vpop.permute.xlu0 %1568
    %1570 = vrot.lane.b32.xlu0 %v269, 72
    %v1571 = vpop.permute.xlu0 %1570
    %1572 = vrot.lane.b32.xlu0 %v274, 72
    %v1573 = vpop.permute.xlu0 %1572
    %v1574 = vsel %vm283, %v1567, 0
    %v1576 = vsel %vm283, %v1569, 0
    %v1578 = vsel %vm283, %v1571, 0
    %v1580 = vsel %vm283, %v1573, 0
    %1582 = vmatprep.subr.mxu0 0.0
    %1583 = vmatpush1.xpose.msra.mxu0 0.0
    %1584 = vmatprep.subr.mxu0 0.0
    %1585 = vmatpush1.xpose.msra.mxu0 0.0
    %1586 = vmatprep.subr.mxu0 0.0
    %1587 = vmatpush1.xpose.msra.mxu0 0.0
    %1588 = vmatprep.subr.mxu0 0.0
    %1589 = vmatpush1.xpose.msra.mxu0 0.0
    %1590 = vmatprep.subr.mxu0 0.0
    %1591 = vmatpush1.xpose.msra.mxu0 0.0
    %1592 = vmatprep.subr.mxu0 0.0
    %1593 = vmatpush1.xpose.msra.mxu0 0.0
    %1594 = vmatprep.subr.mxu0 0.0
    %1595 = vmatpush1.xpose.msra.mxu0 0.0
    %1596 = vmatprep.subr.mxu0 0.0
    %1597 = vmatpush1.xpose.msra.mxu0 0.0
    %1598 = vmatprep.subr.mxu0 0.0
    %1599 = vmatpush1.xpose.msra.mxu0 0.0
    %1600 = vmatprep.subr.mxu0 0.0
    %1601 = vmatpush1.xpose.msra.mxu0 0.0
    %1602 = vmatprep.subr.mxu0 0.0
    %1603 = vmatpush1.xpose.msra.mxu0 0.0
    %1604 = vmatprep.subr.mxu0 0.0
    %1605 = vmatpush1.xpose.msra.mxu0 0.0
    %1606 = vmatprep.subr.mxu0 0.0
    %1607 = vmatpush1.xpose.msra.mxu0 0.0
    %1608 = vmatprep.subr.mxu0 0.0
    %1609 = vmatpush1.xpose.msra.mxu0 0.0
    %1610 = vmatprep.subr.mxu0 0.0
    %1611 = vmatpush1.xpose.msra.mxu0 %v1580
    %1612 = vmatprep.subr.mxu0 0.0
    %1613 = vmatpush1.xpose.msra.mxu0 %v1578
    %1614 = vmatprep.subr.mxu0 0.0
    %1615 = vmatpush2.xpose.msra.mxu0 0.0
    %1616 = vmatprep.subr.mxu0 0.0
    %1617 = vmatpush2.xpose.msra.mxu0 0.0
    %1618 = vmatprep.subr.mxu0 0.0
    %1619 = vmatpush2.xpose.msra.mxu0 0.0
    %1620 = vmatprep.subr.mxu0 0.0
    %1621 = vmatpush2.xpose.msra.mxu0 0.0
    %1622 = vmatprep.subr.mxu0 0.0
    %1623 = vmatpush2.xpose.msra.mxu0 0.0
    %1624 = vmatprep.subr.mxu0 0.0
    %1625 = vmatpush2.xpose.msra.mxu0 0.0
    %1626 = vmatprep.subr.mxu0 0.0
    %1627 = vmatpush2.xpose.msra.mxu0 0.0
    %1628 = vmatprep.subr.mxu0 0.0
    %1629 = vmatpush2.xpose.msra.mxu0 0.0
    %1630 = vmatprep.subr.mxu0 0.0
    %1631 = vmatpush2.xpose.msra.mxu0 0.0
    %1632 = vmatprep.subr.mxu0 0.0
    %1633 = vmatpush2.xpose.msra.mxu0 0.0
    %1634 = vmatprep.subr.mxu0 0.0
    %1635 = vmatpush2.xpose.msra.mxu0 0.0
    %1636 = vmatprep.subr.mxu0 0.0
    %1637 = vmatpush2.xpose.msra.mxu0 0.0
    %1638 = vmatprep.subr.mxu0 0.0
    %1639 = vmatpush2.xpose.msra.mxu0 0.0
    %1640 = vmatprep.subr.mxu0 0.0
    %1641 = vmatpush2.xpose.msra.mxu0 0.0
    %1642 = vmatprep.subr.mxu0 0.0
    %1643 = vmatpush2.xpose.msra.mxu0 0.0
    %1644 = vmatprep.subr.mxu0 0.0
    %1645 = vmatpush2.xpose.msra.mxu0 0.0
    %1646 = vmatprep.mubr.f32.mxu0 0.0
    %1647 = vmatmul.mubr.f32.gmra.mxu0 %v1574
    %v1648 = vpop.f32.mrf.mxu0
    %v1649 = vadd.f32 %v92, %v1648
    %v1650 = vpop.f32.mrf.mxu0
    %1651 = vmatprep.mubr.f32.mxu0 0.0
    %1652 = vmatmul.mubr.f32.gmra.mxu0 %v1576
    %v1653 = vpop.f32.mrf.mxu0
    %v1654 = vadd.f32 %v93, %v1653
    %v1655 = vpop.f32.mrf.mxu0
    %1656 = vdwg.mxu0
    %v1657 = vsel %vm456, %v1558, -inf
    %1658 = vmax.xlane.f32.xlu0 %v1657
    %v1659 = vpop.xlane.xlu0 %1658
    %v1660 = vsel %vm456, %v1563, -inf
    %1661 = vmax.xlane.f32.xlu0 %v1660
    %v1662 = vpop.xlane.xlu0 %1661
    %v1663 = vsel %vm456, %v1649, -inf
    %1664 = vmax.xlane.f32.xlu0 %v1663
    %v1665 = vpop.xlane.xlu0 %1664
    %v1666 = vsel %vm456, %v1654, -inf
    %1667 = vmax.xlane.f32.xlu0 %v1666
    %v1668 = vpop.xlane.xlu0 %1667
    %v1669 = vsub.f32 %v1558, %v1659
    %v1670 = vsub.f32 %v1563, %v1662
    %v1671 = vsub.f32 %v1649, %v1665
    %v1672 = vsub.f32 %v1654, %v1668
    %v1673 = vmul.f32 %v1669, 1.442695
    %v1674 = vpow.pop %v1673
    %v1675 = vmul.f32 %v1670, 1.442695
    %v1676 = vpow.pop %v1675
    %v1677 = vmul.f32 %v1671, 1.442695
    %v1678 = vpow.pop %v1677
    %v1679 = vmul.f32 %v1672, 1.442695
    %v1680 = vpow.pop %v1679
    %v1681 = vsel %vm456, %v1674, 0.0
    %1682 = vadd.xlane.f32.xlu0 %v1681
    %v1683 = vpop.xlane.xlu0 %1682
    %v1684 = vsel %vm456, %v1676, 0.0
    %1685 = vadd.xlane.f32.xlu0 %v1684
    %v1686 = vpop.xlane.xlu0 %1685
    %v1687 = vsel %vm456, %v1678, 0.0
    %1688 = vadd.xlane.f32.xlu0 %v1687
    %v1689 = vpop.xlane.xlu0 %1688
    %v1690 = vsel %vm456, %v1680, 0.0
    %1691 = vadd.xlane.f32.xlu0 %v1690
    %v1692 = vpop.xlane.xlu0 %1691
    %v1693 = vrcp.pop %v1683
    %v1694 = vrcp.pop %v1686
    %v1695 = vrcp.pop %v1689
    %v1696 = vrcp.pop %v1692
    %v1697 = vmul.f32 %v1674, %v1693
    %v1698 = vmul.f32 %v1676, %v1694
    %v1699 = vmul.f32 %v1678, %v1695
    %v1700 = vmul.f32 %v1680, %v1696
    %1701 = vrot.lane.b32.xlu0 %v259, 40
    %v1702 = vpop.permute.xlu0 %1701
    %1703 = vrot.lane.b32.xlu0 %v264, 40
    %v1704 = vpop.permute.xlu0 %1703
    %v1708 = vsel %vm456, %v1697, 0
    %v1711 = vsel %vm456, %v1698, 0
    %1713 = vmatprep.subr.mxu0 0.0
    %1714 = vmatpush1.msra.mxu0 0.0
    %1715 = vmatprep.subr.mxu0 0.0
    %1716 = vmatpush1.msra.mxu0 0.0
    %1717 = vmatprep.subr.mxu0 0.0
    %1718 = vmatpush1.msra.mxu0 0.0
    %1719 = vmatprep.subr.mxu0 0.0
    %1720 = vmatpush1.msra.mxu0 0.0
    %1721 = vmatprep.subr.mxu0 0.0
    %1722 = vmatpush1.msra.mxu0 0.0
    %1723 = vmatprep.subr.mxu0 0.0
    %1724 = vmatpush1.msra.mxu0 0.0
    %1725 = vmatprep.subr.mxu0 0.0
    %1726 = vmatpush1.msra.mxu0 0.0
    %1727 = vmatprep.subr.mxu0 0.0
    %1728 = vmatpush1.msra.mxu0 0.0
    %1729 = vmatprep.subr.mxu0 0.0
    %1730 = vmatpush1.msra.mxu0 0.0
    %1731 = vmatprep.subr.mxu0 0.0
    %1732 = vmatpush1.msra.mxu0 0.0
    %1733 = vmatprep.subr.mxu0 0.0
    %1734 = vmatpush1.msra.mxu0 0.0
    %1735 = vmatprep.subr.mxu0 0.0
    %1736 = vmatpush1.msra.mxu0 0.0
    %1737 = vmatprep.subr.mxu0 0.0
    %1738 = vmatpush1.msra.mxu0 0.0
    %1739 = vmatprep.subr.mxu0 0.0
    %1740 = vmatpush1.msra.mxu0 0.0
    %1741 = vmatprep.subr.mxu0 0.0
    %1742 = vmatpush1.msra.mxu0 %v1704
    %1743 = vmatprep.subr.mxu0 0.0
    %1744 = vmatpush1.msra.mxu0 %v1702
    %1745 = vmatprep.subr.mxu0 0.0
    %1746 = vmatpush2.msra.mxu0 0.0
    %1747 = vmatprep.subr.mxu0 0.0
    %1748 = vmatpush2.msra.mxu0 0.0
    %1749 = vmatprep.subr.mxu0 0.0
    %1750 = vmatpush2.msra.mxu0 0.0
    %1751 = vmatprep.subr.mxu0 0.0
    %1752 = vmatpush2.msra.mxu0 0.0
    %1753 = vmatprep.subr.mxu0 0.0
    %1754 = vmatpush2.msra.mxu0 0.0
    %1755 = vmatprep.subr.mxu0 0.0
    %1756 = vmatpush2.msra.mxu0 0.0
    %1757 = vmatprep.subr.mxu0 0.0
    %1758 = vmatpush2.msra.mxu0 0.0
    %1759 = vmatprep.subr.mxu0 0.0
    %1760 = vmatpush2.msra.mxu0 0.0
    %1761 = vmatprep.subr.mxu0 0.0
    %1762 = vmatpush2.msra.mxu0 0.0
    %1763 = vmatprep.subr.mxu0 0.0
    %1764 = vmatpush2.msra.mxu0 0.0
    %1765 = vmatprep.subr.mxu0 0.0
    %1766 = vmatpush2.msra.mxu0 0.0
    %1767 = vmatprep.subr.mxu0 0.0
    %1768 = vmatpush2.msra.mxu0 0.0
    %1769 = vmatprep.subr.mxu0 0.0
    %1770 = vmatpush2.msra.mxu0 0.0
    %1771 = vmatprep.subr.mxu0 0.0
    %1772 = vmatpush2.msra.mxu0 0.0
    %1773 = vmatprep.subr.mxu0 0.0
    %1774 = vmatpush2.msra.mxu0 0.0
    %1775 = vmatprep.subr.mxu0 0.0
    %1776 = vmatpush2.msra.mxu0 0.0
    %1777 = vmatprep.mubr.f32.mxu0 0.0
    %1778 = vmatmul.mubr.f32.gmra.mxu0 %v1708
    %v1779 = vpop.f32.mrf.mxu0
    %v1780 = vadd.f32 0.0, %v1779
    %v1781 = vpop.f32.mrf.mxu0
    %1782 = vmatprep.mubr.f32.mxu0 0.0
    %1783 = vmatmul.mubr.f32.gmra.mxu0 %v1711
    %v1784 = vpop.f32.mrf.mxu0
    %v1785 = vadd.f32 0.0, %v1784
    %v1786 = vpop.f32.mrf.mxu0
    %1787 = vdwg.mxu0
    %1788 = vrot.lane.b32.xlu0 %v269, 40
    %v1789 = vpop.permute.xlu0 %1788
    %1790 = vrot.lane.b32.xlu0 %v274, 40
    %v1791 = vpop.permute.xlu0 %1790
    %v1795 = vsel %vm456, %v1699, 0
    %v1798 = vsel %vm456, %v1700, 0
    %1800 = vmatprep.subr.mxu0 0.0
    %1801 = vmatpush1.msra.mxu0 0.0
    %1802 = vmatprep.subr.mxu0 0.0
    %1803 = vmatpush1.msra.mxu0 0.0
    %1804 = vmatprep.subr.mxu0 0.0
    %1805 = vmatpush1.msra.mxu0 0.0
    %1806 = vmatprep.subr.mxu0 0.0
    %1807 = vmatpush1.msra.mxu0 0.0
    %1808 = vmatprep.subr.mxu0 0.0
    %1809 = vmatpush1.msra.mxu0 0.0
    %1810 = vmatprep.subr.mxu0 0.0
    %1811 = vmatpush1.msra.mxu0 0.0
    %1812 = vmatprep.subr.mxu0 0.0
    %1813 = vmatpush1.msra.mxu0 0.0
    %1814 = vmatprep.subr.mxu0 0.0
    %1815 = vmatpush1.msra.mxu0 0.0
    %1816 = vmatprep.subr.mxu0 0.0
    %1817 = vmatpush1.msra.mxu0 0.0
    %1818 = vmatprep.subr.mxu0 0.0
    %1819 = vmatpush1.msra.mxu0 0.0
    %1820 = vmatprep.subr.mxu0 0.0
    %1821 = vmatpush1.msra.mxu0 0.0
    %1822 = vmatprep.subr.mxu0 0.0
    %1823 = vmatpush1.msra.mxu0 0.0
    %1824 = vmatprep.subr.mxu0 0.0
    %1825 = vmatpush1.msra.mxu0 0.0
    %1826 = vmatprep.subr.mxu0 0.0
    %1827 = vmatpush1.msra.mxu0 0.0
    %1828 = vmatprep.subr.mxu0 0.0
    %1829 = vmatpush1.msra.mxu0 %v1791
    %1830 = vmatprep.subr.mxu0 0.0
    %1831 = vmatpush1.msra.mxu0 %v1789
    %1832 = vmatprep.subr.mxu0 0.0
    %1833 = vmatpush2.msra.mxu0 0.0
    %1834 = vmatprep.subr.mxu0 0.0
    %1835 = vmatpush2.msra.mxu0 0.0
    %1836 = vmatprep.subr.mxu0 0.0
    %1837 = vmatpush2.msra.mxu0 0.0
    %1838 = vmatprep.subr.mxu0 0.0
    %1839 = vmatpush2.msra.mxu0 0.0
    %1840 = vmatprep.subr.mxu0 0.0
    %1841 = vmatpush2.msra.mxu0 0.0
    %1842 = vmatprep.subr.mxu0 0.0
    %1843 = vmatpush2.msra.mxu0 0.0
    %1844 = vmatprep.subr.mxu0 0.0
    %1845 = vmatpush2.msra.mxu0 0.0
    %1846 = vmatprep.subr.mxu0 0.0
    %1847 = vmatpush2.msra.mxu0 0.0
    %1848 = vmatprep.subr.mxu0 0.0
    %1849 = vmatpush2.msra.mxu0 0.0
    %1850 = vmatprep.subr.mxu0 0.0
    %1851 = vmatpush2.msra.mxu0 0.0
    %1852 = vmatprep.subr.mxu0 0.0
    %1853 = vmatpush2.msra.mxu0 0.0
    %1854 = vmatprep.subr.mxu0 0.0
    %1855 = vmatpush2.msra.mxu0 0.0
    %1856 = vmatprep.subr.mxu0 0.0
    %1857 = vmatpush2.msra.mxu0 0.0
    %1858 = vmatprep.subr.mxu0 0.0
    %1859 = vmatpush2.msra.mxu0 0.0
    %1860 = vmatprep.subr.mxu0 0.0
    %1861 = vmatpush2.msra.mxu0 0.0
    %1862 = vmatprep.subr.mxu0 0.0
    %1863 = vmatpush2.msra.mxu0 0.0
    %1864 = vmatprep.mubr.f32.mxu0 0.0
    %1865 = vmatmul.mubr.f32.gmra.mxu0 %v1795
    %v1866 = vpop.f32.mrf.mxu0
    %v1867 = vadd.f32 0.0, %v1866
    %v1868 = vpop.f32.mrf.mxu0
    %1869 = vmatprep.mubr.f32.mxu0 0.0
    %1870 = vmatmul.mubr.f32.gmra.mxu0 %v1798
    %v1871 = vpop.f32.mrf.mxu0
    %v1872 = vadd.f32 0.0, %v1871
    %v1873 = vpop.f32.mrf.mxu0
    %1874 = vdwg.mxu0
    %1879 = vrot.lane.b32.xlu0 %v980, 8
    %v1880 = vpop.permute.xlu0 %1879
    %1881 = vrot.lane.b32.xlu0 %v985, 8
    %v1882 = vpop.permute.xlu0 %1881
    %1883 = vrot.lane.b32.xlu0 %v1067, 8
    %v1884 = vpop.permute.xlu0 %1883
    %1885 = vrot.lane.b32.xlu0 %v1072, 8
    %v1886 = vpop.permute.xlu0 %1885
    %1895 = vrot.lane.b32.xlu0 %v1380, 16
    %v1896 = vpop.permute.xlu0 %1895
    %1897 = vrot.lane.b32.xlu0 %v1385, 16
    %v1898 = vpop.permute.xlu0 %1897
    %1899 = vrot.lane.b32.xlu0 %v1467, 16
    %v1900 = vpop.permute.xlu0 %1899
    %1901 = vrot.lane.b32.xlu0 %v1472, 16
    %v1902 = vpop.permute.xlu0 %1901
    %1911 = vrot.lane.b32.xlu0 %v1780, 24
    %v1912 = vpop.permute.xlu0 %1911
    %1913 = vrot.lane.b32.xlu0 %v1785, 24
    %v1914 = vpop.permute.xlu0 %1913
    %1915 = vrot.lane.b32.xlu0 %v1867, 24
    %v1916 = vpop.permute.xlu0 %1915
    %1917 = vrot.lane.b32.xlu0 %v1872, 24
    %v1918 = vpop.permute.xlu0 %1917
    %v1923 = vsel %vm283, %v580, %v1880
    %v1924 = vsel %vm283, %v585, %v1882
    %v1925 = vsel %vm283, %v667, %v1884
    %v1926 = vsel %vm283, %v672, %v1886
    %v1927 = vsel %vm456, %v1923, %v1896
    %v1928 = vsel %vm456, %v1924, %v1898
    %v1929 = vsel %vm456, %v1925, %v1900
    %v1930 = vsel %vm456, %v1926, %v1902
    %vm1931 = vcmask 195584
    %v1932 = vsel %vm1931, %v1927, %v1912
    %v1933 = vsel %vm1931, %v1928, %v1914
    %v1934 = vsel %vm1931, %v1929, %v1916
    %v1935 = vsel %vm1931, %v1930, %v1918
    %v1936 = vld [vmem:[#allocation5] sm:$0xff]
    %v1937 = vld [vmem:[#allocation5 + $0x8] sm:$0xff]
    %v1938 = vld [vmem:[#allocation5 + $0x10] sm:$0xff]
    %v1939 = vld [vmem:[#allocation5 + $0x18] sm:$0xff]
    %v1940 = vlaneseq
    %v1941 = vshrl.u32 %v1940, 7
    %v1942 = vsub.s32 2, %v1941
    %v1943 = vrot.slane %v99, %v1942
    %v1945 = vsel %vm94, %v1932, 0
    %v1948 = vsel %vm94, %v1933, 0
    %v1951 = vsel %vm94, %v1934, 0
    %v1954 = vsel %vm94, %v1935, 0
    %1956 = vmatprep.subr.mxu0 0.0
    %1957 = vmatpush1.msra.mxu0 0.0
    %1958 = vmatprep.subr.mxu0 0.0
    %1959 = vmatpush1.msra.mxu0 0.0
    %1960 = vmatprep.subr.mxu0 0.0
    %1961 = vmatpush1.msra.mxu0 0.0
    %1962 = vmatprep.subr.mxu0 0.0
    %1963 = vmatpush1.msra.mxu0 0.0
    %1964 = vmatprep.subr.mxu0 0.0
    %1965 = vmatpush1.msra.mxu0 0.0
    %1966 = vmatprep.subr.mxu0 0.0
    %1967 = vmatpush1.msra.mxu0 0.0
    %1968 = vmatprep.subr.mxu0 0.0
    %1969 = vmatpush1.msra.mxu0 0.0
    %1970 = vmatprep.subr.mxu0 0.0
    %1971 = vmatpush1.msra.mxu0 0.0
    %1972 = vmatprep.subr.mxu0 0.0
    %1973 = vmatpush1.msra.mxu0 0.0
    %1974 = vmatprep.subr.mxu0 0.0
    %1975 = vmatpush1.msra.mxu0 0.0
    %1976 = vmatprep.subr.mxu0 0.0
    %1977 = vmatpush1.msra.mxu0 0.0
    %1978 = vmatprep.subr.mxu0 0.0
    %1979 = vmatpush1.msra.mxu0 0.0
    %1980 = vmatprep.subr.mxu0 0.0
    %1981 = vmatpush1.msra.mxu0 %v1939
    %1982 = vmatprep.subr.mxu0 0.0
    %1983 = vmatpush1.msra.mxu0 %v1938
    %1984 = vmatprep.subr.mxu0 0.0
    %1985 = vmatpush1.msra.mxu0 %v1937
    %1986 = vmatprep.subr.mxu0 0.0
    %1987 = vmatpush1.msra.mxu0 %v1936
    %1988 = vmatprep.subr.mxu0 0.0
    %1989 = vmatpush2.msra.mxu0 0.0
    %1990 = vmatprep.subr.mxu0 0.0
    %1991 = vmatpush2.msra.mxu0 0.0
    %1992 = vmatprep.subr.mxu0 0.0
    %1993 = vmatpush2.msra.mxu0 0.0
    %1994 = vmatprep.subr.mxu0 0.0
    %1995 = vmatpush2.msra.mxu0 0.0
    %1996 = vmatprep.subr.mxu0 0.0
    %1997 = vmatpush2.msra.mxu0 0.0
    %1998 = vmatprep.subr.mxu0 0.0
    %1999 = vmatpush2.msra.mxu0 0.0
    %2000 = vmatprep.subr.mxu0 0.0
    %2001 = vmatpush2.msra.mxu0 0.0
    %2002 = vmatprep.subr.mxu0 0.0
    %2003 = vmatpush2.msra.mxu0 0.0
    %2004 = vmatprep.subr.mxu0 0.0
    %2005 = vmatpush2.msra.mxu0 0.0
    %2006 = vmatprep.subr.mxu0 0.0
    %2007 = vmatpush2.msra.mxu0 0.0
    %2008 = vmatprep.subr.mxu0 0.0
    %2009 = vmatpush2.msra.mxu0 0.0
    %2010 = vmatprep.subr.mxu0 0.0
    %2011 = vmatpush2.msra.mxu0 0.0
    %2012 = vmatprep.subr.mxu0 0.0
    %2013 = vmatpush2.msra.mxu0 0.0
    %2014 = vmatprep.subr.mxu0 0.0
    %2015 = vmatpush2.msra.mxu0 0.0
    %2016 = vmatprep.subr.mxu0 0.0
    %2017 = vmatpush2.msra.mxu0 0.0
    %2018 = vmatprep.subr.mxu0 0.0
    %2019 = vmatpush2.msra.mxu0 0.0
    %2020 = vmatprep.mubr.f32.mxu0 0.0
    %2021 = vmatmul.mubr.f32.gmra.mxu0 %v1945
    %v2022 = vpop.f32.mrf.mxu0
    %v2023 = vadd.f32 %v1943, %v2022
    %v2024 = vpop.f32.mrf.mxu0
    %2025 = vmatprep.mubr.f32.mxu0 0.0
    %2026 = vmatmul.mubr.f32.gmra.mxu0 %v1948
    %v2027 = vpop.f32.mrf.mxu0
    %v2028 = vadd.f32 %v1943, %v2027
    %v2029 = vpop.f32.mrf.mxu0
    %2030 = vmatprep.mubr.f32.mxu0 0.0
    %2031 = vmatmul.mubr.f32.gmra.mxu0 %v1951
    %v2032 = vpop.f32.mrf.mxu0
    %v2033 = vadd.f32 %v1943, %v2032
    %v2034 = vpop.f32.mrf.mxu0
    %2035 = vmatprep.mubr.f32.mxu0 0.0
    %2036 = vmatmul.mubr.f32.gmra.mxu0 %v1954
    %v2037 = vpop.f32.mrf.mxu0
    %v2038 = vadd.f32 %v1943, %v2037
    %v2039 = vpop.f32.mrf.mxu0
    %2040 = vdwg.mxu0
    %v2041 = vadd.f32 %v74, %v2023
    %v2042 = vadd.f32 %v75, %v2028
    %v2043 = vadd.f32 %v76, %v2033
    %v2044 = vadd.f32 %v77, %v2038
    %v2045 = vsel %vm94, %v2041, 0.0
    %2046 = vadd.xlane.f32.xlu0 %v2045
    %v2047 = vpop.xlane.xlu0 %2046
    %v2048 = vsel %vm94, %v2042, 0.0
    %2049 = vadd.xlane.f32.xlu0 %v2048
    %v2050 = vpop.xlane.xlu0 %2049
    %v2051 = vsel %vm94, %v2043, 0.0
    %2052 = vadd.xlane.f32.xlu0 %v2051
    %v2053 = vpop.xlane.xlu0 %2052
    %v2054 = vsel %vm94, %v2044, 0.0
    %2055 = vadd.xlane.f32.xlu0 %v2054
    %v2056 = vpop.xlane.xlu0 %2055
    %v2057 = vmul.f32 %v2047, %v112
    %v2058 = vmul.f32 %v2050, %v112
    %v2059 = vmul.f32 %v2053, %v112
    %v2060 = vmul.f32 %v2056, %v112
    %v2061 = vsub.f32 %v2041, %v2057
    %v2062 = vsub.f32 %v2042, %v2058
    %v2063 = vsub.f32 %v2043, %v2059
    %v2064 = vsub.f32 %v2044, %v2060
    %v2065 = vmul.f32 %v2061, %v2061
    %v2066 = vmul.f32 %v2062, %v2062
    %v2067 = vmul.f32 %v2063, %v2063
    %v2068 = vmul.f32 %v2064, %v2064
    %v2069 = vsel %vm94, %v2065, 0.0
    %2070 = vadd.xlane.f32.xlu0 %v2069
    %v2071 = vpop.xlane.xlu0 %2070
    %v2072 = vsel %vm94, %v2066, 0.0
    %2073 = vadd.xlane.f32.xlu0 %v2072
    %v2074 = vpop.xlane.xlu0 %2073
    %v2075 = vsel %vm94, %v2067, 0.0
    %2076 = vadd.xlane.f32.xlu0 %v2075
    %v2077 = vpop.xlane.xlu0 %2076
    %v2078 = vsel %vm94, %v2068, 0.0
    %2079 = vadd.xlane.f32.xlu0 %v2078
    %v2080 = vpop.xlane.xlu0 %2079
    %v2081 = vmul.f32 %v2071, %v112
    %v2082 = vmul.f32 %v2074, %v112
    %v2083 = vmul.f32 %v2077, %v112
    %v2084 = vmul.f32 %v2080, %v112
    %v2085 = vadd.f32 %v2081, 1e-05
    %v2086 = vadd.f32 %v2082, 1e-05
    %v2087 = vadd.f32 %v2083, 1e-05
    %v2088 = vadd.f32 %v2084, 1e-05
    %v2089 = vrsqrt.pop %v2085
    %v2090 = vrsqrt.pop %v2086
    %v2091 = vrsqrt.pop %v2087
    %v2092 = vrsqrt.pop %v2088
    %v2093 = vmul.f32 %v2061, %v2089
    %v2094 = vmul.f32 %v2062, %v2090
    %v2095 = vmul.f32 %v2063, %v2091
    %v2096 = vmul.f32 %v2064, %v2092
    %v2097 = vlaneseq
    %v2098 = vshrl.u32 %v2097, 7
    %v2099 = vsub.s32 3, %v2098
    %v2100 = vrot.slane %v99, %v2099
    %v2101 = vmul.f32 %v2093, %v2100
    %v2102 = vmul.f32 %v2094, %v2100
    %v2103 = vmul.f32 %v2095, %v2100
    %v2104 = vmul.f32 %v2096, %v2100
    %v2105 = vlaneseq
    %v2106 = vshrl.u32 %v2105, 7
    %v2107 = vsub.s32 4, %v2106
    %v2108 = vrot.slane %v99, %v2107
    %v2109 = vadd.f32 %v2101, %v2108
    %v2110 = vadd.f32 %v2102, %v2108
    %v2111 = vadd.f32 %v2103, %v2108
    %v2112 = vadd.f32 %v2104, %v2108
    %v2113 = vld [vmem:[#allocation7] sm:$0xff]
    %v2114 = vld [vmem:[#allocation7 + $0x8] sm:$0xff]
    %v2115 = vld [vmem:[#allocation7 + $0x10] sm:$0xff]
    %v2116 = vld [vmem:[#allocation7 + $0x18] sm:$0xff]
    %v2117 = vld [vmem:[%s7] sm:$0x1]
    %v2119 = vlaneseq
    %v2120 = vshrl.u32 %v2119, 7
    %v2121 = vsub.s32 0, %v2120
    %v2122 = vrot.slane %v2117, %v2121
    %v2125 = vsel %vm94, %v2109, 0
    %v2128 = vsel %vm94, %v2110, 0
    %v2131 = vsel %vm94, %v2111, 0
    %v2134 = vsel %vm94, %v2112, 0
    %2136 = vmatprep.subr.mxu0 0.0
    %2137 = vmatpush1.msra.mxu0 0.0
    %2138 = vmatprep.subr.mxu0 0.0
    %2139 = vmatpush1.msra.mxu0 0.0
    %2140 = vmatprep.subr.mxu0 0.0
    %2141 = vmatpush1.msra.mxu0 0.0
    %2142 = vmatprep.subr.mxu0 0.0
    %2143 = vmatpush1.msra.mxu0 0.0
    %2144 = vmatprep.subr.mxu0 0.0
    %2145 = vmatpush1.msra.mxu0 0.0
    %2146 = vmatprep.subr.mxu0 0.0
    %2147 = vmatpush1.msra.mxu0 0.0
    %2148 = vmatprep.subr.mxu0 0.0
    %2149 = vmatpush1.msra.mxu0 0.0
    %2150 = vmatprep.subr.mxu0 0.0
    %2151 = vmatpush1.msra.mxu0 0.0
    %2152 = vmatprep.subr.mxu0 0.0
    %2153 = vmatpush1.msra.mxu0 0.0
    %2154 = vmatprep.subr.mxu0 0.0
    %2155 = vmatpush1.msra.mxu0 0.0
    %2156 = vmatprep.subr.mxu0 0.0
    %2157 = vmatpush1.msra.mxu0 0.0
    %2158 = vmatprep.subr.mxu0 0.0
    %2159 = vmatpush1.msra.mxu0 0.0
    %2160 = vmatprep.subr.mxu0 0.0
    %2161 = vmatpush1.msra.mxu0 %v2116
    %2162 = vmatprep.subr.mxu0 0.0
    %2163 = vmatpush1.msra.mxu0 %v2115
    %2164 = vmatprep.subr.mxu0 0.0
    %2165 = vmatpush1.msra.mxu0 %v2114
    %2166 = vmatprep.subr.mxu0 0.0
    %2167 = vmatpush1.msra.mxu0 %v2113
    %2168 = vmatprep.subr.mxu0 0.0
    %2169 = vmatpush2.msra.mxu0 0.0
    %2170 = vmatprep.subr.mxu0 0.0
    %2171 = vmatpush2.msra.mxu0 0.0
    %2172 = vmatprep.subr.mxu0 0.0
    %2173 = vmatpush2.msra.mxu0 0.0
    %2174 = vmatprep.subr.mxu0 0.0
    %2175 = vmatpush2.msra.mxu0 0.0
    %2176 = vmatprep.subr.mxu0 0.0
    %2177 = vmatpush2.msra.mxu0 0.0
    %2178 = vmatprep.subr.mxu0 0.0
    %2179 = vmatpush2.msra.mxu0 0.0
    %2180 = vmatprep.subr.mxu0 0.0
    %2181 = vmatpush2.msra.mxu0 0.0
    %2182 = vmatprep.subr.mxu0 0.0
    %2183 = vmatpush2.msra.mxu0 0.0
    %2184 = vmatprep.subr.mxu0 0.0
    %2185 = vmatpush2.msra.mxu0 0.0
    %2186 = vmatprep.subr.mxu0 0.0
    %2187 = vmatpush2.msra.mxu0 0.0
    %2188 = vmatprep.subr.mxu0 0.0
    %2189 = vmatpush2.msra.mxu0 0.0
    %2190 = vmatprep.subr.mxu0 0.0
    %2191 = vmatpush2.msra.mxu0 0.0
    %2192 = vmatprep.subr.mxu0 0.0
    %2193 = vmatpush2.msra.mxu0 0.0
    %2194 = vmatprep.subr.mxu0 0.0
    %2195 = vmatpush2.msra.mxu0 0.0
    %2196 = vmatprep.subr.mxu0 0.0
    %2197 = vmatpush2.msra.mxu0 0.0
    %2198 = vmatprep.subr.mxu0 0.0
    %2199 = vmatpush2.msra.mxu0 0.0
    %2200 = vmatprep.mubr.f32.mxu0 0.0
    %2201 = vmatmul.mubr.f32.gmra.mxu0 %v2125
    %v2202 = vpop.f32.mrf.mxu0
    %v2203 = vadd.f32 %v2122, %v2202
    %v2204 = vpop.f32.mrf.mxu0
    %2205 = vmatprep.mubr.f32.mxu0 0.0
    %2206 = vmatmul.mubr.f32.gmra.mxu0 %v2128
    %v2207 = vpop.f32.mrf.mxu0
    %v2208 = vadd.f32 %v2122, %v2207
    %v2209 = vpop.f32.mrf.mxu0
    %2210 = vmatprep.mubr.f32.mxu0 0.0
    %2211 = vmatmul.mubr.f32.gmra.mxu0 %v2131
    %v2212 = vpop.f32.mrf.mxu0
    %v2213 = vadd.f32 %v2122, %v2212
    %v2214 = vpop.f32.mrf.mxu0
    %2215 = vmatprep.mubr.f32.mxu0 0.0
    %2216 = vmatmul.mubr.f32.gmra.mxu0 %v2134
    %v2217 = vpop.f32.mrf.mxu0
    %v2218 = vadd.f32 %v2122, %v2217
    %v2219 = vpop.f32.mrf.mxu0
    %2220 = vdwg.mxu0
    %v2221 = vmax.f32 %v2203, 0.0
    %v2222 = vmax.f32 %v2208, 0.0
    %v2223 = vmax.f32 %v2213, 0.0
    %v2224 = vmax.f32 %v2218, 0.0
    %v2225 = vld [vmem:[%s8] sm:$0xff]
    %v2226 = vld [vmem:[%s8 + $0x8] sm:$0xff]
    %v2227 = vld [vmem:[%s8 + $0x10] sm:$0xff]
    %v2228 = vld [vmem:[%s8 + $0x18] sm:$0xff]
    %v2229 = vld [vmem:[%s8 + $0x20] sm:$0xff]
    %v2230 = vld [vmem:[%s8 + $0x28] sm:$0xff]
    %v2231 = vld [vmem:[%s8 + $0x30] sm:$0xff]
    %v2232 = vld [vmem:[%s8 + $0x38] sm:$0xff]
    %v2233 = vlaneseq
    %v2234 = vshrl.u32 %v2233, 7
    %v2235 = vsub.s32 5, %v2234
    %v2236 = vrot.slane %v99, %v2235
    %vm2237 = vcmask 523264
    %v2239 = vsel %vm2237, %v2221, 0
    %v2242 = vsel %vm2237, %v2222, 0
    %v2245 = vsel %vm2237, %v2223, 0
    %v2248 = vsel %vm2237, %v2224, 0
    %2250 = vmatprep.subr.mxu0 0.0
    %2251 = vmatpush1.msra.mxu0 0.0
    %2252 = vmatprep.subr.mxu0 0.0
    %2253 = vmatpush1.msra.mxu0 0.0
    %2254 = vmatprep.subr.mxu0 0.0
    %2255 = vmatpush1.msra.mxu0 0.0
    %2256 = vmatprep.subr.mxu0 0.0
    %2257 = vmatpush1.msra.mxu0 0.0
    %2258 = vmatprep.subr.mxu0 0.0
    %2259 = vmatpush1.msra.mxu0 0.0
    %2260 = vmatprep.subr.mxu0 0.0
    %2261 = vmatpush1.msra.mxu0 0.0
    %2262 = vmatprep.subr.mxu0 0.0
    %2263 = vmatpush1.msra.mxu0 0.0
    %2264 = vmatprep.subr.mxu0 0.0
    %2265 = vmatpush1.msra.mxu0 0.0
    %2266 = vmatprep.subr.mxu0 0.0
    %2267 = vmatpush1.msra.mxu0 %v2232
    %2268 = vmatprep.subr.mxu0 0.0
    %2269 = vmatpush1.msra.mxu0 %v2231
    %2270 = vmatprep.subr.mxu0 0.0
    %2271 = vmatpush1.msra.mxu0 %v2230
    %2272 = vmatprep.subr.mxu0 0.0
    %2273 = vmatpush1.msra.mxu0 %v2229
    %2274 = vmatprep.subr.mxu0 0.0
    %2275 = vmatpush1.msra.mxu0 %v2228
    %2276 = vmatprep.subr.mxu0 0.0
    %2277 = vmatpush1.msra.mxu0 %v2227
    %2278 = vmatprep.subr.mxu0 0.0
    %2279 = vmatpush1.msra.mxu0 %v2226
    %2280 = vmatprep.subr.mxu0 0.0
    %2281 = vmatpush1.msra.mxu0 %v2225
    %2282 = vmatprep.subr.mxu0 0.0
    %2283 = vmatpush2.msra.mxu0 0.0
    %2284 = vmatprep.subr.mxu0 0.0
    %2285 = vmatpush2.msra.mxu0 0.0
    %2286 = vmatprep.subr.mxu0 0.0
    %2287 = vmatpush2.msra.mxu0 0.0
    %2288 = vmatprep.subr.mxu0 0.0
    %2289 = vmatpush2.msra.mxu0 0.0
    %2290 = vmatprep.subr.mxu0 0.0
    %2291 = vmatpush2.msra.mxu0 0.0
    %2292 = vmatprep.subr.mxu0 0.0
    %2293 = vmatpush2.msra.mxu0 0.0
    %2294 = vmatprep.subr.mxu0 0.0
    %2295 = vmatpush2.msra.mxu0 0.0
    %2296 = vmatprep.subr.mxu0 0.0
    %2297 = vmatpush2.msra.mxu0 0.0
    %2298 = vmatprep.subr.mxu0 0.0
    %2299 = vmatpush2.msra.mxu0 0.0
    %2300 = vmatprep.subr.mxu0 0.0
    %2301 = vmatpush2.msra.mxu0 0.0
    %2302 = vmatprep.subr.mxu0 0.0
    %2303 = vmatpush2.msra.mxu0 0.0
    %2304 = vmatprep.subr.mxu0 0.0
    %2305 = vmatpush2.msra.mxu0 0.0
    %2306 = vmatprep.subr.mxu0 0.0
    %2307 = vmatpush2.msra.mxu0 0.0
    %2308 = vmatprep.subr.mxu0 0.0
    %2309 = vmatpush2.msra.mxu0 0.0
    %2310 = vmatprep.subr.mxu0 0.0
    %2311 = vmatpush2.msra.mxu0 0.0
    %2312 = vmatprep.subr.mxu0 0.0
    %2313 = vmatpush2.msra.mxu0 0.0
    %2314 = vmatprep.mubr.f32.mxu0 0.0
    %2315 = vmatmul.mubr.f32.gmra.mxu0 %v2239
    %v2316 = vpop.f32.mrf.mxu0
    %v2317 = vadd.f32 %v2236, %v2316
    %v2318 = vpop.f32.mrf.mxu0
    %2319 = vmatprep.mubr.f32.mxu0 0.0
    %2320 = vmatmul.mubr.f32.gmra.mxu0 %v2242
    %v2321 = vpop.f32.mrf.mxu0
    %v2322 = vadd.f32 %v2236, %v2321
    %v2323 = vpop.f32.mrf.mxu0
    %2324 = vmatprep.mubr.f32.mxu0 0.0
    %2325 = vmatmul.mubr.f32.gmra.mxu0 %v2245
    %v2326 = vpop.f32.mrf.mxu0
    %v2327 = vadd.f32 %v2236, %v2326
    %v2328 = vpop.f32.mrf.mxu0
    %2329 = vmatprep.mubr.f32.mxu0 0.0
    %2330 = vmatmul.mubr.f32.gmra.mxu0 %v2248
    %v2331 = vpop.f32.mrf.mxu0
    %v2332 = vadd.f32 %v2236, %v2331
    %v2333 = vpop.f32.mrf.mxu0
    %2334 = vdwg.mxu0
    %v2335 = vadd.f32 %v2041, %v2317
    %v2336 = vadd.f32 %v2042, %v2322
    %v2337 = vadd.f32 %v2043, %v2327
    %v2338 = vadd.f32 %v2044, %v2332
    %s2339 = scalar_lea.vmem [#allocation8], 32
    %2340 = vst.msk [vmem:[%s2339] sm:$0xff] %vm94, %v2335
    %2341 = vst.msk [vmem:[%s2339 + $0x8] sm:$0xff] %vm94, %v2336
    %2342 = vst.msk [vmem:[%s2339 + $0x10] sm:$0xff] %vm94, %v2337
    %2343 = vst.msk [vmem:[%s2339 + $0x18] sm:$0xff] %vm94, %v2338
    %s2344 = scalar_lea.vmem %s5, 8
    %v2345 = vld [vmem:[%s2344] sm:$0x3f]
    %v2346 = vsel %vm94, %v2335, 0.0
    %2347 = vadd.xlane.f32.xlu0 %v2346
    %v2348 = vpop.xlane.xlu0 %2347
    %v2349 = vsel %vm94, %v2336, 0.0
    %2350 = vadd.xlane.f32.xlu0 %v2349
    %v2351 = vpop.xlane.xlu0 %2350
    %v2352 = vsel %vm94, %v2337, 0.0
    %2353 = vadd.xlane.f32.xlu0 %v2352
    %v2354 = vpop.xlane.xlu0 %2353
    %v2355 = vsel %vm94, %v2338, 0.0
    %2356 = vadd.xlane.f32.xlu0 %v2355
    %v2357 = vpop.xlane.xlu0 %2356
    %v2358 = vmul.f32 %v2348, %v112
    %v2359 = vmul.f32 %v2351, %v112
    %v2360 = vmul.f32 %v2354, %v112
    %v2361 = vmul.f32 %v2357, %v112
    %v2362 = vsub.f32 %v2335, %v2358
    %v2363 = vsub.f32 %v2336, %v2359
    %v2364 = vsub.f32 %v2337, %v2360
    %v2365 = vsub.f32 %v2338, %v2361
    %v2366 = vmul.f32 %v2362, %v2362
    %v2367 = vmul.f32 %v2363, %v2363
    %v2368 = vmul.f32 %v2364, %v2364
    %v2369 = vmul.f32 %v2365, %v2365
    %v2370 = vsel %vm94, %v2366, 0.0
    %2371 = vadd.xlane.f32.xlu0 %v2370
    %v2372 = vpop.xlane.xlu0 %2371
    %v2373 = vsel %vm94, %v2367, 0.0
    %2374 = vadd.xlane.f32.xlu0 %v2373
    %v2375 = vpop.xlane.xlu0 %2374
    %v2376 = vsel %vm94, %v2368, 0.0
    %2377 = vadd.xlane.f32.xlu0 %v2376
    %v2378 = vpop.xlane.xlu0 %2377
    %v2379 = vsel %vm94, %v2369, 0.0
    %2380 = vadd.xlane.f32.xlu0 %v2379
    %v2381 = vpop.xlane.xlu0 %2380
    %v2382 = vmul.f32 %v2372, %v112
    %v2383 = vmul.f32 %v2375, %v112
    %v2384 = vmul.f32 %v2378, %v112
    %v2385 = vmul.f32 %v2381, %v112
    %v2386 = vadd.f32 %v2382, 1e-05
    %v2387 = vadd.f32 %v2383, 1e-05
    %v2388 = vadd.f32 %v2384, 1e-05
    %v2389 = vadd.f32 %v2385, 1e-05
    %v2390 = vrsqrt.pop %v2386
    %v2391 = vrsqrt.pop %v2387
    %v2392 = vrsqrt.pop %v2388
    %v2393 = vrsqrt.pop %v2389
    %v2394 = vmul.f32 %v2362, %v2390
    %v2395 = vmul.f32 %v2363, %v2391
    %v2396 = vmul.f32 %v2364, %v2392
    %v2397 = vmul.f32 %v2365, %v2393
    %v2398 = vlaneseq
    %v2399 = vshrl.u32 %v2398, 7
    %v2400 = vsub.s32 0, %v2399
    %v2401 = vrot.slane %v2345, %v2400
    %v2402 = vmul.f32 %v2394, %v2401
    %v2403 = vmul.f32 %v2395, %v2401
    %v2404 = vmul.f32 %v2396, %v2401
    %v2405 = vmul.f32 %v2397, %v2401
    %v2406 = vlaneseq
    %v2407 = vshrl.u32 %v2406, 7
    %v2408 = vsub.s32 1, %v2407
    %v2409 = vrot.slane %v2345, %v2408
    %v2410 = vadd.f32 %v2402, %v2409
    %v2411 = vadd.f32 %v2403, %v2409
    %v2412 = vadd.f32 %v2404, %v2409
    %v2413 = vadd.f32 %v2405, %v2409
    %s2414 = scalar_lea.vmem %s2, 32
    %v2415 = vld [vmem:[%s2414] sm:$0xff]
    %v2416 = vld [vmem:[%s2414 + $0x8] sm:$0xff]
    %v2417 = vld [vmem:[%s2414 + $0x10] sm:$0xff]
    %v2418 = vld [vmem:[%s2414 + $0x18] sm:$0xff]
    %s2419 = scalar_lea.vmem %s3, 1
    %v2420 = vld [vmem:[%s2419] sm:$0x1]
    %v2422 = vlaneseq
    %v2423 = vshrl.u32 %v2422, 7
    %v2424 = vsub.s32 0, %v2423
    %v2425 = vrot.slane %v2420, %v2424
    %v2428 = vsel %vm94, %v2410, 0
    %v2431 = vsel %vm94, %v2411, 0
    %v2434 = vsel %vm94, %v2412, 0
    %v2437 = vsel %vm94, %v2413, 0
    %2439 = vmatprep.subr.mxu0 0.0
    %2440 = vmatpush1.msra.mxu0 0.0
    %2441 = vmatprep.subr.mxu0 0.0
    %2442 = vmatpush1.msra.mxu0 0.0
    %2443 = vmatprep.subr.mxu0 0.0
    %2444 = vmatpush1.msra.mxu0 0.0
    %2445 = vmatprep.subr.mxu0 0.0
    %2446 = vmatpush1.msra.mxu0 0.0
    %2447 = vmatprep.subr.mxu0 0.0
    %2448 = vmatpush1.msra.mxu0 0.0
    %2449 = vmatprep.subr.mxu0 0.0
    %2450 = vmatpush1.msra.mxu0 0.0
    %2451 = vmatprep.subr.mxu0 0.0
    %2452 = vmatpush1.msra.mxu0 0.0
    %2453 = vmatprep.subr.mxu0 0.0
    %2454 = vmatpush1.msra.mxu0 0.0
    %2455 = vmatprep.subr.mxu0 0.0
    %2456 = vmatpush1.msra.mxu0 0.0
    %2457 = vmatprep.subr.mxu0 0.0
    %2458 = vmatpush1.msra.mxu0 0.0
    %2459 = vmatprep.subr.mxu0 0.0
    %2460 = vmatpush1.msra.mxu0 0.0
    %2461 = vmatprep.subr.mxu0 0.0
    %2462 = vmatpush1.msra.mxu0 0.0
    %2463 = vmatprep.subr.mxu0 0.0
    %2464 = vmatpush1.msra.mxu0 %v2418
    %2465 = vmatprep.subr.mxu0 0.0
    %2466 = vmatpush1.msra.mxu0 %v2417
    %2467 = vmatprep.subr.mxu0 0.0
    %2468 = vmatpush1.msra.mxu0 %v2416
    %2469 = vmatprep.subr.mxu0 0.0
    %2470 = vmatpush1.msra.mxu0 %v2415
    %2471 = vmatprep.subr.mxu0 0.0
    %2472 = vmatpush2.msra.mxu0 0.0
    %2473 = vmatprep.subr.mxu0 0.0
    %2474 = vmatpush2.msra.mxu0 0.0
    %2475 = vmatprep.subr.mxu0 0.0
    %2476 = vmatpush2.msra.mxu0 0.0
    %2477 = vmatprep.subr.mxu0 0.0
    %2478 = vmatpush2.msra.mxu0 0.0
    %2479 = vmatprep.subr.mxu0 0.0
    %2480 = vmatpush2.msra.mxu0 0.0
    %2481 = vmatprep.subr.mxu0 0.0
    %2482 = vmatpush2.msra.mxu0 0.0
    %2483 = vmatprep.subr.mxu0 0.0
    %2484 = vmatpush2.msra.mxu0 0.0
    %2485 = vmatprep.subr.mxu0 0.0
    %2486 = vmatpush2.msra.mxu0 0.0
    %2487 = vmatprep.subr.mxu0 0.0
    %2488 = vmatpush2.msra.mxu0 0.0
    %2489 = vmatprep.subr.mxu0 0.0
    %2490 = vmatpush2.msra.mxu0 0.0
    %2491 = vmatprep.subr.mxu0 0.0
    %2492 = vmatpush2.msra.mxu0 0.0
    %2493 = vmatprep.subr.mxu0 0.0
    %2494 = vmatpush2.msra.mxu0 0.0
    %2495 = vmatprep.subr.mxu0 0.0
    %2496 = vmatpush2.msra.mxu0 0.0
    %2497 = vmatprep.subr.mxu0 0.0
    %2498 = vmatpush2.msra.mxu0 0.0
    %2499 = vmatprep.subr.mxu0 0.0
    %2500 = vmatpush2.msra.mxu0 0.0
    %2501 = vmatprep.subr.mxu0 0.0
    %2502 = vmatpush2.msra.mxu0 0.0
    %2503 = vmatprep.mubr.f32.mxu0 0.0
    %2504 = vmatmul.mubr.f32.gmra.mxu0 %v2428
    %v2505 = vpop.f32.mrf.mxu0
    %v2506 = vadd.f32 %v2425, %v2505
    %v2507 = vpop.f32.mrf.mxu0
    %2508 = vmatprep.mubr.f32.mxu0 0.0
    %2509 = vmatmul.mubr.f32.gmra.mxu0 %v2431
    %v2510 = vpop.f32.mrf.mxu0
    %v2511 = vadd.f32 %v2425, %v2510
    %v2512 = vpop.f32.mrf.mxu0
    %2513 = vmatprep.mubr.f32.mxu0 0.0
    %2514 = vmatmul.mubr.f32.gmra.mxu0 %v2434
    %v2515 = vpop.f32.mrf.mxu0
    %v2516 = vadd.f32 %v2425, %v2515
    %v2517 = vpop.f32.mrf.mxu0
    %2518 = vmatprep.mubr.f32.mxu0 0.0
    %2519 = vmatmul.mubr.f32.gmra.mxu0 %v2437
    %v2520 = vpop.f32.mrf.mxu0
    %v2521 = vadd.f32 %v2425, %v2520
    %v2522 = vpop.f32.mrf.mxu0
    %2523 = vdwg.mxu0
    %2526 = vrot.lane.b32.xlu0 %v2506, 96
    %v2527 = vpop.permute.xlu0 %2526
    %2528 = vrot.lane.b32.xlu0 %v2511, 96
    %v2529 = vpop.permute.xlu0 %2528
    %v2530 = vsel %vm283, %v2506, 0
    %v2532 = vsel %vm283, %v2511, 0
    %v2534 = vsel %vm283, %v2527, 0
    %v2536 = vsel %vm283, %v2529, 0
    %2538 = vmatprep.subr.mxu0 0.0
    %2539 = vmatpush1.xpose.msra.mxu0 0.0
    %2540 = vmatprep.subr.mxu0 0.0
    %2541 = vmatpush1.xpose.msra.mxu0 0.0
    %2542 = vmatprep.subr.mxu0 0.0
    %2543 = vmatpush1.xpose.msra.mxu0 0.0
    %2544 = vmatprep.subr.mxu0 0.0
    %2545 = vmatpush1.xpose.msra.mxu0 0.0
    %2546 = vmatprep.subr.mxu0 0.0
    %2547 = vmatpush1.xpose.msra.mxu0 0.0
    %2548 = vmatprep.subr.mxu0 0.0
    %2549 = vmatpush1.xpose.msra.mxu0 0.0
    %2550 = vmatprep.subr.mxu0 0.0
    %2551 = vmatpush1.xpose.msra.mxu0 0.0
    %2552 = vmatprep.subr.mxu0 0.0
    %2553 = vmatpush1.xpose.msra.mxu0 0.0
    %2554 = vmatprep.subr.mxu0 0.0
    %2555 = vmatpush1.xpose.msra.mxu0 0.0
    %2556 = vmatprep.subr.mxu0 0.0
    %2557 = vmatpush1.xpose.msra.mxu0 0.0
    %2558 = vmatprep.subr.mxu0 0.0
    %2559 = vmatpush1.xpose.msra.mxu0 0.0
    %2560 = vmatprep.subr.mxu0 0.0
    %2561 = vmatpush1.xpose.msra.mxu0 0.0
    %2562 = vmatprep.subr.mxu0 0.0
    %2563 = vmatpush1.xpose.msra.mxu0 0.0
    %2564 = vmatprep.subr.mxu0 0.0
    %2565 = vmatpush1.xpose.msra.mxu0 0.0
    %2566 = vmatprep.subr.mxu0 0.0
    %2567 = vmatpush1.xpose.msra.mxu0 %v2536
    %2568 = vmatprep.subr.mxu0 0.0
    %2569 = vmatpush1.xpose.msra.mxu0 %v2534
    %2570 = vmatprep.subr.mxu0 0.0
    %2571 = vmatpush2.xpose.msra.mxu0 0.0
    %2572 = vmatprep.subr.mxu0 0.0
    %2573 = vmatpush2.xpose.msra.mxu0 0.0
    %2574 = vmatprep.subr.mxu0 0.0
    %2575 = vmatpush2.xpose.msra.mxu0 0.0
    %2576 = vmatprep.subr.mxu0 0.0
    %2577 = vmatpush2.xpose.msra.mxu0 0.0
    %2578 = vmatprep.subr.mxu0 0.0
    %2579 = vmatpush2.xpose.msra.mxu0 0.0
    %2580 = vmatprep.subr.mxu0 0.0
    %2581 = vmatpush2.xpose.msra.mxu0 0.0
    %2582 = vmatprep.subr.mxu0 0.0
    %2583 = vmatpush2.xpose.msra.mxu0 0.0
    %2584 = vmatprep.subr.mxu0 0.0
    %2585 = vmatpush2.xpose.msra.mxu0 0.0
    %2586 = vmatprep.subr.mxu0 0.0
    %2587 = vmatpush2.xpose.msra.mxu0 0.0
    %2588 = vmatprep.subr.mxu0 0.0
    %2589 = vmatpush2.xpose.msra.mxu0 0.0
    %2590 = vmatprep.subr.mxu0 0.0
    %2591 = vmatpush2.xpose.msra.mxu0 0.0
    %2592 = vmatprep.subr.mxu0 0.0
    %2593 = vmatpush2.xpose.msra.mxu0 0.0
    %2594 = vmatprep.subr.mxu0 0.0
    %2595 = vmatpush2.xpose.msra.mxu0 0.0
    %2596 = vmatprep.subr.mxu0 0.0
    %2597 = vmatpush2.xpose.msra.mxu0 0.0
    %2598 = vmatprep.subr.mxu0 0.0
    %2599 = vmatpush2.xpose.msra.mxu0 0.0
    %2600 = vmatprep.subr.mxu0 0.0
    %2601 = vmatpush2.xpose.msra.mxu0 0.0
    %2602 = vmatprep.mubr.f32.mxu0 0.0
    %2603 = vmatmul.mubr.f32.gmra.mxu0 %v2530
    %v2604 = vpop.f32.mrf.mxu0
    %v2605 = vadd.f32 %v78, %v2604
    %v2606 = vpop.f32.mrf.mxu0
    %2607 = vmatprep.mubr.f32.mxu0 0.0
    %2608 = vmatmul.mubr.f32.gmra.mxu0 %v2532
    %v2609 = vpop.f32.mrf.mxu0
    %v2610 = vadd.f32 %v79, %v2609
    %v2611 = vpop.f32.mrf.mxu0
    %2612 = vdwg.mxu0
    %2615 = vrot.lane.b32.xlu0 %v2516, 96
    %v2616 = vpop.permute.xlu0 %2615
    %2617 = vrot.lane.b32.xlu0 %v2521, 96
    %v2618 = vpop.permute.xlu0 %2617
    %v2619 = vsel %vm283, %v2516, 0
    %v2621 = vsel %vm283, %v2521, 0
    %v2623 = vsel %vm283, %v2616, 0
    %v2625 = vsel %vm283, %v2618, 0
    %2627 = vmatprep.subr.mxu0 0.0
    %2628 = vmatpush1.xpose.msra.mxu0 0.0
    %2629 = vmatprep.subr.mxu0 0.0
    %2630 = vmatpush1.xpose.msra.mxu0 0.0
    %2631 = vmatprep.subr.mxu0 0.0
    %2632 = vmatpush1.xpose.msra.mxu0 0.0
    %2633 = vmatprep.subr.mxu0 0.0
    %2634 = vmatpush1.xpose.msra.mxu0 0.0
    %2635 = vmatprep.subr.mxu0 0.0
    %2636 = vmatpush1.xpose.msra.mxu0 0.0
    %2637 = vmatprep.subr.mxu0 0.0
    %2638 = vmatpush1.xpose.msra.mxu0 0.0
    %2639 = vmatprep.subr.mxu0 0.0
    %2640 = vmatpush1.xpose.msra.mxu0 0.0
    %2641 = vmatprep.subr.mxu0 0.0
    %2642 = vmatpush1.xpose.msra.mxu0 0.0
    %2643 = vmatprep.subr.mxu0 0.0
    %2644 = vmatpush1.xpose.msra.mxu0 0.0
    %2645 = vmatprep.subr.mxu0 0.0
    %2646 = vmatpush1.xpose.msra.mxu0 0.0
    %2647 = vmatprep.subr.mxu0 0.0
    %2648 = vmatpush1.xpose.msra.mxu0 0.0
    %2649 = vmatprep.subr.mxu0 0.0
    %2650 = vmatpush1.xpose.msra.mxu0 0.0
    %2651 = vmatprep.subr.mxu0 0.0
    %2652 = vmatpush1.xpose.msra.mxu0 0.0
    %2653 = vmatprep.subr.mxu0 0.0
    %2654 = vmatpush1.xpose.msra.mxu0 0.0
    %2655 = vmatprep.subr.mxu0 0.0
    %2656 = vmatpush1.xpose.msra.mxu0 %v2625
    %2657 = vmatprep.subr.mxu0 0.0
    %2658 = vmatpush1.xpose.msra.mxu0 %v2623
    %2659 = vmatprep.subr.mxu0 0.0
    %2660 = vmatpush2.xpose.msra.mxu0 0.0
    %2661 = vmatprep.subr.mxu0 0.0
    %2662 = vmatpush2.xpose.msra.mxu0 0.0
    %2663 = vmatprep.subr.mxu0 0.0
    %2664 = vmatpush2.xpose.msra.mxu0 0.0
    %2665 = vmatprep.subr.mxu0 0.0
    %2666 = vmatpush2.xpose.msra.mxu0 0.0
    %2667 = vmatprep.subr.mxu0 0.0
    %2668 = vmatpush2.xpose.msra.mxu0 0.0
    %2669 = vmatprep.subr.mxu0 0.0
    %2670 = vmatpush2.xpose.msra.mxu0 0.0
    %2671 = vmatprep.subr.mxu0 0.0
    %2672 = vmatpush2.xpose.msra.mxu0 0.0
    %2673 = vmatprep.subr.mxu0 0.0
    %2674 = vmatpush2.xpose.msra.mxu0 0.0
    %2675 = vmatprep.subr.mxu0 0.0
    %2676 = vmatpush2.xpose.msra.mxu0 0.0
    %2677 = vmatprep.subr.mxu0 0.0
    %2678 = vmatpush2.xpose.msra.mxu0 0.0
    %2679 = vmatprep.subr.mxu0 0.0
    %2680 = vmatpush2.xpose.msra.mxu0 0.0
    %2681 = vmatprep.subr.mxu0 0.0
    %2682 = vmatpush2.xpose.msra.mxu0 0.0
    %2683 = vmatprep.subr.mxu0 0.0
    %2684 = vmatpush2.xpose.msra.mxu0 0.0
    %2685 = vmatprep.subr.mxu0 0.0
    %2686 = vmatpush2.xpose.msra.mxu0 0.0
    %2687 = vmatprep.subr.mxu0 0.0
    %2688 = vmatpush2.xpose.msra.mxu0 0.0
    %2689 = vmatprep.subr.mxu0 0.0
    %2690 = vmatpush2.xpose.msra.mxu0 0.0
    %2691 = vmatprep.mubr.f32.mxu0 0.0
    %2692 = vmatmul.mubr.f32.gmra.mxu0 %v2619
    %v2693 = vpop.f32.mrf.mxu0
    %v2694 = vadd.f32 %v86, %v2693
    %v2695 = vpop.f32.mrf.mxu0
    %2696 = vmatprep.mubr.f32.mxu0 0.0
    %2697 = vmatmul.mubr.f32.gmra.mxu0 %v2621
    %v2698 = vpop.f32.mrf.mxu0
    %v2699 = vadd.f32 %v87, %v2698
    %v2700 = vpop.f32.mrf.mxu0
    %2701 = vdwg.mxu0
    %v2702 = vsel %vm456, %v2605, -inf
    %2703 = vmax.xlane.f32.xlu0 %v2702
    %v2704 = vpop.xlane.xlu0 %2703
    %v2705 = vsel %vm456, %v2610, -inf
    %2706 = vmax.xlane.f32.xlu0 %v2705
    %v2707 = vpop.xlane.xlu0 %2706
    %v2708 = vsel %vm456, %v2694, -inf
    %2709 = vmax.xlane.f32.xlu0 %v2708
    %v2710 = vpop.xlane.xlu0 %2709
    %v2711 = vsel %vm456, %v2699, -inf
    %2712 = vmax.xlane.f32.xlu0 %v2711
    %v2713 = vpop.xlane.xlu0 %2712
    %v2714 = vsub.f32 %v2605, %v2704
    %v2715 = vsub.f32 %v2610, %v2707
    %v2716 = vsub.f32 %v2694, %v2710
    %v2717 = vsub.f32 %v2699, %v2713
    %v2718 = vmul.f32 %v2714, 1.442695
    %v2719 = vpow.pop %v2718
    %v2720 = vmul.f32 %v2715, 1.442695
    %v2721 = vpow.pop %v2720
    %v2722 = vmul.f32 %v2716, 1.442695
    %v2723 = vpow.pop %v2722
    %v2724 = vmul.f32 %v2717, 1.442695
    %v2725 = vpow.pop %v2724
    %v2726 = vsel %vm456, %v2719, 0.0
    %2727 = vadd.xlane.f32.xlu0 %v2726
    %v2728 = vpop.xlane.xlu0 %2727
    %v2729 = vsel %vm456, %v2721, 0.0
    %2730 = vadd.xlane.f32.xlu0 %v2729
    %v2731 = vpop.xlane.xlu0 %2730
    %v2732 = vsel %vm456, %v2723, 0.0
    %2733 = vadd.xlane.f32.xlu0 %v2732
    %v2734 = vpop.xlane.xlu0 %2733
    %v2735 = vsel %vm456, %v2725, 0.0
    %2736 = vadd.xlane.f32.xlu0 %v2735
    %v2737 = vpop.xlane.xlu0 %2736
    %v2738 = vrcp.pop %v2728
    %v2739 = vrcp.pop %v2731
    %v2740 = vrcp.pop %v2734
    %v2741 = vrcp.pop %v2737
    %v2742 = vmul.f32 %v2719, %v2738
    %v2743 = vmul.f32 %v2721, %v2739
    %v2744 = vmul.f32 %v2723, %v2740
    %v2745 = vmul.f32 %v2725, %v2741
    %2746 = vrot.lane.b32.xlu0 %v2506, 64
    %v2747 = vpop.permute.xlu0 %2746
    %2748 = vrot.lane.b32.xlu0 %v2511, 64
    %v2749 = vpop.permute.xlu0 %2748
    %v2753 = vsel %vm456, %v2742, 0
    %v2756 = vsel %vm456, %v2743, 0
    %2758 = vmatprep.subr.mxu0 0.0
    %2759 = vmatpush1.msra.mxu0 0.0
    %2760 = vmatprep.subr.mxu0 0.0
    %2761 = vmatpush1.msra.mxu0 0.0
    %2762 = vmatprep.subr.mxu0 0.0
    %2763 = vmatpush1.msra.mxu0 0.0
    %2764 = vmatprep.subr.mxu0 0.0
    %2765 = vmatpush1.msra.mxu0 0.0
    %2766 = vmatprep.subr.mxu0 0.0
    %2767 = vmatpush1.msra.mxu0 0.0
    %2768 = vmatprep.subr.mxu0 0.0
    %2769 = vmatpush1.msra.mxu0 0.0
    %2770 = vmatprep.subr.mxu0 0.0
    %2771 = vmatpush1.msra.mxu0 0.0
    %2772 = vmatprep.subr.mxu0 0.0
    %2773 = vmatpush1.msra.mxu0 0.0
    %2774 = vmatprep.subr.mxu0 0.0
    %2775 = vmatpush1.msra.mxu0 0.0
    %2776 = vmatprep.subr.mxu0 0.0
    %2777 = vmatpush1.msra.mxu0 0.0
    %2778 = vmatprep.subr.mxu0 0.0
    %2779 = vmatpush1.msra.mxu0 0.0
    %2780 = vmatprep.subr.mxu0 0.0
    %2781 = vmatpush1.msra.mxu0 0.0
    %2782 = vmatprep.subr.mxu0 0.0
    %2783 = vmatpush1.msra.mxu0 0.0
    %2784 = vmatprep.subr.mxu0 0.0
    %2785 = vmatpush1.msra.mxu0 0.0
    %2786 = vmatprep.subr.mxu0 0.0
    %2787 = vmatpush1.msra.mxu0 %v2749
    %2788 = vmatprep.subr.mxu0 0.0
    %2789 = vmatpush1.msra.mxu0 %v2747
    %2790 = vmatprep.subr.mxu0 0.0
    %2791 = vmatpush2.msra.mxu0 0.0
    %2792 = vmatprep.subr.mxu0 0.0
    %2793 = vmatpush2.msra.mxu0 0.0
    %2794 = vmatprep.subr.mxu0 0.0
    %2795 = vmatpush2.msra.mxu0 0.0
    %2796 = vmatprep.subr.mxu0 0.0
    %2797 = vmatpush2.msra.mxu0 0.0
    %2798 = vmatprep.subr.mxu0 0.0
    %2799 = vmatpush2.msra.mxu0 0.0
    %2800 = vmatprep.subr.mxu0 0.0
    %2801 = vmatpush2.msra.mxu0 0.0
    %2802 = vmatprep.subr.mxu0 0.0
    %2803 = vmatpush2.msra.mxu0 0.0
    %2804 = vmatprep.subr.mxu0 0.0
    %2805 = vmatpush2.msra.mxu0 0.0
    %2806 = vmatprep.subr.mxu0 0.0
    %2807 = vmatpush2.msra.mxu0 0.0
    %2808 = vmatprep.subr.mxu0 0.0
    %2809 = vmatpush2.msra.mxu0 0.0
    %2810 = vmatprep.subr.mxu0 0.0
    %2811 = vmatpush2.msra.mxu0 0.0
    %2812 = vmatprep.subr.mxu0 0.0
    %2813 = vmatpush2.msra.mxu0 0.0
    %2814 = vmatprep.subr.mxu0 0.0
    %2815 = vmatpush2.msra.mxu0 0.0
    %2816 = vmatprep.subr.mxu0 0.0
    %2817 = vmatpush2.msra.mxu0 0.0
    %2818 = vmatprep.subr.mxu0 0.0
    %2819 = vmatpush2.msra.mxu0 0.0
    %2820 = vmatprep.subr.mxu0 0.0
    %2821 = vmatpush2.msra.mxu0 0.0
    %2822 = vmatprep.mubr.f32.mxu0 0.0
    %2823 = vmatmul.mubr.f32.gmra.mxu0 %v2753
    %v2824 = vpop.f32.mrf.mxu0
    %v2825 = vadd.f32 0.0, %v2824
    %v2826 = vpop.f32.mrf.mxu0
    %2827 = vmatprep.mubr.f32.mxu0 0.0
    %2828 = vmatmul.mubr.f32.gmra.mxu0 %v2756
    %v2829 = vpop.f32.mrf.mxu0
    %v2830 = vadd.f32 0.0, %v2829
    %v2831 = vpop.f32.mrf.mxu0
    %2832 = vdwg.mxu0
    %2833 = vrot.lane.b32.xlu0 %v2516, 64
    %v2834 = vpop.permute.xlu0 %2833
    %2835 = vrot.lane.b32.xlu0 %v2521, 64
    %v2836 = vpop.permute.xlu0 %2835
    %v2840 = vsel %vm456, %v2744, 0
    %v2843 = vsel %vm456, %v2745, 0
    %2845 = vmatprep.subr.mxu0 0.0
    %2846 = vmatpush1.msra.mxu0 0.0
    %2847 = vmatprep.subr.mxu0 0.0
    %2848 = vmatpush1.msra.mxu0 0.0
    %2849 = vmatprep.subr.mxu0 0.0
    %2850 = vmatpush1.msra.mxu0 0.0
    %2851 = vmatprep.subr.mxu0 0.0
    %2852 = vmatpush1.msra.mxu0 0.0
    %2853 = vmatprep.subr.mxu0 0.0
    %2854 = vmatpush1.msra.mxu0 0.0
    %2855 = vmatprep.subr.mxu0 0.0
    %2856 = vmatpush1.msra.mxu0 0.0
    %2857 = vmatprep.subr.mxu0 0.0
    %2858 = vmatpush1.msra.mxu0 0.0
    %2859 = vmatprep.subr.mxu0 0.0
    %2860 = vmatpush1.msra.mxu0 0.0
    %2861 = vmatprep.subr.mxu0 0.0
    %2862 = vmatpush1.msra.mxu0 0.0
    %2863 = vmatprep.subr.mxu0 0.0
    %2864 = vmatpush1.msra.mxu0 0.0
    %2865 = vmatprep.subr.mxu0 0.0
    %2866 = vmatpush1.msra.mxu0 0.0
    %2867 = vmatprep.subr.mxu0 0.0
    %2868 = vmatpush1.msra.mxu0 0.0
    %2869 = vmatprep.subr.mxu0 0.0
    %2870 = vmatpush1.msra.mxu0 0.0
    %2871 = vmatprep.subr.mxu0 0.0
    %2872 = vmatpush1.msra.mxu0 0.0
    %2873 = vmatprep.subr.mxu0 0.0
    %2874 = vmatpush1.msra.mxu0 %v2836
    %2875 = vmatprep.subr.mxu0 0.0
    %2876 = vmatpush1.msra.mxu0 %v2834
    %2877 = vmatprep.subr.mxu0 0.0
    %2878 = vmatpush2.msra.mxu0 0.0
    %2879 = vmatprep.subr.mxu0 0.0
    %2880 = vmatpush2.msra.mxu0 0.0
    %2881 = vmatprep.subr.mxu0 0.0
    %2882 = vmatpush2.msra.mxu0 0.0
    %2883 = vmatprep.subr.mxu0 0.0
    %2884 = vmatpush2.msra.mxu0 0.0
    %2885 = vmatprep.subr.mxu0 0.0
    %2886 = vmatpush2.msra.mxu0 0.0
    %2887 = vmatprep.subr.mxu0 0.0
    %2888 = vmatpush2.msra.mxu0 0.0
    %2889 = vmatprep.subr.mxu0 0.0
    %2890 = vmatpush2.msra.mxu0 0.0
    %2891 = vmatprep.subr.mxu0 0.0
    %2892 = vmatpush2.msra.mxu0 0.0
    %2893 = vmatprep.subr.mxu0 0.0
    %2894 = vmatpush2.msra.mxu0 0.0
    %2895 = vmatprep.subr.mxu0 0.0
    %2896 = vmatpush2.msra.mxu0 0.0
    %2897 = vmatprep.subr.mxu0 0.0
    %2898 = vmatpush2.msra.mxu0 0.0
    %2899 = vmatprep.subr.mxu0 0.0
    %2900 = vmatpush2.msra.mxu0 0.0
    %2901 = vmatprep.subr.mxu0 0.0
    %2902 = vmatpush2.msra.mxu0 0.0
    %2903 = vmatprep.subr.mxu0 0.0
    %2904 = vmatpush2.msra.mxu0 0.0
    %2905 = vmatprep.subr.mxu0 0.0
    %2906 = vmatpush2.msra.mxu0 0.0
    %2907 = vmatprep.subr.mxu0 0.0
    %2908 = vmatpush2.msra.mxu0 0.0
    %2909 = vmatprep.mubr.f32.mxu0 0.0
    %2910 = vmatmul.mubr.f32.gmra.mxu0 %v2840
    %v2911 = vpop.f32.mrf.mxu0
    %v2912 = vadd.f32 0.0, %v2911
    %v2913 = vpop.f32.mrf.mxu0
    %2914 = vmatprep.mubr.f32.mxu0 0.0
    %2915 = vmatmul.mubr.f32.gmra.mxu0 %v2843
    %v2916 = vpop.f32.mrf.mxu0
    %v2917 = vadd.f32 0.0, %v2916
    %v2918 = vpop.f32.mrf.mxu0
    %2919 = vdwg.mxu0
    %2920 = vrot.lane.b32.xlu0 %v2506, 120
    %v2921 = vpop.permute.xlu0 %2920
    %2922 = vrot.lane.b32.xlu0 %v2511, 120
    %v2923 = vpop.permute.xlu0 %2922
    %2924 = vrot.lane.b32.xlu0 %v2506, 88
    %v2925 = vpop.permute.xlu0 %2924
    %2926 = vrot.lane.b32.xlu0 %v2511, 88
    %v2927 = vpop.permute.xlu0 %2926
    %v2928 = vsel %vm283, %v2921, 0
    %v2930 = vsel %vm283, %v2923, 0
    %v2932 = vsel %vm283, %v2925, 0
    %v2934 = vsel %vm283, %v2927, 0
    %2936 = vmatprep.subr.mxu0 0.0
    %2937 = vmatpush1.xpose.msra.mxu0 0.0
    %2938 = vmatprep.subr.mxu0 0.0
    %2939 = vmatpush1.xpose.msra.mxu0 0.0
    %2940 = vmatprep.subr.mxu0 0.0
    %2941 = vmatpush1.xpose.msra.mxu0 0.0
    %2942 = vmatprep.subr.mxu0 0.0
    %2943 = vmatpush1.xpose.msra.mxu0 0.0
    %2944 = vmatprep.subr.mxu0 0.0
    %2945 = vmatpush1.xpose.msra.mxu0 0.0
    %2946 = vmatprep.subr.mxu0 0.0
    %2947 = vmatpush1.xpose.msra.mxu0 0.0
    %2948 = vmatprep.subr.mxu0 0.0
    %2949 = vmatpush1.xpose.msra.mxu0 0.0
    %2950 = vmatprep.subr.mxu0 0.0
    %2951 = vmatpush1.xpose.msra.mxu0 0.0
    %2952 = vmatprep.subr.mxu0 0.0
    %2953 = vmatpush1.xpose.msra.mxu0 0.0
    %2954 = vmatprep.subr.mxu0 0.0
    %2955 = vmatpush1.xpose.msra.mxu0 0.0
    %2956 = vmatprep.subr.mxu0 0.0
    %2957 = vmatpush1.xpose.msra.mxu0 0.0
    %2958 = vmatprep.subr.mxu0 0.0
    %2959 = vmatpush1.xpose.msra.mxu0 0.0
    %2960 = vmatprep.subr.mxu0 0.0
    %2961 = vmatpush1.xpose.msra.mxu0 0.0
    %2962 = vmatprep.subr.mxu0 0.0
    %2963 = vmatpush1.xpose.msra.mxu0 0.0
    %2964 = vmatprep.subr.mxu0 0.0
    %2965 = vmatpush1.xpose.msra.mxu0 %v2934
    %2966 = vmatprep.subr.mxu0 0.0
    %2967 = vmatpush1.xpose.msra.mxu0 %v2932
    %2968 = vmatprep.subr.mxu0 0.0
    %2969 = vmatpush2.xpose.msra.mxu0 0.0
    %2970 = vmatprep.subr.mxu0 0.0
    %2971 = vmatpush2.xpose.msra.mxu0 0.0
    %2972 = vmatprep.subr.mxu0 0.0
    %2973 = vmatpush2.xpose.msra.mxu0 0.0
    %2974 = vmatprep.subr.mxu0 0.0
    %2975 = vmatpush2.xpose.msra.mxu0 0.0
    %2976 = vmatprep.subr.mxu0 0.0
    %2977 = vmatpush2.xpose.msra.mxu0 0.0
    %2978 = vmatprep.subr.mxu0 0.0
    %2979 = vmatpush2.xpose.msra.mxu0 0.0
    %2980 = vmatprep.subr.mxu0 0.0
    %2981 = vmatpush2.xpose.msra.mxu0 0.0
    %2982 = vmatprep.subr.mxu0 0.0
    %2983 = vmatpush2.xpose.msra.mxu0 0.0
    %2984 = vmatprep.subr.mxu0 0.0
    %2985 = vmatpush2.xpose.msra.mxu0 0.0
    %2986 = vmatprep.subr.mxu0 0.0
    %2987 = vmatpush2.xpose.msra.mxu0 0.0
    %2988 = vmatprep.subr.mxu0 0.0
    %2989 = vmatpush2.xpose.msra.mxu0 0.0
    %2990 = vmatprep.subr.mxu0 0.0
    %2991 = vmatpush2.xpose.msra.mxu0 0.0
    %2992 = vmatprep.subr.mxu0 0.0
    %2993 = vmatpush2.xpose.msra.mxu0 0.0
    %2994 = vmatprep.subr.mxu0 0.0
    %2995 = vmatpush2.xpose.msra.mxu0 0.0
    %2996 = vmatprep.subr.mxu0 0.0
    %2997 = vmatpush2.xpose.msra.mxu0 0.0
    %2998 = vmatprep.subr.mxu0 0.0
    %2999 = vmatpush2.xpose.msra.mxu0 0.0
    %3000 = vmatprep.mubr.f32.mxu0 0.0
    %3001 = vmatmul.mubr.f32.gmra.mxu0 %v2928
    %v3002 = vpop.f32.mrf.mxu0
    %v3003 = vadd.f32 %v80, %v3002
    %v3004 = vpop.f32.mrf.mxu0
    %3005 = vmatprep.mubr.f32.mxu0 0.0
    %3006 = vmatmul.mubr.f32.gmra.mxu0 %v2930
    %v3007 = vpop.f32.mrf.mxu0
    %v3008 = vadd.f32 %v81, %v3007
    %v3009 = vpop.f32.mrf.mxu0
    %3010 = vdwg.mxu0
    %3011 = vrot.lane.b32.xlu0 %v2516, 120
    %v3012 = vpop.permute.xlu0 %3011
    %3013 = vrot.lane.b32.xlu0 %v2521, 120
    %v3014 = vpop.permute.xlu0 %3013
    %3015 = vrot.lane.b32.xlu0 %v2516, 88
    %v3016 = vpop.permute.xlu0 %3015
    %3017 = vrot.lane.b32.xlu0 %v2521, 88
    %v3018 = vpop.permute.xlu0 %3017
    %v3019 = vsel %vm283, %v3012, 0
    %v3021 = vsel %vm283, %v3014, 0
    %v3023 = vsel %vm283, %v3016, 0
    %v3025 = vsel %vm283, %v3018, 0
    %3027 = vmatprep.subr.mxu0 0.0
    %3028 = vmatpush1.xpose.msra.mxu0 0.0
    %3029 = vmatprep.subr.mxu0 0.0
    %3030 = vmatpush1.xpose.msra.mxu0 0.0
    %3031 = vmatprep.subr.mxu0 0.0
    %3032 = vmatpush1.xpose.msra.mxu0 0.0
    %3033 = vmatprep.subr.mxu0 0.0
    %3034 = vmatpush1.xpose.msra.mxu0 0.0
    %3035 = vmatprep.subr.mxu0 0.0
    %3036 = vmatpush1.xpose.msra.mxu0 0.0
    %3037 = vmatprep.subr.mxu0 0.0
    %3038 = vmatpush1.xpose.msra.mxu0 0.0
    %3039 = vmatprep.subr.mxu0 0.0
    %3040 = vmatpush1.xpose.msra.mxu0 0.0
    %3041 = vmatprep.subr.mxu0 0.0
    %3042 = vmatpush1.xpose.msra.mxu0 0.0
    %3043 = vmatprep.subr.mxu0 0.0
    %3044 = vmatpush1.xpose.msra.mxu0 0.0
    %3045 = vmatprep.subr.mxu0 0.0
    %3046 = vmatpush1.xpose.msra.mxu0 0.0
    %3047 = vmatprep.subr.mxu0 0.0
    %3048 = vmatpush1.xpose.msra.mxu0 0.0
    %3049 = vmatprep.subr.mxu0 0.0
    %3050 = vmatpush1.xpose.msra.mxu0 0.0
    %3051 = vmatprep.subr.mxu0 0.0
    %3052 = vmatpush1.xpose.msra.mxu0 0.0
    %3053 = vmatprep.subr.mxu0 0.0
    %3054 = vmatpush1.xpose.msra.mxu0 0.0
    %3055 = vmatprep.subr.mxu0 0.0
    %3056 = vmatpush1.xpose.msra.mxu0 %v3025
    %3057 = vmatprep.subr.mxu0 0.0
    %3058 = vmatpush1.xpose.msra.mxu0 %v3023
    %3059 = vmatprep.subr.mxu0 0.0
    %3060 = vmatpush2.xpose.msra.mxu0 0.0
    %3061 = vmatprep.subr.mxu0 0.0
    %3062 = vmatpush2.xpose.msra.mxu0 0.0
    %3063 = vmatprep.subr.mxu0 0.0
    %3064 = vmatpush2.xpose.msra.mxu0 0.0
    %3065 = vmatprep.subr.mxu0 0.0
    %3066 = vmatpush2.xpose.msra.mxu0 0.0
    %3067 = vmatprep.subr.mxu0 0.0
    %3068 = vmatpush2.xpose.msra.mxu0 0.0
    %3069 = vmatprep.subr.mxu0 0.0
    %3070 = vmatpush2.xpose.msra.mxu0 0.0
    %3071 = vmatprep.subr.mxu0 0.0
    %3072 = vmatpush2.xpose.msra.mxu0 0.0
    %3073 = vmatprep.subr.mxu0 0.0
    %3074 = vmatpush2.xpose.msra.mxu0 0.0
    %3075 = vmatprep.subr.mxu0 0.0
    %3076 = vmatpush2.xpose.msra.mxu0 0.0
    %3077 = vmatprep.subr.mxu0 0.0
    %3078 = vmatpush2.xpose.msra.mxu0 0.0
    %3079 = vmatprep.subr.mxu0 0.0
    %3080 = vmatpush2.xpose.msra.mxu0 0.0
    %3081 = vmatprep.subr.mxu0 0.0
    %3082 = vmatpush2.xpose.msra.mxu0 0.0
    %3083 = vmatprep.subr.mxu0 0.0
    %3084 = vmatpush2.xpose.msra.mxu0 0.0
    %3085 = vmatprep.subr.mxu0 0.0
    %3086 = vmatpush2.xpose.msra.mxu0 0.0
    %3087 = vmatprep.subr.mxu0 0.0
    %3088 = vmatpush2.xpose.msra.mxu0 0.0
    %3089 = vmatprep.subr.mxu0 0.0
    %3090 = vmatpush2.xpose.msra.mxu0 0.0
    %3091 = vmatprep.mubr.f32.mxu0 0.0
    %3092 = vmatmul.mubr.f32.gmra.mxu0 %v3019
    %v3093 = vpop.f32.mrf.mxu0
    %v3094 = vadd.f32 %v88, %v3093
    %v3095 = vpop.f32.mrf.mxu0
    %3096 = vmatprep.mubr.f32.mxu0 0.0
    %3097 = vmatmul.mubr.f32.gmra.mxu0 %v3021
    %v3098 = vpop.f32.mrf.mxu0
    %v3099 = vadd.f32 %v89, %v3098
    %v3100 = vpop.f32.mrf.mxu0
    %3101 = vdwg.mxu0
    %v3102 = vsel %vm456, %v3003, -inf
    %3103 = vmax.xlane.f32.xlu0 %v3102
    %v3104 = vpop.xlane.xlu0 %3103
    %v3105 = vsel %vm456, %v3008, -inf
    %3106 = vmax.xlane.f32.xlu0 %v3105
    %v3107 = vpop.xlane.xlu0 %3106
    %v3108 = vsel %vm456, %v3094, -inf
    %3109 = vmax.xlane.f32.xlu0 %v3108
    %v3110 = vpop.xlane.xlu0 %3109
    %v3111 = vsel %vm456, %v3099, -inf
    %3112 = vmax.xlane.f32.xlu0 %v3111
    %v3113 = vpop.xlane.xlu0 %3112
    %v3114 = vsub.f32 %v3003, %v3104
    %v3115 = vsub.f32 %v3008, %v3107
    %v3116 = vsub.f32 %v3094, %v3110
    %v3117 = vsub.f32 %v3099, %v3113
    %v3118 = vmul.f32 %v3114, 1.442695
    %v3119 = vpow.pop %v3118
    %v3120 = vmul.f32 %v3115, 1.442695
    %v3121 = vpow.pop %v3120
    %v3122 = vmul.f32 %v3116, 1.442695
    %v3123 = vpow.pop %v3122
    %v3124 = vmul.f32 %v3117, 1.442695
    %v3125 = vpow.pop %v3124
    %v3126 = vsel %vm456, %v3119, 0.0
    %3127 = vadd.xlane.f32.xlu0 %v3126
    %v3128 = vpop.xlane.xlu0 %3127
    %v3129 = vsel %vm456, %v3121, 0.0
    %3130 = vadd.xlane.f32.xlu0 %v3129
    %v3131 = vpop.xlane.xlu0 %3130
    %v3132 = vsel %vm456, %v3123, 0.0
    %3133 = vadd.xlane.f32.xlu0 %v3132
    %v3134 = vpop.xlane.xlu0 %3133
    %v3135 = vsel %vm456, %v3125, 0.0
    %3136 = vadd.xlane.f32.xlu0 %v3135
    %v3137 = vpop.xlane.xlu0 %3136
    %v3138 = vrcp.pop %v3128
    %v3139 = vrcp.pop %v3131
    %v3140 = vrcp.pop %v3134
    %v3141 = vrcp.pop %v3137
    %v3142 = vmul.f32 %v3119, %v3138
    %v3143 = vmul.f32 %v3121, %v3139
    %v3144 = vmul.f32 %v3123, %v3140
    %v3145 = vmul.f32 %v3125, %v3141
    %3146 = vrot.lane.b32.xlu0 %v2506, 56
    %v3147 = vpop.permute.xlu0 %3146
    %3148 = vrot.lane.b32.xlu0 %v2511, 56
    %v3149 = vpop.permute.xlu0 %3148
    %v3153 = vsel %vm456, %v3142, 0
    %v3156 = vsel %vm456, %v3143, 0
    %3158 = vmatprep.subr.mxu0 0.0
    %3159 = vmatpush1.msra.mxu0 0.0
    %3160 = vmatprep.subr.mxu0 0.0
    %3161 = vmatpush1.msra.mxu0 0.0
    %3162 = vmatprep.subr.mxu0 0.0
    %3163 = vmatpush1.msra.mxu0 0.0
    %3164 = vmatprep.subr.mxu0 0.0
    %3165 = vmatpush1.msra.mxu0 0.0
    %3166 = vmatprep.subr.mxu0 0.0
    %3167 = vmatpush1.msra.mxu0 0.0
    %3168 = vmatprep.subr.mxu0 0.0
    %3169 = vmatpush1.msra.mxu0 0.0
    %3170 = vmatprep.subr.mxu0 0.0
    %3171 = vmatpush1.msra.mxu0 0.0
    %3172 = vmatprep.subr.mxu0 0.0
    %3173 = vmatpush1.msra.mxu0 0.0
    %3174 = vmatprep.subr.mxu0 0.0
    %3175 = vmatpush1.msra.mxu0 0.0
    %3176 = vmatprep.subr.mxu0 0.0
    %3177 = vmatpush1.msra.mxu0 0.0
    %3178 = vmatprep.subr.mxu0 0.0
    %3179 = vmatpush1.msra.mxu0 0.0
    %3180 = vmatprep.subr.mxu0 0.0
    %3181 = vmatpush1.msra.mxu0 0.0
    %3182 = vmatprep.subr.mxu0 0.0
    %3183 = vmatpush1.msra.mxu0 0.0
    %3184 = vmatprep.subr.mxu0 0.0
    %3185 = vmatpush1.msra.mxu0 0.0
    %3186 = vmatprep.subr.mxu0 0.0
    %3187 = vmatpush1.msra.mxu0 %v3149
    %3188 = vmatprep.subr.mxu0 0.0
    %3189 = vmatpush1.msra.mxu0 %v3147
    %3190 = vmatprep.subr.mxu0 0.0
    %3191 = vmatpush2.msra.mxu0 0.0
    %3192 = vmatprep.subr.mxu0 0.0
    %3193 = vmatpush2.msra.mxu0 0.0
    %3194 = vmatprep.subr.mxu0 0.0
    %3195 = vmatpush2.msra.mxu0 0.0
    %3196 = vmatprep.subr.mxu0 0.0
    %3197 = vmatpush2.msra.mxu0 0.0
    %3198 = vmatprep.subr.mxu0 0.0
    %3199 = vmatpush2.msra.mxu0 0.0
    %3200 = vmatprep.subr.mxu0 0.0
    %3201 = vmatpush2.msra.mxu0 0.0
    %3202 = vmatprep.subr.mxu0 0.0
    %3203 = vmatpush2.msra.mxu0 0.0
    %3204 = vmatprep.subr.mxu0 0.0
    %3205 = vmatpush2.msra.mxu0 0.0
    %3206 = vmatprep.subr.mxu0 0.0
    %3207 = vmatpush2.msra.mxu0 0.0
    %3208 = vmatprep.subr.mxu0 0.0
    %3209 = vmatpush2.msra.mxu0 0.0
    %3210 = vmatprep.subr.mxu0 0.0
    %3211 = vmatpush2.msra.mxu0 0.0
    %3212 = vmatprep.subr.mxu0 0.0
    %3213 = vmatpush2.msra.mxu0 0.0
    %3214 = vmatprep.subr.mxu0 0.0
    %3215 = vmatpush2.msra.mxu0 0.0
    %3216 = vmatprep.subr.mxu0 0.0
    %3217 = vmatpush2.msra.mxu0 0.0
    %3218 = vmatprep.subr.mxu0 0.0
    %3219 = vmatpush2.msra.mxu0 0.0
    %3220 = vmatprep.subr.mxu0 0.0
    %3221 = vmatpush2.msra.mxu0 0.0
    %3222 = vmatprep.mubr.f32.mxu0 0.0
    %3223 = vmatmul.mubr.f32.gmra.mxu0 %v3153
    %v3224 = vpop.f32.mrf.mxu0
    %v3225 = vadd.f32 0.0, %v3224
    %v3226 = vpop.f32.mrf.mxu0
    %3227 = vmatprep.mubr.f32.mxu0 0.0
    %3228 = vmatmul.mubr.f32.gmra.mxu0 %v3156
    %v3229 = vpop.f32.mrf.mxu0
    %v3230 = vadd.f32 0.0, %v3229
    %v3231 = vpop.f32.mrf.mxu0
    %3232 = vdwg.mxu0
    %3233 = vrot.lane.b32.xlu0 %v2516, 56
    %v3234 = vpop.permute.xlu0 %3233
    %3235 = vrot.lane.b32.xlu0 %v2521, 56
    %v3236 = vpop.permute.xlu0 %3235
    %v3240 = vsel %vm456, %v3144, 0
    %v3243 = vsel %vm456, %v3145, 0
    %3245 = vmatprep.subr.mxu0 0.0
    %3246 = vmatpush1.msra.mxu0 0.0
    %3247 = vmatprep.subr.mxu0 0.0
    %3248 = vmatpush1.msra.mxu0 0.0
    %3249 = vmatprep.subr.mxu0 0.0
    %3250 = vmatpush1.msra.mxu0 0.0
    %3251 = vmatprep.subr.mxu0 0.0
    %3252 = vmatpush1.msra.mxu0 0.0
    %3253 = vmatprep.subr.mxu0 0.0
    %3254 = vmatpush1.msra.mxu0 0.0
    %3255 = vmatprep.subr.mxu0 0.0
    %3256 = vmatpush1.msra.mxu0 0.0
    %3257 = vmatprep.subr.mxu0 0.0
    %3258 = vmatpush1.msra.mxu0 0.0
    %3259 = vmatprep.subr.mxu0 0.0
    %3260 = vmatpush1.msra.mxu0 0.0
    %3261 = vmatprep.subr.mxu0 0.0
    %3262 = vmatpush1.msra.mxu0 0.0
    %3263 = vmatprep.subr.mxu0 0.0
    %3264 = vmatpush1.msra.mxu0 0.0
    %3265 = vmatprep.subr.mxu0 0.0
    %3266 = vmatpush1.msra.mxu0 0.0
    %3267 = vmatprep.subr.mxu0 0.0
    %3268 = vmatpush1.msra.mxu0 0.0
    %3269 = vmatprep.subr.mxu0 0.0
    %3270 = vmatpush1.msra.mxu0 0.0
    %3271 = vmatprep.subr.mxu0 0.0
    %3272 = vmatpush1.msra.mxu0 0.0
    %3273 = vmatprep.subr.mxu0 0.0
    %3274 = vmatpush1.msra.mxu0 %v3236
    %3275 = vmatprep.subr.mxu0 0.0
    %3276 = vmatpush1.msra.mxu0 %v3234
    %3277 = vmatprep.subr.mxu0 0.0
    %3278 = vmatpush2.msra.mxu0 0.0
    %3279 = vmatprep.subr.mxu0 0.0
    %3280 = vmatpush2.msra.mxu0 0.0
    %3281 = vmatprep.subr.mxu0 0.0
    %3282 = vmatpush2.msra.mxu0 0.0
    %3283 = vmatprep.subr.mxu0 0.0
    %3284 = vmatpush2.msra.mxu0 0.0
    %3285 = vmatprep.subr.mxu0 0.0
    %3286 = vmatpush2.msra.mxu0 0.0
    %3287 = vmatprep.subr.mxu0 0.0
    %3288 = vmatpush2.msra.mxu0 0.0
    %3289 = vmatprep.subr.mxu0 0.0
    %3290 = vmatpush2.msra.mxu0 0.0
    %3291 = vmatprep.subr.mxu0 0.0
    %3292 = vmatpush2.msra.mxu0 0.0
    %3293 = vmatprep.subr.mxu0 0.0
    %3294 = vmatpush2.msra.mxu0 0.0
    %3295 = vmatprep.subr.mxu0 0.0
    %3296 = vmatpush2.msra.mxu0 0.0
    %3297 = vmatprep.subr.mxu0 0.0
    %3298 = vmatpush2.msra.mxu0 0.0
    %3299 = vmatprep.subr.mxu0 0.0
    %3300 = vmatpush2.msra.mxu0 0.0
    %3301 = vmatprep.subr.mxu0 0.0
    %3302 = vmatpush2.msra.mxu0 0.0
    %3303 = vmatprep.subr.mxu0 0.0
    %3304 = vmatpush2.msra.mxu0 0.0
    %3305 = vmatprep.subr.mxu0 0.0
    %3306 = vmatpush2.msra.mxu0 0.0
    %3307 = vmatprep.subr.mxu0 0.0
    %3308 = vmatpush2.msra.mxu0 0.0
    %3309 = vmatprep.mubr.f32.mxu0 0.0
    %3310 = vmatmul.mubr.f32.gmra.mxu0 %v3240
    %v3311 = vpop.f32.mrf.mxu0
    %v3312 = vadd.f32 0.0, %v3311
    %v3313 = vpop.f32.mrf.mxu0
    %3314 = vmatprep.mubr.f32.mxu0 0.0
    %3315 = vmatmul.mubr.f32.gmra.mxu0 %v3243
    %v3316 = vpop.f32.mrf.mxu0
    %v3317 = vadd.f32 0.0, %v3316
    %v3318 = vpop.f32.mrf.mxu0
    %3319 = vdwg.mxu0
    %3320 = vrot.lane.b32.xlu0 %v2506, 112
    %v3321 = vpop.permute.xlu0 %3320
    %3322 = vrot.lane.b32.xlu0 %v2511, 112
    %v3323 = vpop.permute.xlu0 %3322
    %3324 = vrot.lane.b32.xlu0 %v2506, 80
    %v3325 = vpop.permute.xlu0 %3324
    %3326 = vrot.lane.b32.xlu0 %v2511, 80
    %v3327 = vpop.permute.xlu0 %3326
    %v3328 = vsel %vm283, %v3321, 0
    %v3330 = vsel %vm283, %v3323, 0
    %v3332 = vsel %vm283, %v3325, 0
    %v3334 = vsel %vm283, %v3327, 0
    %3336 = vmatprep.subr.mxu0 0.0
    %3337 = vmatpush1.xpose.msra.mxu0 0.0
    %3338 = vmatprep.subr.mxu0 0.0
    %3339 = vmatpush1.xpose.msra.mxu0 0.0
    %3340 = vmatprep.subr.mxu0 0.0
    %3341 = vmatpush1.xpose.msra.mxu0 0.0
    %3342 = vmatprep.subr.mxu0 0.0
    %3343 = vmatpush1.xpose.msra.mxu0 0.0
    %3344 = vmatprep.subr.mxu0 0.0
    %3345 = vmatpush1.xpose.msra.mxu0 0.0
    %3346 = vmatprep.subr.mxu0 0.0
    %3347 = vmatpush1.xpose.msra.mxu0 0.0
    %3348 = vmatprep.subr.mxu0 0.0
    %3349 = vmatpush1.xpose.msra.mxu0 0.0
    %3350 = vmatprep.subr.mxu0 0.0
    %3351 = vmatpush1.xpose.msra.mxu0 0.0
    %3352 = vmatprep.subr.mxu0 0.0
    %3353 = vmatpush1.xpose.msra.mxu0 0.0
    %3354 = vmatprep.subr.mxu0 0.0
    %3355 = vmatpush1.xpose.msra.mxu0 0.0
    %3356 = vmatprep.subr.mxu0 0.0
    %3357 = vmatpush1.xpose.msra.mxu0 0.0
    %3358 = vmatprep.subr.mxu0 0.0
    %3359 = vmatpush1.xpose.msra.mxu0 0.0
    %3360 = vmatprep.subr.mxu0 0.0
    %3361 = vmatpush1.xpose.msra.mxu0 0.0
    %3362 = vmatprep.subr.mxu0 0.0
    %3363 = vmatpush1.xpose.msra.mxu0 0.0
    %3364 = vmatprep.subr.mxu0 0.0
    %3365 = vmatpush1.xpose.msra.mxu0 %v3334
    %3366 = vmatprep.subr.mxu0 0.0
    %3367 = vmatpush1.xpose.msra.mxu0 %v3332
    %3368 = vmatprep.subr.mxu0 0.0
    %3369 = vmatpush2.xpose.msra.mxu0 0.0
    %3370 = vmatprep.subr.mxu0 0.0
    %3371 = vmatpush2.xpose.msra.mxu0 0.0
    %3372 = vmatprep.subr.mxu0 0.0
    %3373 = vmatpush2.xpose.msra.mxu0 0.0
    %3374 = vmatprep.subr.mxu0 0.0
    %3375 = vmatpush2.xpose.msra.mxu0 0.0
    %3376 = vmatprep.subr.mxu0 0.0
    %3377 = vmatpush2.xpose.msra.mxu0 0.0
    %3378 = vmatprep.subr.mxu0 0.0
    %3379 = vmatpush2.xpose.msra.mxu0 0.0
    %3380 = vmatprep.subr.mxu0 0.0
    %3381 = vmatpush2.xpose.msra.mxu0 0.0
    %3382 = vmatprep.subr.mxu0 0.0
    %3383 = vmatpush2.xpose.msra.mxu0 0.0
    %3384 = vmatprep.subr.mxu0 0.0
    %3385 = vmatpush2.xpose.msra.mxu0 0.0
    %3386 = vmatprep.subr.mxu0 0.0
    %3387 = vmatpush2.xpose.msra.mxu0 0.0
    %3388 = vmatprep.subr.mxu0 0.0
    %3389 = vmatpush2.xpose.msra.mxu0 0.0
    %3390 = vmatprep.subr.mxu0 0.0
    %3391 = vmatpush2.xpose.msra.mxu0 0.0
    %3392 = vmatprep.subr.mxu0 0.0
    %3393 = vmatpush2.xpose.msra.mxu0 0.0
    %3394 = vmatprep.subr.mxu0 0.0
    %3395 = vmatpush2.xpose.msra.mxu0 0.0
    %3396 = vmatprep.subr.mxu0 0.0
    %3397 = vmatpush2.xpose.msra.mxu0 0.0
    %3398 = vmatprep.subr.mxu0 0.0
    %3399 = vmatpush2.xpose.msra.mxu0 0.0
    %3400 = vmatprep.mubr.f32.mxu0 0.0
    %3401 = vmatmul.mubr.f32.gmra.mxu0 %v3328
    %v3402 = vpop.f32.mrf.mxu0
    %v3403 = vadd.f32 %v82, %v3402
    %v3404 = vpop.f32.mrf.mxu0
    %3405 = vmatprep.mubr.f32.mxu0 0.0
    %3406 = vmatmul.mubr.f32.gmra.mxu0 %v3330
    %v3407 = vpop.f32.mrf.mxu0
    %v3408 = vadd.f32 %v83, %v3407
    %v3409 = vpop.f32.mrf.mxu0
    %3410 = vdwg.mxu0
    %3411 = vrot.lane.b32.xlu0 %v2516, 112
    %v3412 = vpop.permute.xlu0 %3411
    %3413 = vrot.lane.b32.xlu0 %v2521, 112
    %v3414 = vpop.permute.xlu0 %3413
    %3415 = vrot.lane.b32.xlu0 %v2516, 80
    %v3416 = vpop.permute.xlu0 %3415
    %3417 = vrot.lane.b32.xlu0 %v2521, 80
    %v3418 = vpop.permute.xlu0 %3417
    %v3419 = vsel %vm283, %v3412, 0
    %v3421 = vsel %vm283, %v3414, 0
    %v3423 = vsel %vm283, %v3416, 0
    %v3425 = vsel %vm283, %v3418, 0
    %3427 = vmatprep.subr.mxu0 0.0
    %3428 = vmatpush1.xpose.msra.mxu0 0.0
    %3429 = vmatprep.subr.mxu0 0.0
    %3430 = vmatpush1.xpose.msra.mxu0 0.0
    %3431 = vmatprep.subr.mxu0 0.0
    %3432 = vmatpush1.xpose.msra.mxu0 0.0
    %3433 = vmatprep.subr.mxu0 0.0
    %3434 = vmatpush1.xpose.msra.mxu0 0.0
    %3435 = vmatprep.subr.mxu0 0.0
    %3436 = vmatpush1.xpose.msra.mxu0 0.0
    %3437 = vmatprep.subr.mxu0 0.0
    %3438 = vmatpush1.xpose.msra.mxu0 0.0
    %3439 = vmatprep.subr.mxu0 0.0
    %3440 = vmatpush1.xpose.msra.mxu0 0.0
    %3441 = vmatprep.subr.mxu0 0.0
    %3442 = vmatpush1.xpose.msra.mxu0 0.0
    %3443 = vmatprep.subr.mxu0 0.0
    %3444 = vmatpush1.xpose.msra.mxu0 0.0
    %3445 = vmatprep.subr.mxu0 0.0
    %3446 = vmatpush1.xpose.msra.mxu0 0.0
    %3447 = vmatprep.subr.mxu0 0.0
    %3448 = vmatpush1.xpose.msra.mxu0 0.0
    %3449 = vmatprep.subr.mxu0 0.0
    %3450 = vmatpush1.xpose.msra.mxu0 0.0
    %3451 = vmatprep.subr.mxu0 0.0
    %3452 = vmatpush1.xpose.msra.mxu0 0.0
    %3453 = vmatprep.subr.mxu0 0.0
    %3454 = vmatpush1.xpose.msra.mxu0 0.0
    %3455 = vmatprep.subr.mxu0 0.0
    %3456 = vmatpush1.xpose.msra.mxu0 %v3425
    %3457 = vmatprep.subr.mxu0 0.0
    %3458 = vmatpush1.xpose.msra.mxu0 %v3423
    %3459 = vmatprep.subr.mxu0 0.0
    %3460 = vmatpush2.xpose.msra.mxu0 0.0
    %3461 = vmatprep.subr.mxu0 0.0
    %3462 = vmatpush2.xpose.msra.mxu0 0.0
    %3463 = vmatprep.subr.mxu0 0.0
    %3464 = vmatpush2.xpose.msra.mxu0 0.0
    %3465 = vmatprep.subr.mxu0 0.0
    %3466 = vmatpush2.xpose.msra.mxu0 0.0
    %3467 = vmatprep.subr.mxu0 0.0
    %3468 = vmatpush2.xpose.msra.mxu0 0.0
    %3469 = vmatprep.subr.mxu0 0.0
    %3470 = vmatpush2.xpose.msra.mxu0 0.0
    %3471 = vmatprep.subr.mxu0 0.0
    %3472 = vmatpush2.xpose.msra.mxu0 0.0
    %3473 = vmatprep.subr.mxu0 0.0
    %3474 = vmatpush2.xpose.msra.mxu0 0.0
    %3475 = vmatprep.subr.mxu0 0.0
    %3476 = vmatpush2.xpose.msra.mxu0 0.0
    %3477 = vmatprep.subr.mxu0 0.0
    %3478 = vmatpush2.xpose.msra.mxu0 0.0
    %3479 = vmatprep.subr.mxu0 0.0
    %3480 = vmatpush2.xpose.msra.mxu0 0.0
    %3481 = vmatprep.subr.mxu0 0.0
    %3482 = vmatpush2.xpose.msra.mxu0 0.0
    %3483 = vmatprep.subr.mxu0 0.0
    %3484 = vmatpush2.xpose.msra.mxu0 0.0
    %3485 = vmatprep.subr.mxu0 0.0
    %3486 = vmatpush2.xpose.msra.mxu0 0.0
    %3487 = vmatprep.subr.mxu0 0.0
    %3488 = vmatpush2.xpose.msra.mxu0 0.0
    %3489 = vmatprep.subr.mxu0 0.0
    %3490 = vmatpush2.xpose.msra.mxu0 0.0
    %3491 = vmatprep.mubr.f32.mxu0 0.0
    %3492 = vmatmul.mubr.f32.gmra.mxu0 %v3419
    %v3493 = vpop.f32.mrf.mxu0
    %v3494 = vadd.f32 %v90, %v3493
    %v3495 = vpop.f32.mrf.mxu0
    %3496 = vmatprep.mubr.f32.mxu0 0.0
    %3497 = vmatmul.mubr.f32.gmra.mxu0 %v3421
    %v3498 = vpop.f32.mrf.mxu0
    %v3499 = vadd.f32 %v91, %v3498
    %v3500 = vpop.f32.mrf.mxu0
    %3501 = vdwg.mxu0
    %v3502 = vsel %vm456, %v3403, -inf
    %3503 = vmax.xlane.f32.xlu0 %v3502
    %v3504 = vpop.xlane.xlu0 %3503
    %v3505 = vsel %vm456, %v3408, -inf
    %3506 = vmax.xlane.f32.xlu0 %v3505
    %v3507 = vpop.xlane.xlu0 %3506
    %v3508 = vsel %vm456, %v3494, -inf
    %3509 = vmax.xlane.f32.xlu0 %v3508
    %v3510 = vpop.xlane.xlu0 %3509
    %v3511 = vsel %vm456, %v3499, -inf
    %3512 = vmax.xlane.f32.xlu0 %v3511
    %v3513 = vpop.xlane.xlu0 %3512
    %v3514 = vsub.f32 %v3403, %v3504
    %v3515 = vsub.f32 %v3408, %v3507
    %v3516 = vsub.f32 %v3494, %v3510
    %v3517 = vsub.f32 %v3499, %v3513
    %v3518 = vmul.f32 %v3514, 1.442695
    %v3519 = vpow.pop %v3518
    %v3520 = vmul.f32 %v3515, 1.442695
    %v3521 = vpow.pop %v3520
    %v3522 = vmul.f32 %v3516, 1.442695
    %v3523 = vpow.pop %v3522
    %v3524 = vmul.f32 %v3517, 1.442695
    %v3525 = vpow.pop %v3524
    %v3526 = vsel %vm456, %v3519, 0.0
    %3527 = vadd.xlane.f32.xlu0 %v3526
    %v3528 = vpop.xlane.xlu0 %3527
    %v3529 = vsel %vm456, %v3521, 0.0
    %3530 = vadd.xlane.f32.xlu0 %v3529
    %v3531 = vpop.xlane.xlu0 %3530
    %v3532 = vsel %vm456, %v3523, 0.0
    %3533 = vadd.xlane.f32.xlu0 %v3532
    %v3534 = vpop.xlane.xlu0 %3533
    %v3535 = vsel %vm456, %v3525, 0.0
    %3536 = vadd.xlane.f32.xlu0 %v3535
    %v3537 = vpop.xlane.xlu0 %3536
    %v3538 = vrcp.pop %v3528
    %v3539 = vrcp.pop %v3531
    %v3540 = vrcp.pop %v3534
    %v3541 = vrcp.pop %v3537
    %v3542 = vmul.f32 %v3519, %v3538
    %v3543 = vmul.f32 %v3521, %v3539
    %v3544 = vmul.f32 %v3523, %v3540
    %v3545 = vmul.f32 %v3525, %v3541
    %3546 = vrot.lane.b32.xlu0 %v2506, 48
    %v3547 = vpop.permute.xlu0 %3546
    %3548 = vrot.lane.b32.xlu0 %v2511, 48
    %v3549 = vpop.permute.xlu0 %3548
    %v3553 = vsel %vm456, %v3542, 0
    %v3556 = vsel %vm456, %v3543, 0
    %3558 = vmatprep.subr.mxu0 0.0
    %3559 = vmatpush1.msra.mxu0 0.0
    %3560 = vmatprep.subr.mxu0 0.0
    %3561 = vmatpush1.msra.mxu0 0.0
    %3562 = vmatprep.subr.mxu0 0.0
    %3563 = vmatpush1.msra.mxu0 0.0
    %3564 = vmatprep.subr.mxu0 0.0
    %3565 = vmatpush1.msra.mxu0 0.0
    %3566 = vmatprep.subr.mxu0 0.0
    %3567 = vmatpush1.msra.mxu0 0.0
    %3568 = vmatprep.subr.mxu0 0.0
    %3569 = vmatpush1.msra.mxu0 0.0
    %3570 = vmatprep.subr.mxu0 0.0
    %3571 = vmatpush1.msra.mxu0 0.0
    %3572 = vmatprep.subr.mxu0 0.0
    %3573 = vmatpush1.msra.mxu0 0.0
    %3574 = vmatprep.subr.mxu0 0.0
    %3575 = vmatpush1.msra.mxu0 0.0
    %3576 = vmatprep.subr.mxu0 0.0
    %3577 = vmatpush1.msra.mxu0 0.0
    %3578 = vmatprep.subr.mxu0 0.0
    %3579 = vmatpush1.msra.mxu0 0.0
    %3580 = vmatprep.subr.mxu0 0.0
    %3581 = vmatpush1.msra.mxu0 0.0
    %3582 = vmatprep.subr.mxu0 0.0
    %3583 = vmatpush1.msra.mxu0 0.0
    %3584 = vmatprep.subr.mxu0 0.0
    %3585 = vmatpush1.msra.mxu0 0.0
    %3586 = vmatprep.subr.mxu0 0.0
    %3587 = vmatpush1.msra.mxu0 %v3549
    %3588 = vmatprep.subr.mxu0 0.0
    %3589 = vmatpush1.msra.mxu0 %v3547
    %3590 = vmatprep.subr.mxu0 0.0
    %3591 = vmatpush2.msra.mxu0 0.0
    %3592 = vmatprep.subr.mxu0 0.0
    %3593 = vmatpush2.msra.mxu0 0.0
    %3594 = vmatprep.subr.mxu0 0.0
    %3595 = vmatpush2.msra.mxu0 0.0
    %3596 = vmatprep.subr.mxu0 0.0
    %3597 = vmatpush2.msra.mxu0 0.0
    %3598 = vmatprep.subr.mxu0 0.0
    %3599 = vmatpush2.msra.mxu0 0.0
    %3600 = vmatprep.subr.mxu0 0.0
    %3601 = vmatpush2.msra.mxu0 0.0
    %3602 = vmatprep.subr.mxu0 0.0
    %3603 = vmatpush2.msra.mxu0 0.0
    %3604 = vmatprep.subr.mxu0 0.0
    %3605 = vmatpush2.msra.mxu0 0.0
    %3606 = vmatprep.subr.mxu0 0.0
    %3607 = vmatpush2.msra.mxu0 0.0
    %3608 = vmatprep.subr.mxu0 0.0
    %3609 = vmatpush2.msra.mxu0 0.0
    %3610 = vmatprep.subr.mxu0 0.0
    %3611 = vmatpush2.msra.mxu0 0.0
    %3612 = vmatprep.subr.mxu0 0.0
    %3613 = vmatpush2.msra.mxu0 0.0
    %3614 = vmatprep.subr.mxu0 0.0
    %3615 = vmatpush2.msra.mxu0 0.0
    %3616 = vmatprep.subr.mxu0 0.0
    %3617 = vmatpush2.msra.mxu0 0.0
    %3618 = vmatprep.subr.mxu0 0.0
    %3619 = vmatpush2.msra.mxu0 0.0
    %3620 = vmatprep.subr.mxu0 0.0
    %3621 = vmatpush2.msra.mxu0 0.0
    %3622 = vmatprep.mubr.f32.mxu0 0.0
    %3623 = vmatmul.mubr.f32.gmra.mxu0 %v3553
    %v3624 = vpop.f32.mrf.mxu0
    %v3625 = vadd.f32 0.0, %v3624
    %v3626 = vpop.f32.mrf.mxu0
    %3627 = vmatprep.mubr.f32.mxu0 0.0
    %3628 = vmatmul.mubr.f32.gmra.mxu0 %v3556
    %v3629 = vpop.f32.mrf.mxu0
    %v3630 = vadd.f32 0.0, %v3629
    %v3631 = vpop.f32.mrf.mxu0
    %3632 = vdwg.mxu0
    %3633 = vrot.lane.b32.xlu0 %v2516, 48
    %v3634 = vpop.permute.xlu0 %3633
    %3635 = vrot.lane.b32.xlu0 %v2521, 48
    %v3636 = vpop.permute.xlu0 %3635
    %v3640 = vsel %vm456, %v3544, 0
    %v3643 = vsel %vm456, %v3545, 0
    %3645 = vmatprep.subr.mxu0 0.0
    %3646 = vmatpush1.msra.mxu0 0.0
    %3647 = vmatprep.subr.mxu0 0.0
    %3648 = vmatpush1.msra.mxu0 0.0
    %3649 = vmatprep.subr.mxu0 0.0
    %3650 = vmatpush1.msra.mxu0 0.0
    %3651 = vmatprep.subr.mxu0 0.0
    %3652 = vmatpush1.msra.mxu0 0.0
    %3653 = vmatprep.subr.mxu0 0.0
    %3654 = vmatpush1.msra.mxu0 0.0
    %3655 = vmatprep.subr.mxu0 0.0
    %3656 = vmatpush1.msra.mxu0 0.0
    %3657 = vmatprep.subr.mxu0 0.0
    %3658 = vmatpush1.msra.mxu0 0.0
    %3659 = vmatprep.subr.mxu0 0.0
    %3660 = vmatpush1.msra.mxu0 0.0
    %3661 = vmatprep.subr.mxu0 0.0
    %3662 = vmatpush1.msra.mxu0 0.0
    %3663 = vmatprep.subr.mxu0 0.0
    %3664 = vmatpush1.msra.mxu0 0.0
    %3665 = vmatprep.subr.mxu0 0.0
    %3666 = vmatpush1.msra.mxu0 0.0
    %3667 = vmatprep.subr.mxu0 0.0
    %3668 = vmatpush1.msra.mxu0 0.0
    %3669 = vmatprep.subr.mxu0 0.0
    %3670 = vmatpush1.msra.mxu0 0.0
    %3671 = vmatprep.subr.mxu0 0.0
    %3672 = vmatpush1.msra.mxu0 0.0
    %3673 = vmatprep.subr.mxu0 0.0
    %3674 = vmatpush1.msra.mxu0 %v3636
    %3675 = vmatprep.subr.mxu0 0.0
    %3676 = vmatpush1.msra.mxu0 %v3634
    %3677 = vmatprep.subr.mxu0 0.0
    %3678 = vmatpush2.msra.mxu0 0.0
    %3679 = vmatprep.subr.mxu0 0.0
    %3680 = vmatpush2.msra.mxu0 0.0
    %3681 = vmatprep.subr.mxu0 0.0
    %3682 = vmatpush2.msra.mxu0 0.0
    %3683 = vmatprep.subr.mxu0 0.0
    %3684 = vmatpush2.msra.mxu0 0.0
    %3685 = vmatprep.subr.mxu0 0.0
    %3686 = vmatpush2.msra.mxu0 0.0
    %3687 = vmatprep.subr.mxu0 0.0
    %3688 = vmatpush2.msra.mxu0 0.0
    %3689 = vmatprep.subr.mxu0 0.0
    %3690 = vmatpush2.msra.mxu0 0.0
    %3691 = vmatprep.subr.mxu0 0.0
    %3692 = vmatpush2.msra.mxu0 0.0
    %3693 = vmatprep.subr.mxu0 0.0
    %3694 = vmatpush2.msra.mxu0 0.0
    %3695 = vmatprep.subr.mxu0 0.0
    %3696 = vmatpush2.msra.mxu0 0.0
    %3697 = vmatprep.subr.mxu0 0.0
    %3698 = vmatpush2.msra.mxu0 0.0
    %3699 = vmatprep.subr.mxu0 0.0
    %3700 = vmatpush2.msra.mxu0 0.0
    %3701 = vmatprep.subr.mxu0 0.0
    %3702 = vmatpush2.msra.mxu0 0.0
    %3703 = vmatprep.subr.mxu0 0.0
    %3704 = vmatpush2.msra.mxu0 0.0
    %3705 = vmatprep.subr.mxu0 0.0
    %3706 = vmatpush2.msra.mxu0 0.0
    %3707 = vmatprep.subr.mxu0 0.0
    %3708 = vmatpush2.msra.mxu0 0.0
    %3709 = vmatprep.mubr.f32.mxu0 0.0
    %3710 = vmatmul.mubr.f32.gmra.mxu0 %v3640
    %v3711 = vpop.f32.mrf.mxu0
    %v3712 = vadd.f32 0.0, %v3711
    %v3713 = vpop.f32.mrf.mxu0
    %3714 = vmatprep.mubr.f32.mxu0 0.0
    %3715 = vmatmul.mubr.f32.gmra.mxu0 %v3643
    %v3716 = vpop.f32.mrf.mxu0
    %v3717 = vadd.f32 0.0, %v3716
    %v3718 = vpop.f32.mrf.mxu0
    %3719 = vdwg.mxu0
    %3720 = vrot.lane.b32.xlu0 %v2506, 104
    %v3721 = vpop.permute.xlu0 %3720
    %3722 = vrot.lane.b32.xlu0 %v2511, 104
    %v3723 = vpop.permute.xlu0 %3722
    %3724 = vrot.lane.b32.xlu0 %v2506, 72
    %v3725 = vpop.permute.xlu0 %3724
    %3726 = vrot.lane.b32.xlu0 %v2511, 72
    %v3727 = vpop.permute.xlu0 %3726
    %v3728 = vsel %vm283, %v3721, 0
    %v3730 = vsel %vm283, %v3723, 0
    %v3732 = vsel %vm283, %v3725, 0
    %v3734 = vsel %vm283, %v3727, 0
    %3736 = vmatprep.subr.mxu0 0.0
    %3737 = vmatpush1.xpose.msra.mxu0 0.0
    %3738 = vmatprep.subr.mxu0 0.0
    %3739 = vmatpush1.xpose.msra.mxu0 0.0
    %3740 = vmatprep.subr.mxu0 0.0
    %3741 = vmatpush1.xpose.msra.mxu0 0.0
    %3742 = vmatprep.subr.mxu0 0.0
    %3743 = vmatpush1.xpose.msra.mxu0 0.0
    %3744 = vmatprep.subr.mxu0 0.0
    %3745 = vmatpush1.xpose.msra.mxu0 0.0
    %3746 = vmatprep.subr.mxu0 0.0
    %3747 = vmatpush1.xpose.msra.mxu0 0.0
    %3748 = vmatprep.subr.mxu0 0.0
    %3749 = vmatpush1.xpose.msra.mxu0 0.0
    %3750 = vmatprep.subr.mxu0 0.0
    %3751 = vmatpush1.xpose.msra.mxu0 0.0
    %3752 = vmatprep.subr.mxu0 0.0
    %3753 = vmatpush1.xpose.msra.mxu0 0.0
    %3754 = vmatprep.subr.mxu0 0.0
    %3755 = vmatpush1.xpose.msra.mxu0 0.0
    %3756 = vmatprep.subr.mxu0 0.0
    %3757 = vmatpush1.xpose.msra.mxu0 0.0
    %3758 = vmatprep.subr.mxu0 0.0
    %3759 = vmatpush1.xpose.msra.mxu0 0.0
    %3760 = vmatprep.subr.mxu0 0.0
    %3761 = vmatpush1.xpose.msra.mxu0 0.0
    %3762 = vmatprep.subr.mxu0 0.0
    %3763 = vmatpush1.xpose.msra.mxu0 0.0
    %3764 = vmatprep.subr.mxu0 0.0
    %3765 = vmatpush1.xpose.msra.mxu0 %v3734
    %3766 = vmatprep.subr.mxu0 0.0
    %3767 = vmatpush1.xpose.msra.mxu0 %v3732
    %3768 = vmatprep.subr.mxu0 0.0
    %3769 = vmatpush2.xpose.msra.mxu0 0.0
    %3770 = vmatprep.subr.mxu0 0.0
    %3771 = vmatpush2.xpose.msra.mxu0 0.0
    %3772 = vmatprep.subr.mxu0 0.0
    %3773 = vmatpush2.xpose.msra.mxu0 0.0
    %3774 = vmatprep.subr.mxu0 0.0
    %3775 = vmatpush2.xpose.msra.mxu0 0.0
    %3776 = vmatprep.subr.mxu0 0.0
    %3777 = vmatpush2.xpose.msra.mxu0 0.0
    %3778 = vmatprep.subr.mxu0 0.0
    %3779 = vmatpush2.xpose.msra.mxu0 0.0
    %3780 = vmatprep.subr.mxu0 0.0
    %3781 = vmatpush2.xpose.msra.mxu0 0.0
    %3782 = vmatprep.subr.mxu0 0.0
    %3783 = vmatpush2.xpose.msra.mxu0 0.0
    %3784 = vmatprep.subr.mxu0 0.0
    %3785 = vmatpush2.xpose.msra.mxu0 0.0
    %3786 = vmatprep.subr.mxu0 0.0
    %3787 = vmatpush2.xpose.msra.mxu0 0.0
    %3788 = vmatprep.subr.mxu0 0.0
    %3789 = vmatpush2.xpose.msra.mxu0 0.0
    %3790 = vmatprep.subr.mxu0 0.0
    %3791 = vmatpush2.xpose.msra.mxu0 0.0
    %3792 = vmatprep.subr.mxu0 0.0
    %3793 = vmatpush2.xpose.msra.mxu0 0.0
    %3794 = vmatprep.subr.mxu0 0.0
    %3795 = vmatpush2.xpose.msra.mxu0 0.0
    %3796 = vmatprep.subr.mxu0 0.0
    %3797 = vmatpush2.xpose.msra.mxu0 0.0
    %3798 = vmatprep.subr.mxu0 0.0
    %3799 = vmatpush2.xpose.msra.mxu0 0.0
    %3800 = vmatprep.mubr.f32.mxu0 0.0
    %3801 = vmatmul.mubr.f32.gmra.mxu0 %v3728
    %v3802 = vpop.f32.mrf.mxu0
    %v3803 = vadd.f32 %v84, %v3802
    %v3804 = vpop.f32.mrf.mxu0
    %3805 = vmatprep.mubr.f32.mxu0 0.0
    %3806 = vmatmul.mubr.f32.gmra.mxu0 %v3730
    %v3807 = vpop.f32.mrf.mxu0
    %v3808 = vadd.f32 %v85, %v3807
    %v3809 = vpop.f32.mrf.mxu0
    %3810 = vdwg.mxu0
    %3811 = vrot.lane.b32.xlu0 %v2516, 104
    %v3812 = vpop.permute.xlu0 %3811
    %3813 = vrot.lane.b32.xlu0 %v2521, 104
    %v3814 = vpop.permute.xlu0 %3813
    %3815 = vrot.lane.b32.xlu0 %v2516, 72
    %v3816 = vpop.permute.xlu0 %3815
    %3817 = vrot.lane.b32.xlu0 %v2521, 72
    %v3818 = vpop.permute.xlu0 %3817
    %v3819 = vsel %vm283, %v3812, 0
    %v3821 = vsel %vm283, %v3814, 0
    %v3823 = vsel %vm283, %v3816, 0
    %v3825 = vsel %vm283, %v3818, 0
    %3827 = vmatprep.subr.mxu0 0.0
    %3828 = vmatpush1.xpose.msra.mxu0 0.0
    %3829 = vmatprep.subr.mxu0 0.0
    %3830 = vmatpush1.xpose.msra.mxu0 0.0
    %3831 = vmatprep.subr.mxu0 0.0
    %3832 = vmatpush1.xpose.msra.mxu0 0.0
    %3833 = vmatprep.subr.mxu0 0.0
    %3834 = vmatpush1.xpose.msra.mxu0 0.0
    %3835 = vmatprep.subr.mxu0 0.0
    %3836 = vmatpush1.xpose.msra.mxu0 0.0
    %3837 = vmatprep.subr.mxu0 0.0
    %3838 = vmatpush1.xpose.msra.mxu0 0.0
    %3839 = vmatprep.subr.mxu0 0.0
    %3840 = vmatpush1.xpose.msra.mxu0 0.0
    %3841 = vmatprep.subr.mxu0 0.0
    %3842 = vmatpush1.xpose.msra.mxu0 0.0
    %3843 = vmatprep.subr.mxu0 0.0
    %3844 = vmatpush1.xpose.msra.mxu0 0.0
    %3845 = vmatprep.subr.mxu0 0.0
    %3846 = vmatpush1.xpose.msra.mxu0 0.0
    %3847 = vmatprep.subr.mxu0 0.0
    %3848 = vmatpush1.xpose.msra.mxu0 0.0
    %3849 = vmatprep.subr.mxu0 0.0
    %3850 = vmatpush1.xpose.msra.mxu0 0.0
    %3851 = vmatprep.subr.mxu0 0.0
    %3852 = vmatpush1.xpose.msra.mxu0 0.0
    %3853 = vmatprep.subr.mxu0 0.0
    %3854 = vmatpush1.xpose.msra.mxu0 0.0
    %3855 = vmatprep.subr.mxu0 0.0
    %3856 = vmatpush1.xpose.msra.mxu0 %v3825
    %3857 = vmatprep.subr.mxu0 0.0
    %3858 = vmatpush1.xpose.msra.mxu0 %v3823
    %3859 = vmatprep.subr.mxu0 0.0
    %3860 = vmatpush2.xpose.msra.mxu0 0.0
    %3861 = vmatprep.subr.mxu0 0.0
    %3862 = vmatpush2.xpose.msra.mxu0 0.0
    %3863 = vmatprep.subr.mxu0 0.0
    %3864 = vmatpush2.xpose.msra.mxu0 0.0
    %3865 = vmatprep.subr.mxu0 0.0
    %3866 = vmatpush2.xpose.msra.mxu0 0.0
    %3867 = vmatprep.subr.mxu0 0.0
    %3868 = vmatpush2.xpose.msra.mxu0 0.0
    %3869 = vmatprep.subr.mxu0 0.0
    %3870 = vmatpush2.xpose.msra.mxu0 0.0
    %3871 = vmatprep.subr.mxu0 0.0
    %3872 = vmatpush2.xpose.msra.mxu0 0.0
    %3873 = vmatprep.subr.mxu0 0.0
    %3874 = vmatpush2.xpose.msra.mxu0 0.0
    %3875 = vmatprep.subr.mxu0 0.0
    %3876 = vmatpush2.xpose.msra.mxu0 0.0
    %3877 = vmatprep.subr.mxu0 0.0
    %3878 = vmatpush2.xpose.msra.mxu0 0.0
    %3879 = vmatprep.subr.mxu0 0.0
    %3880 = vmatpush2.xpose.msra.mxu0 0.0
    %3881 = vmatprep.subr.mxu0 0.0
    %3882 = vmatpush2.xpose.msra.mxu0 0.0
    %3883 = vmatprep.subr.mxu0 0.0
    %3884 = vmatpush2.xpose.msra.mxu0 0.0
    %3885 = vmatprep.subr.mxu0 0.0
    %3886 = vmatpush2.xpose.msra.mxu0 0.0
    %3887 = vmatprep.subr.mxu0 0.0
    %3888 = vmatpush2.xpose.msra.mxu0 0.0
    %3889 = vmatprep.subr.mxu0 0.0
    %3890 = vmatpush2.xpose.msra.mxu0 0.0
    %3891 = vmatprep.mubr.f32.mxu0 0.0
    %3892 = vmatmul.mubr.f32.gmra.mxu0 %v3819
    %v3893 = vpop.f32.mrf.mxu0
    %v3894 = vadd.f32 %v92, %v3893
    %v3895 = vpop.f32.mrf.mxu0
    %3896 = vmatprep.mubr.f32.mxu0 0.0
    %3897 = vmatmul.mubr.f32.gmra.mxu0 %v3821
    %v3898 = vpop.f32.mrf.mxu0
    %v3899 = vadd.f32 %v93, %v3898
    %v3900 = vpop.f32.mrf.mxu0
    %3901 = vdwg.mxu0
    %v3902 = vsel %vm456, %v3803, -inf
    %3903 = vmax.xlane.f32.xlu0 %v3902
    %v3904 = vpop.xlane.xlu0 %3903
    %v3905 = vsel %vm456, %v3808, -inf
    %3906 = vmax.xlane.f32.xlu0 %v3905
    %v3907 = vpop.xlane.xlu0 %3906
    %v3908 = vsel %vm456, %v3894, -inf
    %3909 = vmax.xlane.f32.xlu0 %v3908
    %v3910 = vpop.xlane.xlu0 %3909
    %v3911 = vsel %vm456, %v3899, -inf
    %3912 = vmax.xlane.f32.xlu0 %v3911
    %v3913 = vpop.xlane.xlu0 %3912
    %v3914 = vsub.f32 %v3803, %v3904
    %v3915 = vsub.f32 %v3808, %v3907
    %v3916 = vsub.f32 %v3894, %v3910
    %v3917 = vsub.f32 %v3899, %v3913
    %v3918 = vmul.f32 %v3914, 1.442695
    %v3919 = vpow.pop %v3918
    %v3920 = vmul.f32 %v3915, 1.442695
    %v3921 = vpow.pop %v3920
    %v3922 = vmul.f32 %v3916, 1.442695
    %v3923 = vpow.pop %v3922
    %v3924 = vmul.f32 %v3917, 1.442695
    %v3925 = vpow.pop %v3924
    %v3926 = vsel %vm456, %v3919, 0.0
    %3927 = vadd.xlane.f32.xlu0 %v3926
    %v3928 = vpop.xlane.xlu0 %3927
    %v3929 = vsel %vm456, %v3921, 0.0
    %3930 = vadd.xlane.f32.xlu0 %v3929
    %v3931 = vpop.xlane.xlu0 %3930
    %v3932 = vsel %vm456, %v3923, 0.0
    %3933 = vadd.xlane.f32.xlu0 %v3932
    %v3934 = vpop.xlane.xlu0 %3933
    %v3935 = vsel %vm456, %v3925, 0.0
    %3936 = vadd.xlane.f32.xlu0 %v3935
    %v3937 = vpop.xlane.xlu0 %3936
    %v3938 = vrcp.pop %v3928
    %v3939 = vrcp.pop %v3931
    %v3940 = vrcp.pop %v3934
    %v3941 = vrcp.pop %v3937
    %v3942 = vmul.f32 %v3919, %v3938
    %v3943 = vmul.f32 %v3921, %v3939
    %v3944 = vmul.f32 %v3923, %v3940
    %v3945 = vmul.f32 %v3925, %v3941
    %3946 = vrot.lane.b32.xlu0 %v2506, 40
    %v3947 = vpop.permute.xlu0 %3946
    %3948 = vrot.lane.b32.xlu0 %v2511, 40
    %v3949 = vpop.permute.xlu0 %3948
    %v3953 = vsel %vm456, %v3942, 0
    %v3956 = vsel %vm456, %v3943, 0
    %3958 = vmatprep.subr.mxu0 0.0
    %3959 = vmatpush1.msra.mxu0 0.0
    %3960 = vmatprep.subr.mxu0 0.0
    %3961 = vmatpush1.msra.mxu0 0.0
    %3962 = vmatprep.subr.mxu0 0.0
    %3963 = vmatpush1.msra.mxu0 0.0
    %3964 = vmatprep.subr.mxu0 0.0
    %3965 = vmatpush1.msra.mxu0 0.0
    %3966 = vmatprep.subr.mxu0 0.0
    %3967 = vmatpush1.msra.mxu0 0.0
    %3968 = vmatprep.subr.mxu0 0.0
    %3969 = vmatpush1.msra.mxu0 0.0
    %3970 = vmatprep.subr.mxu0 0.0
    %3971 = vmatpush1.msra.mxu0 0.0
    %3972 = vmatprep.subr.mxu0 0.0
    %3973 = vmatpush1.msra.mxu0 0.0
    %3974 = vmatprep.subr.mxu0 0.0
    %3975 = vmatpush1.msra.mxu0 0.0
    %3976 = vmatprep.subr.mxu0 0.0
    %3977 = vmatpush1.msra.mxu0 0.0
    %3978 = vmatprep.subr.mxu0 0.0
    %3979 = vmatpush1.msra.mxu0 0.0
    %3980 = vmatprep.subr.mxu0 0.0
    %3981 = vmatpush1.msra.mxu0 0.0
    %3982 = vmatprep.subr.mxu0 0.0
    %3983 = vmatpush1.msra.mxu0 0.0
    %3984 = vmatprep.subr.mxu0 0.0
    %3985 = vmatpush1.msra.mxu0 0.0
    %3986 = vmatprep.subr.mxu0 0.0
    %3987 = vmatpush1.msra.mxu0 %v3949
    %3988 = vmatprep.subr.mxu0 0.0
    %3989 = vmatpush1.msra.mxu0 %v3947
    %3990 = vmatprep.subr.mxu0 0.0
    %3991 = vmatpush2.msra.mxu0 0.0
    %3992 = vmatprep.subr.mxu0 0.0
    %3993 = vmatpush2.msra.mxu0 0.0
    %3994 = vmatprep.subr.mxu0 0.0
    %3995 = vmatpush2.msra.mxu0 0.0
    %3996 = vmatprep.subr.mxu0 0.0
    %3997 = vmatpush2.msra.mxu0 0.0
    %3998 = vmatprep.subr.mxu0 0.0
    %3999 = vmatpush2.msra.mxu0 0.0
    %4000 = vmatprep.subr.mxu0 0.0
    %4001 = vmatpush2.msra.mxu0 0.0
    %4002 = vmatprep.subr.mxu0 0.0
    %4003 = vmatpush2.msra.mxu0 0.0
    %4004 = vmatprep.subr.mxu0 0.0
    %4005 = vmatpush2.msra.mxu0 0.0
    %4006 = vmatprep.subr.mxu0 0.0
    %4007 = vmatpush2.msra.mxu0 0.0
    %4008 = vmatprep.subr.mxu0 0.0
    %4009 = vmatpush2.msra.mxu0 0.0
    %4010 = vmatprep.subr.mxu0 0.0
    %4011 = vmatpush2.msra.mxu0 0.0
    %4012 = vmatprep.subr.mxu0 0.0
    %4013 = vmatpush2.msra.mxu0 0.0
    %4014 = vmatprep.subr.mxu0 0.0
    %4015 = vmatpush2.msra.mxu0 0.0
    %4016 = vmatprep.subr.mxu0 0.0
    %4017 = vmatpush2.msra.mxu0 0.0
    %4018 = vmatprep.subr.mxu0 0.0
    %4019 = vmatpush2.msra.mxu0 0.0
    %4020 = vmatprep.subr.mxu0 0.0
    %4021 = vmatpush2.msra.mxu0 0.0
    %4022 = vmatprep.mubr.f32.mxu0 0.0
    %4023 = vmatmul.mubr.f32.gmra.mxu0 %v3953
    %v4024 = vpop.f32.mrf.mxu0
    %v4025 = vadd.f32 0.0, %v4024
    %v4026 = vpop.f32.mrf.mxu0
    %4027 = vmatprep.mubr.f32.mxu0 0.0
    %4028 = vmatmul.mubr.f32.gmra.mxu0 %v3956
    %v4029 = vpop.f32.mrf.mxu0
    %v4030 = vadd.f32 0.0, %v4029
    %v4031 = vpop.f32.mrf.mxu0
    %4032 = vdwg.mxu0
    %4033 = vrot.lane.b32.xlu0 %v2516, 40
    %v4034 = vpop.permute.xlu0 %4033
    %4035 = vrot.lane.b32.xlu0 %v2521, 40
    %v4036 = vpop.permute.xlu0 %4035
    %v4040 = vsel %vm456, %v3944, 0
    %v4043 = vsel %vm456, %v3945, 0
    %4045 = vmatprep.subr.mxu0 0.0
    %4046 = vmatpush1.msra.mxu0 0.0
    %4047 = vmatprep.subr.mxu0 0.0
    %4048 = vmatpush1.msra.mxu0 0.0
    %4049 = vmatprep.subr.mxu0 0.0
    %4050 = vmatpush1.msra.mxu0 0.0
    %4051 = vmatprep.subr.mxu0 0.0
    %4052 = vmatpush1.msra.mxu0 0.0
    %4053 = vmatprep.subr.mxu0 0.0
    %4054 = vmatpush1.msra.mxu0 0.0
    %4055 = vmatprep.subr.mxu0 0.0
    %4056 = vmatpush1.msra.mxu0 0.0
    %4057 = vmatprep.subr.mxu0 0.0
    %4058 = vmatpush1.msra.mxu0 0.0
    %4059 = vmatprep.subr.mxu0 0.0
    %4060 = vmatpush1.msra.mxu0 0.0
    %4061 = vmatprep.subr.mxu0 0.0
    %4062 = vmatpush1.msra.mxu0 0.0
    %4063 = vmatprep.subr.mxu0 0.0
    %4064 = vmatpush1.msra.mxu0 0.0
    %4065 = vmatprep.subr.mxu0 0.0
    %4066 = vmatpush1.msra.mxu0 0.0
    %4067 = vmatprep.subr.mxu0 0.0
    %4068 = vmatpush1.msra.mxu0 0.0
    %4069 = vmatprep.subr.mxu0 0.0
    %4070 = vmatpush1.msra.mxu0 0.0
    %4071 = vmatprep.subr.mxu0 0.0
    %4072 = vmatpush1.msra.mxu0 0.0
    %4073 = vmatprep.subr.mxu0 0.0
    %4074 = vmatpush1.msra.mxu0 %v4036
    %4075 = vmatprep.subr.mxu0 0.0
    %4076 = vmatpush1.msra.mxu0 %v4034
    %4077 = vmatprep.subr.mxu0 0.0
    %4078 = vmatpush2.msra.mxu0 0.0
    %4079 = vmatprep.subr.mxu0 0.0
    %4080 = vmatpush2.msra.mxu0 0.0
    %4081 = vmatprep.subr.mxu0 0.0
    %4082 = vmatpush2.msra.mxu0 0.0
    %4083 = vmatprep.subr.mxu0 0.0
    %4084 = vmatpush2.msra.mxu0 0.0
    %4085 = vmatprep.subr.mxu0 0.0
    %4086 = vmatpush2.msra.mxu0 0.0
    %4087 = vmatprep.subr.mxu0 0.0
    %4088 = vmatpush2.msra.mxu0 0.0
    %4089 = vmatprep.subr.mxu0 0.0
    %4090 = vmatpush2.msra.mxu0 0.0
    %4091 = vmatprep.subr.mxu0 0.0
    %4092 = vmatpush2.msra.mxu0 0.0
    %4093 = vmatprep.subr.mxu0 0.0
    %4094 = vmatpush2.msra.mxu0 0.0
    %4095 = vmatprep.subr.mxu0 0.0
    %4096 = vmatpush2.msra.mxu0 0.0
    %4097 = vmatprep.subr.mxu0 0.0
    %4098 = vmatpush2.msra.mxu0 0.0
    %4099 = vmatprep.subr.mxu0 0.0
    %4100 = vmatpush2.msra.mxu0 0.0
    %4101 = vmatprep.subr.mxu0 0.0
    %4102 = vmatpush2.msra.mxu0 0.0
    %4103 = vmatprep.subr.mxu0 0.0
    %4104 = vmatpush2.msra.mxu0 0.0
    %4105 = vmatprep.subr.mxu0 0.0
    %4106 = vmatpush2.msra.mxu0 0.0
    %4107 = vmatprep.subr.mxu0 0.0
    %4108 = vmatpush2.msra.mxu0 0.0
    %4109 = vmatprep.mubr.f32.mxu0 0.0
    %4110 = vmatmul.mubr.f32.gmra.mxu0 %v4040
    %v4111 = vpop.f32.mrf.mxu0
    %v4112 = vadd.f32 0.0, %v4111
    %v4113 = vpop.f32.mrf.mxu0
    %4114 = vmatprep.mubr.f32.mxu0 0.0
    %4115 = vmatmul.mubr.f32.gmra.mxu0 %v4043
    %v4116 = vpop.f32.mrf.mxu0
    %v4117 = vadd.f32 0.0, %v4116
    %v4118 = vpop.f32.mrf.mxu0
    %4119 = vdwg.mxu0
    %4124 = vrot.lane.b32.xlu0 %v3225, 8
    %v4125 = vpop.permute.xlu0 %4124
    %4126 = vrot.lane.b32.xlu0 %v3230, 8
    %v4127 = vpop.permute.xlu0 %4126
    %4128 = vrot.lane.b32.xlu0 %v3312, 8
    %v4129 = vpop.permute.xlu0 %4128
    %4130 = vrot.lane.b32.xlu0 %v3317, 8
    %v4131 = vpop.permute.xlu0 %4130
    %4140 = vrot.lane.b32.xlu0 %v3625, 16
    %v4141 = vpop.permute.xlu0 %4140
    %4142 = vrot.lane.b32.xlu0 %v3630, 16
    %v4143 = vpop.permute.xlu0 %4142
    %4144 = vrot.lane.b32.xlu0 %v3712, 16
    %v4145 = vpop.permute.xlu0 %4144
    %4146 = vrot.lane.b32.xlu0 %v3717, 16
    %v4147 = vpop.permute.xlu0 %4146
    %4156 = vrot.lane.b32.xlu0 %v4025, 24
    %v4157 = vpop.permute.xlu0 %4156
    %4158 = vrot.lane.b32.xlu0 %v4030, 24
    %v4159 = vpop.permute.xlu0 %4158
    %4160 = vrot.lane.b32.xlu0 %v4112, 24
    %v4161 = vpop.permute.xlu0 %4160
    %4162 = vrot.lane.b32.xlu0 %v4117, 24
    %v4163 = vpop.permute.xlu0 %4162
    %v4168 = vsel %vm283, %v2825, %v4125
    %v4169 = vsel %vm283, %v2830, %v4127
    %v4170 = vsel %vm283, %v2912, %v4129
    %v4171 = vsel %vm283, %v2917, %v4131
    %v4172 = vsel %vm456, %v4168, %v4141
    %v4173 = vsel %vm456, %v4169, %v4143
    %v4174 = vsel %vm456, %v4170, %v4145
    %v4175 = vsel %vm456, %v4171, %v4147
    %v4176 = vsel %vm1931, %v4172, %v4157
    %v4177 = vsel %vm1931, %v4173, %v4159
    %v4178 = vsel %vm1931, %v4174, %v4161
    %v4179 = vsel %vm1931, %v4175, %v4163
    %s4180 = scalar_lea.vmem [#allocation5], 32
    %v4181 = vld [vmem:[%s4180] sm:$0xff]
    %v4182 = vld [vmem:[%s4180 + $0x8] sm:$0xff]
    %v4183 = vld [vmem:[%s4180 + $0x10] sm:$0xff]
    %v4184 = vld [vmem:[%s4180 + $0x18] sm:$0xff]
    %v4185 = vlaneseq
    %v4186 = vshrl.u32 %v4185, 7
    %v4187 = vsub.s32 2, %v4186
    %v4188 = vrot.slane %v2345, %v4187
    %v4190 = vsel %vm94, %v4176, 0
    %v4193 = vsel %vm94, %v4177, 0
    %v4196 = vsel %vm94, %v4178, 0
    %v4199 = vsel %vm94, %v4179, 0
    %4201 = vmatprep.subr.mxu0 0.0
    %4202 = vmatpush1.msra.mxu0 0.0
    %4203 = vmatprep.subr.mxu0 0.0
    %4204 = vmatpush1.msra.mxu0 0.0
    %4205 = vmatprep.subr.mxu0 0.0
    %4206 = vmatpush1.msra.mxu0 0.0
    %4207 = vmatprep.subr.mxu0 0.0
    %4208 = vmatpush1.msra.mxu0 0.0
    %4209 = vmatprep.subr.mxu0 0.0
    %4210 = vmatpush1.msra.mxu0 0.0
    %4211 = vmatprep.subr.mxu0 0.0
    %4212 = vmatpush1.msra.mxu0 0.0
    %4213 = vmatprep.subr.mxu0 0.0
    %4214 = vmatpush1.msra.mxu0 0.0
    %4215 = vmatprep.subr.mxu0 0.0
    %4216 = vmatpush1.msra.mxu0 0.0
    %4217 = vmatprep.subr.mxu0 0.0
    %4218 = vmatpush1.msra.mxu0 0.0
    %4219 = vmatprep.subr.mxu0 0.0
    %4220 = vmatpush1.msra.mxu0 0.0
    %4221 = vmatprep.subr.mxu0 0.0
    %4222 = vmatpush1.msra.mxu0 0.0
    %4223 = vmatprep.subr.mxu0 0.0
    %4224 = vmatpush1.msra.mxu0 0.0
    %4225 = vmatprep.subr.mxu0 0.0
    %4226 = vmatpush1.msra.mxu0 %v4184
    %4227 = vmatprep.subr.mxu0 0.0
    %4228 = vmatpush1.msra.mxu0 %v4183
    %4229 = vmatprep.subr.mxu0 0.0
    %4230 = vmatpush1.msra.mxu0 %v4182
    %4231 = vmatprep.subr.mxu0 0.0
    %4232 = vmatpush1.msra.mxu0 %v4181
    %4233 = vmatprep.subr.mxu0 0.0
    %4234 = vmatpush2.msra.mxu0 0.0
    %4235 = vmatprep.subr.mxu0 0.0
    %4236 = vmatpush2.msra.mxu0 0.0
    %4237 = vmatprep.subr.mxu0 0.0
    %4238 = vmatpush2.msra.mxu0 0.0
    %4239 = vmatprep.subr.mxu0 0.0
    %4240 = vmatpush2.msra.mxu0 0.0
    %4241 = vmatprep.subr.mxu0 0.0
    %4242 = vmatpush2.msra.mxu0 0.0
    %4243 = vmatprep.subr.mxu0 0.0
    %4244 = vmatpush2.msra.mxu0 0.0
    %4245 = vmatprep.subr.mxu0 0.0
    %4246 = vmatpush2.msra.mxu0 0.0
    %4247 = vmatprep.subr.mxu0 0.0
    %4248 = vmatpush2.msra.mxu0 0.0
    %4249 = vmatprep.subr.mxu0 0.0
    %4250 = vmatpush2.msra.mxu0 0.0
    %4251 = vmatprep.subr.mxu0 0.0
    %4252 = vmatpush2.msra.mxu0 0.0
    %4253 = vmatprep.subr.mxu0 0.0
    %4254 = vmatpush2.msra.mxu0 0.0
    %4255 = vmatprep.subr.mxu0 0.0
    %4256 = vmatpush2.msra.mxu0 0.0
    %4257 = vmatprep.subr.mxu0 0.0
    %4258 = vmatpush2.msra.mxu0 0.0
    %4259 = vmatprep.subr.mxu0 0.0
    %4260 = vmatpush2.msra.mxu0 0.0
    %4261 = vmatprep.subr.mxu0 0.0
    %4262 = vmatpush2.msra.mxu0 0.0
    %4263 = vmatprep.subr.mxu0 0.0
    %4264 = vmatpush2.msra.mxu0 0.0
    %4265 = vmatprep.mubr.f32.mxu0 0.0
    %4266 = vmatmul.mubr.f32.gmra.mxu0 %v4190
    %v4267 = vpop.f32.mrf.mxu0
    %v4268 = vadd.f32 %v4188, %v4267
    %v4269 = vpop.f32.mrf.mxu0
    %4270 = vmatprep.mubr.f32.mxu0 0.0
    %4271 = vmatmul.mubr.f32.gmra.mxu0 %v4193
    %v4272 = vpop.f32.mrf.mxu0
    %v4273 = vadd.f32 %v4188, %v4272
    %v4274 = vpop.f32.mrf.mxu0
    %4275 = vmatprep.mubr.f32.mxu0 0.0
    %4276 = vmatmul.mubr.f32.gmra.mxu0 %v4196
    %v4277 = vpop.f32.mrf.mxu0
    %v4278 = vadd.f32 %v4188, %v4277
    %v4279 = vpop.f32.mrf.mxu0
    %4280 = vmatprep.mubr.f32.mxu0 0.0
    %4281 = vmatmul.mubr.f32.gmra.mxu0 %v4199
    %v4282 = vpop.f32.mrf.mxu0
    %v4283 = vadd.f32 %v4188, %v4282
    %v4284 = vpop.f32.mrf.mxu0
    %4285 = vdwg.mxu0
    %v4286 = vadd.f32 %v2335, %v4268
    %v4287 = vadd.f32 %v2336, %v4273
    %v4288 = vadd.f32 %v2337, %v4278
    %v4289 = vadd.f32 %v2338, %v4283
    %v4290 = vsel %vm94, %v4286, 0.0
    %4291 = vadd.xlane.f32.xlu0 %v4290
    %v4292 = vpop.xlane.xlu0 %4291
    %v4293 = vsel %vm94, %v4287, 0.0
    %4294 = vadd.xlane.f32.xlu0 %v4293
    %v4295 = vpop.xlane.xlu0 %4294
    %v4296 = vsel %vm94, %v4288, 0.0
    %4297 = vadd.xlane.f32.xlu0 %v4296
    %v4298 = vpop.xlane.xlu0 %4297
    %v4299 = vsel %vm94, %v4289, 0.0
    %4300 = vadd.xlane.f32.xlu0 %v4299
    %v4301 = vpop.xlane.xlu0 %4300
    %v4302 = vmul.f32 %v4292, %v112
    %v4303 = vmul.f32 %v4295, %v112
    %v4304 = vmul.f32 %v4298, %v112
    %v4305 = vmul.f32 %v4301, %v112
    %v4306 = vsub.f32 %v4286, %v4302
    %v4307 = vsub.f32 %v4287, %v4303
    %v4308 = vsub.f32 %v4288, %v4304
    %v4309 = vsub.f32 %v4289, %v4305
    %v4310 = vmul.f32 %v4306, %v4306
    %v4311 = vmul.f32 %v4307, %v4307
    %v4312 = vmul.f32 %v4308, %v4308
    %v4313 = vmul.f32 %v4309, %v4309
    %v4314 = vsel %vm94, %v4310, 0.0
    %4315 = vadd.xlane.f32.xlu0 %v4314
    %v4316 = vpop.xlane.xlu0 %4315
    %v4317 = vsel %vm94, %v4311, 0.0
    %4318 = vadd.xlane.f32.xlu0 %v4317
    %v4319 = vpop.xlane.xlu0 %4318
    %v4320 = vsel %vm94, %v4312, 0.0
    %4321 = vadd.xlane.f32.xlu0 %v4320
    %v4322 = vpop.xlane.xlu0 %4321
    %v4323 = vsel %vm94, %v4313, 0.0
    %4324 = vadd.xlane.f32.xlu0 %v4323
    %v4325 = vpop.xlane.xlu0 %4324
    %v4326 = vmul.f32 %v4316, %v112
    %v4327 = vmul.f32 %v4319, %v112
    %v4328 = vmul.f32 %v4322, %v112
    %v4329 = vmul.f32 %v4325, %v112
    %v4330 = vadd.f32 %v4326, 1e-05
    %v4331 = vadd.f32 %v4327, 1e-05
    %v4332 = vadd.f32 %v4328, 1e-05
    %v4333 = vadd.f32 %v4329, 1e-05
    %v4334 = vrsqrt.pop %v4330
    %v4335 = vrsqrt.pop %v4331
    %v4336 = vrsqrt.pop %v4332
    %v4337 = vrsqrt.pop %v4333
    %v4338 = vmul.f32 %v4306, %v4334
    %v4339 = vmul.f32 %v4307, %v4335
    %v4340 = vmul.f32 %v4308, %v4336
    %v4341 = vmul.f32 %v4309, %v4337
    %v4342 = vlaneseq
    %v4343 = vshrl.u32 %v4342, 7
    %v4344 = vsub.s32 3, %v4343
    %v4345 = vrot.slane %v2345, %v4344
    %v4346 = vmul.f32 %v4338, %v4345
    %v4347 = vmul.f32 %v4339, %v4345
    %v4348 = vmul.f32 %v4340, %v4345
    %v4349 = vmul.f32 %v4341, %v4345
    %v4350 = vlaneseq
    %v4351 = vshrl.u32 %v4350, 7
    %v4352 = vsub.s32 4, %v4351
    %v4353 = vrot.slane %v2345, %v4352
    %v4354 = vadd.f32 %v4346, %v4353
    %v4355 = vadd.f32 %v4347, %v4353
    %v4356 = vadd.f32 %v4348, %v4353
    %v4357 = vadd.f32 %v4349, %v4353
    %s4358 = scalar_lea.vmem [#allocation7], 32
    %v4359 = vld [vmem:[%s4358] sm:$0xff]
    %v4360 = vld [vmem:[%s4358 + $0x8] sm:$0xff]
    %v4361 = vld [vmem:[%s4358 + $0x10] sm:$0xff]
    %v4362 = vld [vmem:[%s4358 + $0x18] sm:$0xff]
    %s4363 = scalar_lea.vmem %s7, 1
    %v4364 = vld [vmem:[%s4363] sm:$0x1]
    %v4366 = vlaneseq
    %v4367 = vshrl.u32 %v4366, 7
    %v4368 = vsub.s32 0, %v4367
    %v4369 = vrot.slane %v4364, %v4368
    %v4372 = vsel %vm94, %v4354, 0
    %v4375 = vsel %vm94, %v4355, 0
    %v4378 = vsel %vm94, %v4356, 0
    %v4381 = vsel %vm94, %v4357, 0
    %4383 = vmatprep.subr.mxu0 0.0
    %4384 = vmatpush1.msra.mxu0 0.0
    %4385 = vmatprep.subr.mxu0 0.0
    %4386 = vmatpush1.msra.mxu0 0.0
    %4387 = vmatprep.subr.mxu0 0.0
    %4388 = vmatpush1.msra.mxu0 0.0
    %4389 = vmatprep.subr.mxu0 0.0
    %4390 = vmatpush1.msra.mxu0 0.0
    %4391 = vmatprep.subr.mxu0 0.0
    %4392 = vmatpush1.msra.mxu0 0.0
    %4393 = vmatprep.subr.mxu0 0.0
    %4394 = vmatpush1.msra.mxu0 0.0
    %4395 = vmatprep.subr.mxu0 0.0
    %4396 = vmatpush1.msra.mxu0 0.0
    %4397 = vmatprep.subr.mxu0 0.0
    %4398 = vmatpush1.msra.mxu0 0.0
    %4399 = vmatprep.subr.mxu0 0.0
    %4400 = vmatpush1.msra.mxu0 0.0
    %4401 = vmatprep.subr.mxu0 0.0
    %4402 = vmatpush1.msra.mxu0 0.0
    %4403 = vmatprep.subr.mxu0 0.0
    %4404 = vmatpush1.msra.mxu0 0.0
    %4405 = vmatprep.subr.mxu0 0.0
    %4406 = vmatpush1.msra.mxu0 0.0
    %4407 = vmatprep.subr.mxu0 0.0
    %4408 = vmatpush1.msra.mxu0 %v4362
    %4409 = vmatprep.subr.mxu0 0.0
    %4410 = vmatpush1.msra.mxu0 %v4361
    %4411 = vmatprep.subr.mxu0 0.0
    %4412 = vmatpush1.msra.mxu0 %v4360
    %4413 = vmatprep.subr.mxu0 0.0
    %4414 = vmatpush1.msra.mxu0 %v4359
    %4415 = vmatprep.subr.mxu0 0.0
    %4416 = vmatpush2.msra.mxu0 0.0
    %4417 = vmatprep.subr.mxu0 0.0
    %4418 = vmatpush2.msra.mxu0 0.0
    %4419 = vmatprep.subr.mxu0 0.0
    %4420 = vmatpush2.msra.mxu0 0.0
    %4421 = vmatprep.subr.mxu0 0.0
    %4422 = vmatpush2.msra.mxu0 0.0
    %4423 = vmatprep.subr.mxu0 0.0
    %4424 = vmatpush2.msra.mxu0 0.0
    %4425 = vmatprep.subr.mxu0 0.0
    %4426 = vmatpush2.msra.mxu0 0.0
    %4427 = vmatprep.subr.mxu0 0.0
    %4428 = vmatpush2.msra.mxu0 0.0
    %4429 = vmatprep.subr.mxu0 0.0
    %4430 = vmatpush2.msra.mxu0 0.0
    %4431 = vmatprep.subr.mxu0 0.0
    %4432 = vmatpush2.msra.mxu0 0.0
    %4433 = vmatprep.subr.mxu0 0.0
    %4434 = vmatpush2.msra.mxu0 0.0
    %4435 = vmatprep.subr.mxu0 0.0
    %4436 = vmatpush2.msra.mxu0 0.0
    %4437 = vmatprep.subr.mxu0 0.0
    %4438 = vmatpush2.msra.mxu0 0.0
    %4439 = vmatprep.subr.mxu0 0.0
    %4440 = vmatpush2.msra.mxu0 0.0
    %4441 = vmatprep.subr.mxu0 0.0
    %4442 = vmatpush2.msra.mxu0 0.0
    %4443 = vmatprep.subr.mxu0 0.0
    %4444 = vmatpush2.msra.mxu0 0.0
    %4445 = vmatprep.subr.mxu0 0.0
    %4446 = vmatpush2.msra.mxu0 0.0
    %4447 = vmatprep.mubr.f32.mxu0 0.0
    %4448 = vmatmul.mubr.f32.gmra.mxu0 %v4372
    %v4449 = vpop.f32.mrf.mxu0
    %v4450 = vadd.f32 %v4369, %v4449
    %v4451 = vpop.f32.mrf.mxu0
    %4452 = vmatprep.mubr.f32.mxu0 0.0
    %4453 = vmatmul.mubr.f32.gmra.mxu0 %v4375
    %v4454 = vpop.f32.mrf.mxu0
    %v4455 = vadd.f32 %v4369, %v4454
    %v4456 = vpop.f32.mrf.mxu0
    %4457 = vmatprep.mubr.f32.mxu0 0.0
    %4458 = vmatmul.mubr.f32.gmra.mxu0 %v4378
    %v4459 = vpop.f32.mrf.mxu0
    %v4460 = vadd.f32 %v4369, %v4459
    %v4461 = vpop.f32.mrf.mxu0
    %4462 = vmatprep.mubr.f32.mxu0 0.0
    %4463 = vmatmul.mubr.f32.gmra.mxu0 %v4381
    %v4464 = vpop.f32.mrf.mxu0
    %v4465 = vadd.f32 %v4369, %v4464
    %v4466 = vpop.f32.mrf.mxu0
    %4467 = vdwg.mxu0
    %v4468 = vmax.f32 %v4450, 0.0
    %v4469 = vmax.f32 %v4455, 0.0
    %v4470 = vmax.f32 %v4460, 0.0
    %v4471 = vmax.f32 %v4465, 0.0
    %s4472 = scalar_lea.vmem %s8, 64
    %v4473 = vld [vmem:[%s4472] sm:$0xff]
    %v4474 = vld [vmem:[%s4472 + $0x8] sm:$0xff]
    %v4475 = vld [vmem:[%s4472 + $0x10] sm:$0xff]
    %v4476 = vld [vmem:[%s4472 + $0x18] sm:$0xff]
    %v4477 = vld [vmem:[%s4472 + $0x20] sm:$0xff]
    %v4478 = vld [vmem:[%s4472 + $0x28] sm:$0xff]
    %v4479 = vld [vmem:[%s4472 + $0x30] sm:$0xff]
    %v4480 = vld [vmem:[%s4472 + $0x38] sm:$0xff]
    %v4481 = vlaneseq
    %v4482 = vshrl.u32 %v4481, 7
    %v4483 = vsub.s32 5, %v4482
    %v4484 = vrot.slane %v2345, %v4483
    %v4486 = vsel %vm2237, %v4468, 0
    %v4489 = vsel %vm2237, %v4469, 0
    %v4492 = vsel %vm2237, %v4470, 0
    %v4495 = vsel %vm2237, %v4471, 0
    %4497 = vmatprep.subr.mxu0 0.0
    %4498 = vmatpush1.msra.mxu0 0.0
    %4499 = vmatprep.subr.mxu0 0.0
    %4500 = vmatpush1.msra.mxu0 0.0
    %4501 = vmatprep.subr.mxu0 0.0
    %4502 = vmatpush1.msra.mxu0 0.0
    %4503 = vmatprep.subr.mxu0 0.0
    %4504 = vmatpush1.msra.mxu0 0.0
    %4505 = vmatprep.subr.mxu0 0.0
    %4506 = vmatpush1.msra.mxu0 0.0
    %4507 = vmatprep.subr.mxu0 0.0
    %4508 = vmatpush1.msra.mxu0 0.0
    %4509 = vmatprep.subr.mxu0 0.0
    %4510 = vmatpush1.msra.mxu0 0.0
    %4511 = vmatprep.subr.mxu0 0.0
    %4512 = vmatpush1.msra.mxu0 0.0
    %4513 = vmatprep.subr.mxu0 0.0
    %4514 = vmatpush1.msra.mxu0 %v4480
    %4515 = vmatprep.subr.mxu0 0.0
    %4516 = vmatpush1.msra.mxu0 %v4479
    %4517 = vmatprep.subr.mxu0 0.0
    %4518 = vmatpush1.msra.mxu0 %v4478
    %4519 = vmatprep.subr.mxu0 0.0
    %4520 = vmatpush1.msra.mxu0 %v4477
    %4521 = vmatprep.subr.mxu0 0.0
    %4522 = vmatpush1.msra.mxu0 %v4476
    %4523 = vmatprep.subr.mxu0 0.0
    %4524 = vmatpush1.msra.mxu0 %v4475
    %4525 = vmatprep.subr.mxu0 0.0
    %4526 = vmatpush1.msra.mxu0 %v4474
    %4527 = vmatprep.subr.mxu0 0.0
    %4528 = vmatpush1.msra.mxu0 %v4473
    %4529 = vmatprep.subr.mxu0 0.0
    %4530 = vmatpush2.msra.mxu0 0.0
    %4531 = vmatprep.subr.mxu0 0.0
    %4532 = vmatpush2.msra.mxu0 0.0
    %4533 = vmatprep.subr.mxu0 0.0
    %4534 = vmatpush2.msra.mxu0 0.0
    %4535 = vmatprep.subr.mxu0 0.0
    %4536 = vmatpush2.msra.mxu0 0.0
    %4537 = vmatprep.subr.mxu0 0.0
    %4538 = vmatpush2.msra.mxu0 0.0
    %4539 = vmatprep.subr.mxu0 0.0
    %4540 = vmatpush2.msra.mxu0 0.0
    %4541 = vmatprep.subr.mxu0 0.0
    %4542 = vmatpush2.msra.mxu0 0.0
    %4543 = vmatprep.subr.mxu0 0.0
    %4544 = vmatpush2.msra.mxu0 0.0
    %4545 = vmatprep.subr.mxu0 0.0
    %4546 = vmatpush2.msra.mxu0 0.0
    %4547 = vmatprep.subr.mxu0 0.0
    %4548 = vmatpush2.msra.mxu0 0.0
    %4549 = vmatprep.subr.mxu0 0.0
    %4550 = vmatpush2.msra.mxu0 0.0
    %4551 = vmatprep.subr.mxu0 0.0
    %4552 = vmatpush2.msra.mxu0 0.0
    %4553 = vmatprep.subr.mxu0 0.0
    %4554 = vmatpush2.msra.mxu0 0.0
    %4555 = vmatprep.subr.mxu0 0.0
    %4556 = vmatpush2.msra.mxu0 0.0
    %4557 = vmatprep.subr.mxu0 0.0
    %4558 = vmatpush2.msra.mxu0 0.0
    %4559 = vmatprep.subr.mxu0 0.0
    %4560 = vmatpush2.msra.mxu0 0.0
    %4561 = vmatprep.mubr.f32.mxu0 0.0
    %4562 = vmatmul.mubr.f32.gmra.mxu0 %v4486
    %v4563 = vpop.f32.mrf.mxu0
    %v4564 = vadd.f32 %v4484, %v4563
    %v4565 = vpop.f32.mrf.mxu0
    %4566 = vmatprep.mubr.f32.mxu0 0.0
    %4567 = vmatmul.mubr.f32.gmra.mxu0 %v4489
    %v4568 = vpop.f32.mrf.mxu0
    %v4569 = vadd.f32 %v4484, %v4568
    %v4570 = vpop.f32.mrf.mxu0
    %4571 = vmatprep.mubr.f32.mxu0 0.0
    %4572 = vmatmul.mubr.f32.gmra.mxu0 %v4492
    %v4573 = vpop.f32.mrf.mxu0
    %v4574 = vadd.f32 %v4484, %v4573
    %v4575 = vpop.f32.mrf.mxu0
    %4576 = vmatprep.mubr.f32.mxu0 0.0
    %4577 = vmatmul.mubr.f32.gmra.mxu0 %v4495
    %v4578 = vpop.f32.mrf.mxu0
    %v4579 = vadd.f32 %v4484, %v4578
    %v4580 = vpop.f32.mrf.mxu0
    %4581 = vdwg.mxu0
    %v4582 = vadd.f32 %v4286, %v4564
    %v4583 = vadd.f32 %v4287, %v4569
    %v4584 = vadd.f32 %v4288, %v4574
    %v4585 = vadd.f32 %v4289, %v4579
    %s4586 = scalar_lea.vmem [#allocation8], 64
    %4587 = vst.msk [vmem:[%s4586] sm:$0xff] %vm94, %v4582
    %4588 = vst.msk [vmem:[%s4586 + $0x8] sm:$0xff] %vm94, %v4583
    %4589 = vst.msk [vmem:[%s4586 + $0x10] sm:$0xff] %vm94, %v4584
    %4590 = vst.msk [vmem:[%s4586 + $0x18] sm:$0xff] %vm94, %v4585
    // Predicated region
    $region50: #{tpu_custom_call.1} parent=1 // pred_check
      _
    $region51: #{tpu_custom_call.1} parent=1 // pred_check_branch
      %4592 = sbr.rel (0) target = $region53
    $region52: #{tpu_custom_call.1} parent=1 // pred_region
      %s4594 = ssub.s32 1536, 1536
      %4595 = vsyncadd [#allocation4], %s4594
      %s4596 = sshll.u32 [#allocation8], 4
      %s4597 = int_to_ptr.vmem [resolvable:$true] %s4596
      %4602 = dma.vmem_to_hbm [thread:$0]  %s4597, 1536, %s9, [#allocation4], 128, 128, 8
    $region53: #{tpu_custom_call.1} parent=1 // pred_fallthru
      _
    // Predicated region
    $region54: #{tpu_custom_call.1} parent=1 // pred_check
      _
    $region55: #{tpu_custom_call.1} parent=1 // pred_check_branch
      %4604 = sbr.rel (0) target = $region57
    $region56: #{tpu_custom_call.1} parent=1 // pred_region
      %4605 = dma.done [#allocation4], 1536
    $region57: #{tpu_custom_call.1} parent=1 // pred_fallthru
      _
    %4606 = vsyncpa [#allocation3], 1
    %4607 = vsyncpa [#allocation6], 1
    %4608 = vsyncpa [#allocation4], 1

</llo_original>
